<compile_context>
chip_gen: v7x
topology: tpu7x:2x2x1
jax: 0.10.0
libtpu: 0.0.40
codegen_flags: <defaults>
</compile_context>

<pallas_src>
import math

import numpy as np
import jax
import jax.numpy as jnp
from jax import lax
from jax.experimental import pallas as pl
from jax.experimental.pallas import tpu as pltpu


# --------------------------------------------------------------------------- #
# In-kernel activation helpers                                                  #
# --------------------------------------------------------------------------- #
def _silu(x):
    # SiLU = x * sigmoid(x); the divide goes to the EUP (approx reciprocal)
    # instead of the VALU, which is busy on the serial scan chain.
    return x * pl.reciprocal(1.0 + jnp.exp(-x), approx=True)


def _softplus(x):
    # numerically-stable softplus matching torch.nn.functional.softplus
    # (threshold=20).
    return jnp.where(x > 20.0, x,
                     jnp.maximum(x, 0.0) + jnp.log(1.0 + jnp.exp(-jnp.abs(x))))


# --------------------------------------------------------------------------- #
# Pallas kernel: one grid step == one (batch, L-chunk) tile.                    #
# SSM state + conv halo persist in VMEM scratch across the L-chunk axis.        #
# --------------------------------------------------------------------------- #
def mamba_kernel(hs_ref, w_in_ref, convw_ref, convb_ref, w_dt_ref, w_bc_ref,
                 a_ref, d_ref, wout_ref,             # inputs
                 out_ref,                            # output
                 xbuf_ref, h_ref):                   # scratch (persist on grid)
    lt = hs_ref.shape[1]                             # timesteps in this chunk
    d_conv, d_inner = convw_ref.shape
    d_state = a_ref.shape[0]
    c = pl.program_id(1)                             # L-chunk index (sequential)

    # Reset the carried SSM state / conv halo at the start of every sequence.
    @pl.when(c == 0)
    def _():
        h_ref[...] = jnp.zeros_like(h_ref)
        xbuf_ref[pl.ds(0, d_conv - 1), :] = jnp.zeros((d_conv - 1, d_inner),
                                                      jnp.float32)

    # ---- fused in_proj on this chunk; split x / z (chunk(2, dim=channels)) --
    xz = jnp.dot(hs_ref[0].astype(w_in_ref.dtype), w_in_ref[...],
                 preferred_element_type=jnp.float32)            # (lt, 2*d_inner)
    x = xz[:, :d_inner]
    gate = _silu(xz[:, d_inner:])                               # SiLU(z)

    # ---- depthwise causal conv1d (padding=d_conv-1, truncated to L) + SiLU --
    # (d_conv-1)-row halo carried across chunks in xbuf_ref rows [0, d_conv-1).
    xbuf_ref[pl.ds(d_conv - 1, lt), :] = x
    cw = convw_ref[...].astype(jnp.float32)                     # (d_conv, d_inner)
    xc = jnp.zeros((lt, d_inner), jnp.float32) + convb_ref[...]
    for k in range(d_conv):
        xc = xc + xbuf_ref[pl.ds(k, lt), :] * cw[k:k + 1, :]
    if lt >= d_conv - 1:
        # stash the last (d_conv-1) x rows as the next chunk's halo
        xbuf_ref[pl.ds(0, d_conv - 1), :] = x[lt - (d_conv - 1):, :]
    u = _silu(xc)                                               # (lt, d_inner)

    # ---- x_proj with dt_proj folded in (weights pre-multiplied in wrapper) --
    u_mm = u.astype(w_dt_ref.dtype)
    delta = _softplus(jnp.dot(u_mm, w_dt_ref[...],
                              preferred_element_type=jnp.float32))  # (lt, d_inner)
    # B/C come out already transposed -- (2*d_state, lt) -- via a trans_b
    # matmul against u, so per-step (d_state, 1) columns need no in-kernel
    # transpose or minor-dim reshape on the scan's critical path.
    bct = lax.dot_general(w_bc_ref[...], u_mm,
                          dimension_numbers=(((1,), (1,)), ((), ())),
                          preferred_element_type=jnp.float32)   # (2*d_state, lt)
    b_t = bct[:d_state, :]
    c_t = bct[d_state:, :]

    # ---- selective scan over this chunk; state layout (d_state, d_inner) ----
    a_t = a_ref[...]                                            # -exp(A_log)^T
    du = delta * u
    hstate = h_ref[...]
    ys = []
    for i in range(lt):                                         # unrolled scan
        # dA_i / dBu_i built just-in-time (never materialized per chunk)
        dA_i = jnp.exp(delta[i:i + 1, :] * a_t)                 # (d_state, d_inner)
        dBu_i = b_t[:, i:i + 1] * du[i:i + 1, :]                # (d_state, d_inner)
        hstate = dA_i * hstate + dBu_i
        ys.append(jnp.sum(c_t[:, i:i + 1] * hstate, axis=0, keepdims=True))
    h_ref[...] = hstate
    y = jnp.concatenate(ys, axis=0)                             # (lt, d_inner)

    # ---- skip (u*D), gate (SiLU(z)), out_proj --------------------------------
    y = (y + u * d_ref[...]) * gate
    out = jnp.dot(y.astype(wout_ref.dtype), wout_ref[...],
                  preferred_element_type=jnp.float32)
    out_ref[0] = out.astype(out_ref.dtype)


# --------------------------------------------------------------------------- #
# Wrapper                                                                       #
# --------------------------------------------------------------------------- #
def _padded_tile_bytes(shape, dtype):
    itemsize = np.dtype(dtype).itemsize
    shape = tuple(int(s) for s in shape)
    if len(shape) < 2:
        return 8 * 128 * itemsize
    lead = 1
    for s in shape[:-2]:
        lead *= s
    sub = -(-shape[-2] // 8) * 8
    lane = -(-shape[-1] // 128) * 128
    return lead * sub * lane * itemsize


def _pick_chunk(L, d_inner, chunk):
    if chunk is not None and chunk >= 8 and L % chunk == 0:
        return chunk
    prefer = (16, 8) if d_inner <= 128 else (8, 16)
    for cand in prefer:
        if L % cand == 0:
            return cand
    # TODO(synk): pad L to a multiple of 8 for long ragged sequences instead of
    #             unrolling the whole sequence in a single chunk.
    return L


def mamba_forward(hs, p, *, matmul_dtype=jnp.float32, chunk=None):
    """Fused Vision-Mamba block (bimamba_type='none', bias=False, conv_bias=True).

    matmul_dtype=jnp.bfloat16 is recommended on ALL TPU generations
    (v5e/v6e/v7x run bf16 MXU matmuls at full rate; accumulation stays f32 and
    the scan math stays f32).  The I/O dtype follows hs.dtype."""
    B, L, d_model = hs.shape
    d_conv, d_inner = p["conv_w"].shape
    d_state = p["A_log"].shape[1]
    dt_rank = p["w_dt"].shape[0]

    lt = _pick_chunk(L, d_inner, chunk)
    num_chunks = L // lt

    mm = matmul_dtype
    f32 = jnp.float32
    w_in = p["w_in"].astype(mm)                               # (d_model, 2*d_inner)
    conv_w = p["conv_w"].astype(f32)                          # (d_conv, d_inner)
    conv_b = p["conv_b"].astype(f32)                          # (1, d_inner)
    # dt_proj folded into x_proj (exact: neither path has a bias here).
    # TODO(synk): for very large d_inner the low-rank (w_x_dt, w_dt) pair is
    #             cheaper in weight bytes; the fold is kept per review for
    #             MXU-friendliness (kills the K=dt_rank matmul).
    w_dt_f = (p["w_x"][:, :dt_rank].astype(f32) @ p["w_dt"].astype(f32)).astype(mm)
    # B/C projection pre-transposed so the kernel's trans_b matmul yields
    # (2*d_state, lt) directly.
    w_bc_t = jnp.transpose(p["w_x"][:, dt_rank:]).astype(mm)  # (2*d_state, d_inner)
    a_t = jnp.transpose(-jnp.exp(p["A_log"].astype(f32)))     # (d_state, d_inner)
    Dp = p["D"].astype(f32)                                   # (1, d_inner)
    w_out = p["w_out"].astype(mm)                             # (d_inner, d_model)

    inputs = (hs, w_in, conv_w, conv_b, w_dt_f, w_bc_t, a_t, Dp, w_out)
    weights = inputs[1:]
    out_dtype = hs.dtype

    scratch_defs = [
        ((lt + d_conv - 1, d_inner), f32),   # conv window (+ carried halo rows)
        ((d_state, d_inner), f32),           # carried SSM state
    ]
    scratch_shapes = [pltpu.VMEM(s, d) for s, d in scratch_defs]

    io_spec = pl.BlockSpec((1, lt, d_model), lambda b, c: (b, c, 0))

    try:
        vmem_cap = int(pltpu.get_tpu_info().vmem_capacity_bytes)
    except Exception:
        vmem_cap = 64 * 1024 * 1024          # conservative (v7x physical VMEM)
    vmem_cap = int(0.75 * vmem_cap)

    def build(single_buffer_weights):
        if single_buffer_weights:
            w_specs = [pl.BlockSpec(a.shape,
                                    (lambda b, c, n=a.ndim: (0,) * n),
                                    pipeline_mode=pl.Buffered(1))
                       for a in weights]
            weight_bufs = 1
        else:
            w_specs = [pl.BlockSpec(a.shape, (lambda b, c, n=a.ndim: (0,) * n))
                       for a in weights]
            weight_bufs = 2

        # explicit scoped-VMEM budget: never below the computed footprint,
        # capped generation-aware at 0.75 * physical VMEM.
        footprint = 2 * _padded_tile_bytes((1, lt, d_model), hs.dtype)
        footprint += 2 * _padded_tile_bytes((1, lt, d_model), out_dtype)
        footprint += weight_bufs * sum(
            _padded_tile_bytes(a.shape, a.dtype) for a in weights)
        footprint += sum(_padded_tile_bytes(s, d) for s, d in scratch_defs)
        footprint += (10 * lt * d_inner + 6 * d_state * d_inner) * 4  # temps
        vmem_limit = max(2 * footprint, 32 * 1024 * 1024)
        vmem_limit = min(vmem_limit, vmem_cap)
        vmem_limit = int(max(vmem_limit, footprint))

        grid_spec = pltpu.PrefetchScalarGridSpec(
            num_scalar_prefetch=0,
            grid=(B, num_chunks),
            in_specs=[io_spec] + w_specs,
            out_specs=io_spec,
            scratch_shapes=scratch_shapes,
        )
        return pl.pallas_call(
            mamba_kernel,
            out_shape=jax.ShapeDtypeStruct((B, L, d_model), out_dtype),
            grid_spec=grid_spec,
            compiler_params=pltpu.CompilerParams(
                dimension_semantics=("parallel", "arbitrary"),
                vmem_limit_bytes=vmem_limit),
        )(*inputs)

    # TODO(synk): for B==1 (or odd B) on v7x, add a parallel d_inner-tile grid
    #             axis (channels are independent through conv+scan) so both
    #             TensorCores get work; x_proj/out_proj would then need a
    #             cross-core partial sum or be hoisted to plain XLA matmuls.
    try:
        return build(single_buffer_weights=True)
    except Exception:
        # pl.Buffered(1) (single-buffered constant weights) not supported on
        # this jax version -- fall back to default double-buffered specs.
        return build(single_buffer_weights=False)


# --------------------------------------------------------------------------- #
# Deterministic parameter init (shapes per Mamba.__init__)                      #
# --------------------------------------------------------------------------- #
def init_params(key, d_model=32, d_state=16, d_conv=4, expand=2, dt_scale=1.0):
    d_inner = int(expand * d_model)
    dt_rank = math.ceil(d_model / 16)
    ks = jax.random.split(key, 6)

    w_in = jax.random.normal(ks[0], (d_model, 2 * d_inner), jnp.float32) * 0.1
    conv_w = jax.random.normal(ks[1], (d_conv, d_inner), jnp.float32) * 0.2
    conv_b = jax.random.normal(ks[2], (1, d_inner), jnp.float32) * 0.05
    w_x = jax.random.normal(ks[3], (d_inner, dt_rank + 2 * d_state),
                            jnp.float32) * 0.5
    dt_init_std = dt_rank ** (-0.5) * dt_scale                 # dt_init == 'random'
    w_dt = jax.random.uniform(ks[4], (dt_rank, d_inner), jnp.float32,
                              -dt_init_std, dt_init_std)
    A_log = jnp.log(jnp.tile(
        jnp.arange(1, d_state + 1, dtype=jnp.float32)[None, :], (d_inner, 1)))
    Dp = jnp.ones((1, d_inner), jnp.float32)
    w_out = jax.random.normal(ks[5], (d_inner, d_model), jnp.float32) * 0.1

    return dict(w_in=w_in, conv_w=conv_w, conv_b=conv_b, w_x=w_x, w_dt=w_dt,
                A_log=A_log, D=Dp, w_out=w_out)


# --------------------------------------------------------------------------- #
# Pure-JAX reference (same math, for a sanity check)                            #
# --------------------------------------------------------------------------- #
def _sigmoid_ref(x):
    return 1.0 / (1.0 + jnp.exp(-x))


def mamba_reference(hs, p):
    B, L, _ = hs.shape
    d_conv, d_inner = p["conv_w"].shape
    d_state = p["A_log"].shape[1]
    dt_rank = p["w_dt"].shape[0]

    def one(h):
        xz = h @ p["w_in"]
        x, z = xz[:, :d_inner], xz[:, d_inner:]
        xpad = jnp.concatenate([jnp.zeros((d_conv - 1, d_inner)), x], axis=0)
        xc = sum(p["conv_w"][k][None, :] * xpad[k:k + L] for k in range(d_conv))
        xc = xc + p["conv_b"][0][None, :]
        u = xc * _sigmoid_ref(xc)
        xdbl = u @ p["w_x"]
        dtr = xdbl[:, :dt_rank]
        Bm = xdbl[:, dt_rank:dt_rank + d_state]
        Cm = xdbl[:, dt_rank + d_state:]
        delta = jax.nn.softplus(dtr @ p["w_dt"])
        A = -jnp.exp(p["A_log"])                               # (d_inner, d_state)
        dA = jnp.exp(delta[:, :, None] * A[None])
        dBu = delta[:, :, None] * Bm[:, None, :] * u[:, :, None]
        hstate = jnp.zeros((d_inner, d_state))
        ys = []
        for l in range(L):
            hstate = dA[l] * hstate + dBu[l]
            ys.append(jnp.sum(hstate * Cm[l][None, :], axis=-1))
        y = jnp.stack(ys, axis=0) + u * p["D"][0][None, :]
        y = y * (z * _sigmoid_ref(z))
        return y @ p["w_out"]

    return jnp.stack([one(hs[b]) for b in range(B)], axis=0)


if __name__ == "__main__":
    key = jax.random.PRNGKey(0)
    k_inp, k_par = jax.random.split(key)

    B, L, d_model = 2, 32, 32        # -> d_inner=64, d_state=16, d_conv=4, dt_rank=2
    params = init_params(k_par, d_model=d_model)
    hidden_states = jax.random.normal(k_inp, (B, L, d_model), jnp.float32)

    out = jax.block_until_ready(mamba_forward(hidden_states, params))
    ref = jax.block_until_ready(mamba_reference(hidden_states, params))

    assert out.shape == (B, L, d_model)
    np.testing.assert_allclose(np.asarray(out), np.asarray(ref),
                               rtol=2e-2, atol=1e-3)
    print("KERNEL_OK")
</pallas_src>

<mosaic_0001>
module attributes {stable_mosaic.version = 11 : i64} {
  func.func @mamba_kernel(%arg0: i32, %arg1: i32, %arg2: memref<1x16x32xf32, #tpu.memory_space<vmem>>, %arg3: memref<32x128xf32, #tpu.memory_space<vmem>>, %arg4: memref<4x64xf32, #tpu.memory_space<vmem>>, %arg5: memref<1x64xf32, #tpu.memory_space<vmem>>, %arg6: memref<64x64xf32, #tpu.memory_space<vmem>>, %arg7: memref<32x64xf32, #tpu.memory_space<vmem>>, %arg8: memref<16x64xf32, #tpu.memory_space<vmem>>, %arg9: memref<1x64xf32, #tpu.memory_space<vmem>>, %arg10: memref<64x32xf32, #tpu.memory_space<vmem>>, %arg11: memref<1x16x32xf32, #tpu.memory_space<vmem>>, %arg12: memref<19x64xf32, #tpu.memory_space<vmem>>, %arg13: memref<16x64xf32, #tpu.memory_space<vmem>>) attributes {dimension_semantics = [#tpu.dimension_semantics<parallel>, #tpu.dimension_semantics<arbitrary>], iteration_bounds = array<i64: 2, 2>, scalar_prefetch = 0 : i64, scratch_operands = 2 : i64, tpu.core_type = #tpu.core_type<tc>, window_params = [{transform_indices = @transform_0, window_bounds = array<i64: 1, 16, 32>}, {pipeline_mode = #tpu.pipeline_mode<synchronous>, transform_indices = @transform_1, window_bounds = array<i64: 32, 128>}, {pipeline_mode = #tpu.pipeline_mode<synchronous>, transform_indices = @transform_2, window_bounds = array<i64: 4, 64>}, {pipeline_mode = #tpu.pipeline_mode<synchronous>, transform_indices = @transform_3, window_bounds = array<i64: 1, 64>}, {pipeline_mode = #tpu.pipeline_mode<synchronous>, transform_indices = @transform_4, window_bounds = array<i64: 64, 64>}, {pipeline_mode = #tpu.pipeline_mode<synchronous>, transform_indices = @transform_5, window_bounds = array<i64: 32, 64>}, {pipeline_mode = #tpu.pipeline_mode<synchronous>, transform_indices = @transform_6, window_bounds = array<i64: 16, 64>}, {pipeline_mode = #tpu.pipeline_mode<synchronous>, transform_indices = @transform_7, window_bounds = array<i64: 1, 64>}, {pipeline_mode = #tpu.pipeline_mode<synchronous>, transform_indices = @transform_8, window_bounds = array<i64: 64, 32>}, {transform_indices = @transform_9, window_bounds = array<i64: 1, 16, 32>}]} {
    %c0_i32 = arith.constant 0 : i32
    %0 = arith.cmpi eq, %arg1, %c0_i32 : i32
    %1 = arith.extui %0 : i1 to i32
    %c0_i32_0 = arith.constant 0 : i32
    %2 = arith.cmpi ne, %1, %c0_i32_0 : i32
    scf.if %2 {
      %cst_63 = arith.constant 0.000000e+00 : f32
      %341 = vector.broadcast %cst_63 : f32 to vector<16x64xf32>
      %c0_64 = arith.constant 0 : index
      %c0_65 = arith.constant 0 : index
      %342 = vector.load %arg13[%c0_64, %c0_65] : memref<16x64xf32, #tpu.memory_space<vmem>>, vector<16x64xf32>
      tpu.vector_store %arg13[%c0_64, %c0_65], %341 {strides = array<i32>} : memref<16x64xf32, #tpu.memory_space<vmem>>, vector<16x64xf32>,
      %cst_66 = arith.constant 0.000000e+00 : f32
      %343 = vector.broadcast %cst_66 : f32 to vector<3x64xf32>
      %c0_67 = arith.constant 0 : index
      %c0_68 = arith.constant 0 : index
      %344 = vector.load %arg12[%c0_67, %c0_68] : memref<19x64xf32, #tpu.memory_space<vmem>>, vector<3x64xf32>
      tpu.vector_store %arg12[%c0_67, %c0_68], %343 {strides = array<i32>} : memref<19x64xf32, #tpu.memory_space<vmem>>, vector<3x64xf32>,
    } else {
    }
    %c0 = arith.constant 0 : index
    %c0_1 = arith.constant 0 : index
    %c0_2 = arith.constant 0 : index
    %3 = vector.load %arg2[%c0, %c0_1, %c0_2] : memref<1x16x32xf32, #tpu.memory_space<vmem>>, vector<1x16x32xf32>
    %4 = vector.shape_cast %3 : vector<1x16x32xf32> to vector<16x32xf32>
    %c0_3 = arith.constant 0 : index
    %c0_4 = arith.constant 0 : index
    %5 = vector.load %arg3[%c0_3, %c0_4] : memref<32x128xf32, #tpu.memory_space<vmem>>, vector<32x128xf32>
    %cst = arith.constant dense<0.000000e+00> : vector<16x128xf32>
    %6 = tpu.matmul %4, %5, %cst {dimension_numbers = #tpu.dot_dimension_numbers<[1], [0], [0], [1], [0, 0, 1, 1], [], []>} : vector<16x32xf32>, vector<32x128xf32>, vector<16x128xf32> -> vector<16x128xf32>
    %7 = vector.extract_strided_slice %6 {offsets = [0, 0], sizes = [16, 64], strides = [1, 1]} : vector<16x128xf32> to vector<16x64xf32>
    %8 = vector.extract_strided_slice %6 {offsets = [0, 64], sizes = [16, 64], strides = [1, 1]} : vector<16x128xf32> to vector<16x64xf32>
    %cst_5 = arith.constant 0.000000e+00 : f32
    %9 = vector.broadcast %cst_5 : f32 to vector<16x64xf32>
    %10 = arith.subf %9, %8 : vector<16x64xf32>
    %11 = math.exp %10 : vector<16x64xf32>
    %cst_6 = arith.constant 1.000000e+00 : f32
    %12 = vector.broadcast %cst_6 : f32 to vector<16x64xf32>
    %13 = arith.addf %12, %11 : vector<16x64xf32>
    %14 = tpu.reciprocal %13 {approx = true} : vector<16x64xf32> -> vector<16x64xf32>
    %15 = arith.mulf %8, %14 : vector<16x64xf32>
    %c3 = arith.constant 3 : index
    %c0_7 = arith.constant 0 : index
    %16 = vector.load %arg12[%c3, %c0_7] : memref<19x64xf32, #tpu.memory_space<vmem>>, vector<16x64xf32>
    tpu.vector_store %arg12[%c3, %c0_7], %7 {strides = array<i32>} : memref<19x64xf32, #tpu.memory_space<vmem>>, vector<16x64xf32>,
    %c0_8 = arith.constant 0 : index
    %c0_9 = arith.constant 0 : index
    %17 = vector.load %arg4[%c0_8, %c0_9] : memref<4x64xf32, #tpu.memory_space<vmem>>, vector<4x64xf32>
    %cst_10 = arith.constant 0.000000e+00 : f32
    %18 = vector.broadcast %cst_10 : f32 to vector<16x64xf32>
    %c0_11 = arith.constant 0 : index
    %c0_12 = arith.constant 0 : index
    %19 = vector.load %arg5[%c0_11, %c0_12] : memref<1x64xf32, #tpu.memory_space<vmem>>, vector<1x64xf32>
    %20 = vector.broadcast %19 : vector<1x64xf32> to vector<16x64xf32>
    %21 = arith.addf %18, %20 : vector<16x64xf32>
    %c0_13 = arith.constant 0 : index
    %c0_14 = arith.constant 0 : index
    %22 = vector.load %arg12[%c0_13, %c0_14] : memref<19x64xf32, #tpu.memory_space<vmem>>, vector<16x64xf32>
    %23 = vector.extract_strided_slice %17 {offsets = [0, 0], sizes = [1, 64], strides = [1, 1]} : vector<4x64xf32> to vector<1x64xf32>
    %24 = vector.broadcast %23 : vector<1x64xf32> to vector<16x64xf32>
    %25 = arith.mulf %22, %24 : vector<16x64xf32>
    %26 = arith.addf %21, %25 : vector<16x64xf32>
    %c1 = arith.constant 1 : index
    %c0_15 = arith.constant 0 : index
    %27 = vector.load %arg12[%c1, %c0_15] : memref<19x64xf32, #tpu.memory_space<vmem>>, vector<16x64xf32>
    %28 = vector.extract_strided_slice %17 {offsets = [1, 0], sizes = [1, 64], strides = [1, 1]} : vector<4x64xf32> to vector<1x64xf32>
    %29 = vector.broadcast %28 : vector<1x64xf32> to vector<16x64xf32>
    %30 = arith.mulf %27, %29 : vector<16x64xf32>
    %31 = arith.addf %26, %30 : vector<16x64xf32>
    %c2 = arith.constant 2 : index
    %c0_16 = arith.constant 0 : index
    %32 = vector.load %arg12[%c2, %c0_16] : memref<19x64xf32, #tpu.memory_space<vmem>>, vector<16x64xf32>
    %33 = vector.extract_strided_slice %17 {offsets = [2, 0], sizes = [1, 64], strides = [1, 1]} : vector<4x64xf32> to vector<1x64xf32>
    %34 = vector.broadcast %33 : vector<1x64xf32> to vector<16x64xf32>
    %35 = arith.mulf %32, %34 : vector<16x64xf32>
    %36 = arith.addf %31, %35 : vector<16x64xf32>
    %c3_17 = arith.constant 3 : index
    %c0_18 = arith.constant 0 : index
    %37 = vector.load %arg12[%c3_17, %c0_18] : memref<19x64xf32, #tpu.memory_space<vmem>>, vector<16x64xf32>
    %38 = vector.extract_strided_slice %17 {offsets = [3, 0], sizes = [1, 64], strides = [1, 1]} : vector<4x64xf32> to vector<1x64xf32>
    %39 = vector.broadcast %38 : vector<1x64xf32> to vector<16x64xf32>
    %40 = arith.mulf %37, %39 : vector<16x64xf32>
    %41 = arith.addf %36, %40 : vector<16x64xf32>
    %42 = vector.extract_strided_slice %7 {offsets = [13, 0], sizes = [3, 64], strides = [1, 1]} : vector<16x64xf32> to vector<3x64xf32>
    %c0_19 = arith.constant 0 : index
    %c0_20 = arith.constant 0 : index
    %43 = vector.load %arg12[%c0_19, %c0_20] : memref<19x64xf32, #tpu.memory_space<vmem>>, vector<3x64xf32>
    tpu.vector_store %arg12[%c0_19, %c0_20], %42 {strides = array<i32>} : memref<19x64xf32, #tpu.memory_space<vmem>>, vector<3x64xf32>,
    %cst_21 = arith.constant 0.000000e+00 : f32
    %44 = vector.broadcast %cst_21 : f32 to vector<16x64xf32>
    %45 = arith.subf %44, %41 : vector<16x64xf32>
    %46 = math.exp %45 : vector<16x64xf32>
    %cst_22 = arith.constant 1.000000e+00 : f32
    %47 = vector.broadcast %cst_22 : f32 to vector<16x64xf32>
    %48 = arith.addf %47, %46 : vector<16x64xf32>
    %49 = tpu.reciprocal %48 {approx = true} : vector<16x64xf32> -> vector<16x64xf32>
    %50 = arith.mulf %41, %49 : vector<16x64xf32>
    %c0_23 = arith.constant 0 : index
    %c0_24 = arith.constant 0 : index
    %51 = vector.load %arg6[%c0_23, %c0_24] : memref<64x64xf32, #tpu.memory_space<vmem>>, vector<64x64xf32>
    %cst_25 = arith.constant dense<0.000000e+00> : vector<16x64xf32>
    %52 = tpu.matmul %50, %51, %cst_25 {dimension_numbers = #tpu.dot_dimension_numbers<[1], [0], [0], [1], [0, 0, 1, 1], [], []>} : vector<16x64xf32>, vector<64x64xf32>, vector<16x64xf32> -> vector<16x64xf32>
    %cst_26 = arith.constant 2.000000e+01 : f32
    %53 = vector.broadcast %cst_26 : f32 to vector<16x64xf32>
    %54 = arith.cmpf ogt, %52, %53 : vector<16x64xf32>
    %cst_27 = arith.constant 0.000000e+00 : f32
    %55 = vector.broadcast %cst_27 : f32 to vector<16x64xf32>
    %56 = arith.maximumf %52, %55 : vector<16x64xf32>
    %57 = math.absf %52 : vector<16x64xf32>
    %cst_28 = arith.constant 0.000000e+00 : f32
    %58 = vector.broadcast %cst_28 : f32 to vector<16x64xf32>
    %59 = arith.subf %58, %57 : vector<16x64xf32>
    %60 = math.exp %59 : vector<16x64xf32>
    %cst_29 = arith.constant 1.000000e+00 : f32
    %61 = vector.broadcast %cst_29 : f32 to vector<16x64xf32>
    %62 = arith.addf %61, %60 : vector<16x64xf32>
    %63 = math.log %62 : vector<16x64xf32>
    %64 = arith.addf %56, %63 : vector<16x64xf32>
    %65 = arith.select %54, %52, %64 : vector<16x64xi1>, vector<16x64xf32>
    %c0_30 = arith.constant 0 : index
    %c0_31 = arith.constant 0 : index
    %66 = vector.load %arg7[%c0_30, %c0_31] : memref<32x64xf32, #tpu.memory_space<vmem>>, vector<32x64xf32>
    %cst_32 = arith.constant dense<0.000000e+00> : vector<32x16xf32>
    %67 = tpu.matmul %66, %50, %cst_32 {dimension_numbers = #tpu.dot_dimension_numbers<[1], [1], [0], [0], [0, 0, 1, 0], [], []>} : vector<32x64xf32>, vector<16x64xf32>, vector<32x16xf32> -> vector<32x16xf32>
    %68 = vector.extract_strided_slice %67 {offsets = [0, 0], sizes = [16, 16], strides = [1, 1]} : vector<32x16xf32> to vector<16x16xf32>
    %69 = vector.extract_strided_slice %67 {offsets = [16, 0], sizes = [16, 16], strides = [1, 1]} : vector<32x16xf32> to vector<16x16xf32>
    %c0_33 = arith.constant 0 : index
    %c0_34 = arith.constant 0 : index
    %70 = vector.load %arg8[%c0_33, %c0_34] : memref<16x64xf32, #tpu.memory_space<vmem>>, vector<16x64xf32>
    %71 = arith.mulf %65, %50 : vector<16x64xf32>
    %c0_35 = arith.constant 0 : index
    %c0_36 = arith.constant 0 : index
    %72 = vector.load %arg13[%c0_35, %c0_36] : memref<16x64xf32, #tpu.memory_space<vmem>>, vector<16x64xf32>
    %73 = vector.extract_strided_slice %65 {offsets = [0, 0], sizes = [1, 64], strides = [1, 1]} : vector<16x64xf32> to vector<1x64xf32>
    %74 = vector.broadcast %73 : vector<1x64xf32> to vector<16x64xf32>
    %75 = arith.mulf %74, %70 : vector<16x64xf32>
    %76 = math.exp %75 : vector<16x64xf32>
    %77 = vector.extract_strided_slice %68 {offsets = [0, 0], sizes = [16, 1], strides = [1, 1]} : vector<16x16xf32> to vector<16x1xf32>
    %78 = vector.extract_strided_slice %71 {offsets = [0, 0], sizes = [1, 64], strides = [1, 1]} : vector<16x64xf32> to vector<1x64xf32>
    %79 = vector.broadcast %77 : vector<16x1xf32> to vector<16x64xf32>
    %80 = vector.broadcast %78 : vector<1x64xf32> to vector<16x64xf32>
    %81 = arith.mulf %79, %80 : vector<16x64xf32>
    %82 = arith.mulf %76, %72 : vector<16x64xf32>
    %83 = arith.addf %82, %81 : vector<16x64xf32>
    %84 = vector.extract_strided_slice %69 {offsets = [0, 0], sizes = [16, 1], strides = [1, 1]} : vector<16x16xf32> to vector<16x1xf32>
    %85 = vector.broadcast %84 : vector<16x1xf32> to vector<16x64xf32>
    %86 = arith.mulf %85, %83 : vector<16x64xf32>
    %cst_37 = arith.constant dense<0.000000e+00> : vector<64xf32>
    %87 = vector.multi_reduction <add>, %86, %cst_37 [0] : vector<16x64xf32> to vector<64xf32>
    %88 = vector.shape_cast %87 : vector<64xf32> to vector<1x64xf32>
    %89 = vector.extract_strided_slice %65 {offsets = [1, 0], sizes = [1, 64], strides = [1, 1]} : vector<16x64xf32> to vector<1x64xf32>
    %90 = vector.broadcast %89 : vector<1x64xf32> to vector<16x64xf32>
    %91 = arith.mulf %90, %70 : vector<16x64xf32>
    %92 = math.exp %91 : vector<16x64xf32>
    %93 = vector.extract_strided_slice %68 {offsets = [0, 1], sizes = [16, 1], strides = [1, 1]} : vector<16x16xf32> to vector<16x1xf32>
    %94 = vector.extract_strided_slice %71 {offsets = [1, 0], sizes = [1, 64], strides = [1, 1]} : vector<16x64xf32> to vector<1x64xf32>
    %95 = vector.broadcast %93 : vector<16x1xf32> to vector<16x64xf32>
    %96 = vector.broadcast %94 : vector<1x64xf32> to vector<16x64xf32>
    %97 = arith.mulf %95, %96 : vector<16x64xf32>
    %98 = arith.mulf %92, %83 : vector<16x64xf32>
    %99 = arith.addf %98, %97 : vector<16x64xf32>
    %100 = vector.extract_strided_slice %69 {offsets = [0, 1], sizes = [16, 1], strides = [1, 1]} : vector<16x16xf32> to vector<16x1xf32>
    %101 = vector.broadcast %100 : vector<16x1xf32> to vector<16x64xf32>
    %102 = arith.mulf %101, %99 : vector<16x64xf32>
    %cst_38 = arith.constant dense<0.000000e+00> : vector<64xf32>
    %103 = vector.multi_reduction <add>, %102, %cst_38 [0] : vector<16x64xf32> to vector<64xf32>
    %104 = vector.shape_cast %103 : vector<64xf32> to vector<1x64xf32>
    %105 = vector.extract_strided_slice %65 {offsets = [2, 0], sizes = [1, 64], strides = [1, 1]} : vector<16x64xf32> to vector<1x64xf32>
    %106 = vector.broadcast %105 : vector<1x64xf32> to vector<16x64xf32>
    %107 = arith.mulf %106, %70 : vector<16x64xf32>
    %108 = math.exp %107 : vector<16x64xf32>
    %109 = vector.extract_strided_slice %68 {offsets = [0, 2], sizes = [16, 1], strides = [1, 1]} : vector<16x16xf32> to vector<16x1xf32>
    %110 = vector.extract_strided_slice %71 {offsets = [2, 0], sizes = [1, 64], strides = [1, 1]} : vector<16x64xf32> to vector<1x64xf32>
    %111 = vector.broadcast %109 : vector<16x1xf32> to vector<16x64xf32>
    %112 = vector.broadcast %110 : vector<1x64xf32> to vector<16x64xf32>
    %113 = arith.mulf %111, %112 : vector<16x64xf32>
    %114 = arith.mulf %108, %99 : vector<16x64xf32>
    %115 = arith.addf %114, %113 : vector<16x64xf32>
    %116 = vector.extract_strided_slice %69 {offsets = [0, 2], sizes = [16, 1], strides = [1, 1]} : vector<16x16xf32> to vector<16x1xf32>
    %117 = vector.broadcast %116 : vector<16x1xf32> to vector<16x64xf32>
    %118 = arith.mulf %117, %115 : vector<16x64xf32>
    %cst_39 = arith.constant dense<0.000000e+00> : vector<64xf32>
    %119 = vector.multi_reduction <add>, %118, %cst_39 [0] : vector<16x64xf32> to vector<64xf32>
    %120 = vector.shape_cast %119 : vector<64xf32> to vector<1x64xf32>
    %121 = vector.extract_strided_slice %65 {offsets = [3, 0], sizes = [1, 64], strides = [1, 1]} : vector<16x64xf32> to vector<1x64xf32>
    %122 = vector.broadcast %121 : vector<1x64xf32> to vector<16x64xf32>
    %123 = arith.mulf %122, %70 : vector<16x64xf32>
    %124 = math.exp %123 : vector<16x64xf32>
    %125 = vector.extract_strided_slice %68 {offsets = [0, 3], sizes = [16, 1], strides = [1, 1]} : vector<16x16xf32> to vector<16x1xf32>
    %126 = vector.extract_strided_slice %71 {offsets = [3, 0], sizes = [1, 64], strides = [1, 1]} : vector<16x64xf32> to vector<1x64xf32>
    %127 = vector.broadcast %125 : vector<16x1xf32> to vector<16x64xf32>
    %128 = vector.broadcast %126 : vector<1x64xf32> to vector<16x64xf32>
    %129 = arith.mulf %127, %128 : vector<16x64xf32>
    %130 = arith.mulf %124, %115 : vector<16x64xf32>
    %131 = arith.addf %130, %129 : vector<16x64xf32>
    %132 = vector.extract_strided_slice %69 {offsets = [0, 3], sizes = [16, 1], strides = [1, 1]} : vector<16x16xf32> to vector<16x1xf32>
    %133 = vector.broadcast %132 : vector<16x1xf32> to vector<16x64xf32>
    %134 = arith.mulf %133, %131 : vector<16x64xf32>
    %cst_40 = arith.constant dense<0.000000e+00> : vector<64xf32>
    %135 = vector.multi_reduction <add>, %134, %cst_40 [0] : vector<16x64xf32> to vector<64xf32>
    %136 = vector.shape_cast %135 : vector<64xf32> to vector<1x64xf32>
    %137 = vector.extract_strided_slice %65 {offsets = [4, 0], sizes = [1, 64], strides = [1, 1]} : vector<16x64xf32> to vector<1x64xf32>
    %138 = vector.broadcast %137 : vector<1x64xf32> to vector<16x64xf32>
    %139 = arith.mulf %138, %70 : vector<16x64xf32>
    %140 = math.exp %139 : vector<16x64xf32>
    %141 = vector.extract_strided_slice %68 {offsets = [0, 4], sizes = [16, 1], strides = [1, 1]} : vector<16x16xf32> to vector<16x1xf32>
    %142 = vector.extract_strided_slice %71 {offsets = [4, 0], sizes = [1, 64], strides = [1, 1]} : vector<16x64xf32> to vector<1x64xf32>
    %143 = vector.broadcast %141 : vector<16x1xf32> to vector<16x64xf32>
    %144 = vector.broadcast %142 : vector<1x64xf32> to vector<16x64xf32>
    %145 = arith.mulf %143, %144 : vector<16x64xf32>
    %146 = arith.mulf %140, %131 : vector<16x64xf32>
    %147 = arith.addf %146, %145 : vector<16x64xf32>
    %148 = vector.extract_strided_slice %69 {offsets = [0, 4], sizes = [16, 1], strides = [1, 1]} : vector<16x16xf32> to vector<16x1xf32>
    %149 = vector.broadcast %148 : vector<16x1xf32> to vector<16x64xf32>
    %150 = arith.mulf %149, %147 : vector<16x64xf32>
    %cst_41 = arith.constant dense<0.000000e+00> : vector<64xf32>
    %151 = vector.multi_reduction <add>, %150, %cst_41 [0] : vector<16x64xf32> to vector<64xf32>
    %152 = vector.shape_cast %151 : vector<64xf32> to vector<1x64xf32>
    %153 = vector.extract_strided_slice %65 {offsets = [5, 0], sizes = [1, 64], strides = [1, 1]} : vector<16x64xf32> to vector<1x64xf32>
    %154 = vector.broadcast %153 : vector<1x64xf32> to vector<16x64xf32>
    %155 = arith.mulf %154, %70 : vector<16x64xf32>
    %156 = math.exp %155 : vector<16x64xf32>
    %157 = vector.extract_strided_slice %68 {offsets = [0, 5], sizes = [16, 1], strides = [1, 1]} : vector<16x16xf32> to vector<16x1xf32>
    %158 = vector.extract_strided_slice %71 {offsets = [5, 0], sizes = [1, 64], strides = [1, 1]} : vector<16x64xf32> to vector<1x64xf32>
    %159 = vector.broadcast %157 : vector<16x1xf32> to vector<16x64xf32>
    %160 = vector.broadcast %158 : vector<1x64xf32> to vector<16x64xf32>
    %161 = arith.mulf %159, %160 : vector<16x64xf32>
    %162 = arith.mulf %156, %147 : vector<16x64xf32>
    %163 = arith.addf %162, %161 : vector<16x64xf32>
    %164 = vector.extract_strided_slice %69 {offsets = [0, 5], sizes = [16, 1], strides = [1, 1]} : vector<16x16xf32> to vector<16x1xf32>
    %165 = vector.broadcast %164 : vector<16x1xf32> to vector<16x64xf32>
    %166 = arith.mulf %165, %163 : vector<16x64xf32>
    %cst_42 = arith.constant dense<0.000000e+00> : vector<64xf32>
    %167 = vector.multi_reduction <add>, %166, %cst_42 [0] : vector<16x64xf32> to vector<64xf32>
    %168 = vector.shape_cast %167 : vector<64xf32> to vector<1x64xf32>
    %169 = vector.extract_strided_slice %65 {offsets = [6, 0], sizes = [1, 64], strides = [1, 1]} : vector<16x64xf32> to vector<1x64xf32>
    %170 = vector.broadcast %169 : vector<1x64xf32> to vector<16x64xf32>
    %171 = arith.mulf %170, %70 : vector<16x64xf32>
    %172 = math.exp %171 : vector<16x64xf32>
    %173 = vector.extract_strided_slice %68 {offsets = [0, 6], sizes = [16, 1], strides = [1, 1]} : vector<16x16xf32> to vector<16x1xf32>
    %174 = vector.extract_strided_slice %71 {offsets = [6, 0], sizes = [1, 64], strides = [1, 1]} : vector<16x64xf32> to vector<1x64xf32>
    %175 = vector.broadcast %173 : vector<16x1xf32> to vector<16x64xf32>
    %176 = vector.broadcast %174 : vector<1x64xf32> to vector<16x64xf32>
    %177 = arith.mulf %175, %176 : vector<16x64xf32>
    %178 = arith.mulf %172, %163 : vector<16x64xf32>
    %179 = arith.addf %178, %177 : vector<16x64xf32>
    %180 = vector.extract_strided_slice %69 {offsets = [0, 6], sizes = [16, 1], strides = [1, 1]} : vector<16x16xf32> to vector<16x1xf32>
    %181 = vector.broadcast %180 : vector<16x1xf32> to vector<16x64xf32>
    %182 = arith.mulf %181, %179 : vector<16x64xf32>
    %cst_43 = arith.constant dense<0.000000e+00> : vector<64xf32>
    %183 = vector.multi_reduction <add>, %182, %cst_43 [0] : vector<16x64xf32> to vector<64xf32>
    %184 = vector.shape_cast %183 : vector<64xf32> to vector<1x64xf32>
    %185 = vector.extract_strided_slice %65 {offsets = [7, 0], sizes = [1, 64], strides = [1, 1]} : vector<16x64xf32> to vector<1x64xf32>
    %186 = vector.broadcast %185 : vector<1x64xf32> to vector<16x64xf32>
    %187 = arith.mulf %186, %70 : vector<16x64xf32>
    %188 = math.exp %187 : vector<16x64xf32>
    %189 = vector.extract_strided_slice %68 {offsets = [0, 7], sizes = [16, 1], strides = [1, 1]} : vector<16x16xf32> to vector<16x1xf32>
    %190 = vector.extract_strided_slice %71 {offsets = [7, 0], sizes = [1, 64], strides = [1, 1]} : vector<16x64xf32> to vector<1x64xf32>
    %191 = vector.broadcast %189 : vector<16x1xf32> to vector<16x64xf32>
    %192 = vector.broadcast %190 : vector<1x64xf32> to vector<16x64xf32>
    %193 = arith.mulf %191, %192 : vector<16x64xf32>
    %194 = arith.mulf %188, %179 : vector<16x64xf32>
    %195 = arith.addf %194, %193 : vector<16x64xf32>
    %196 = vector.extract_strided_slice %69 {offsets = [0, 7], sizes = [16, 1], strides = [1, 1]} : vector<16x16xf32> to vector<16x1xf32>
    %197 = vector.broadcast %196 : vector<16x1xf32> to vector<16x64xf32>
    %198 = arith.mulf %197, %195 : vector<16x64xf32>
    %cst_44 = arith.constant dense<0.000000e+00> : vector<64xf32>
    %199 = vector.multi_reduction <add>, %198, %cst_44 [0] : vector<16x64xf32> to vector<64xf32>
    %200 = vector.shape_cast %199 : vector<64xf32> to vector<1x64xf32>
    %201 = vector.extract_strided_slice %65 {offsets = [8, 0], sizes = [1, 64], strides = [1, 1]} : vector<16x64xf32> to vector<1x64xf32>
    %202 = vector.broadcast %201 : vector<1x64xf32> to vector<16x64xf32>
    %203 = arith.mulf %202, %70 : vector<16x64xf32>
    %204 = math.exp %203 : vector<16x64xf32>
    %205 = vector.extract_strided_slice %68 {offsets = [0, 8], sizes = [16, 1], strides = [1, 1]} : vector<16x16xf32> to vector<16x1xf32>
    %206 = vector.extract_strided_slice %71 {offsets = [8, 0], sizes = [1, 64], strides = [1, 1]} : vector<16x64xf32> to vector<1x64xf32>
    %207 = vector.broadcast %205 : vector<16x1xf32> to vector<16x64xf32>
    %208 = vector.broadcast %206 : vector<1x64xf32> to vector<16x64xf32>
    %209 = arith.mulf %207, %208 : vector<16x64xf32>
    %210 = arith.mulf %204, %195 : vector<16x64xf32>
    %211 = arith.addf %210, %209 : vector<16x64xf32>
    %212 = vector.extract_strided_slice %69 {offsets = [0, 8], sizes = [16, 1], strides = [1, 1]} : vector<16x16xf32> to vector<16x1xf32>
    %213 = vector.broadcast %212 : vector<16x1xf32> to vector<16x64xf32>
    %214 = arith.mulf %213, %211 : vector<16x64xf32>
    %cst_45 = arith.constant dense<0.000000e+00> : vector<64xf32>
    %215 = vector.multi_reduction <add>, %214, %cst_45 [0] : vector<16x64xf32> to vector<64xf32>
    %216 = vector.shape_cast %215 : vector<64xf32> to vector<1x64xf32>
    %217 = vector.extract_strided_slice %65 {offsets = [9, 0], sizes = [1, 64], strides = [1, 1]} : vector<16x64xf32> to vector<1x64xf32>
    %218 = vector.broadcast %217 : vector<1x64xf32> to vector<16x64xf32>
    %219 = arith.mulf %218, %70 : vector<16x64xf32>
    %220 = math.exp %219 : vector<16x64xf32>
    %221 = vector.extract_strided_slice %68 {offsets = [0, 9], sizes = [16, 1], strides = [1, 1]} : vector<16x16xf32> to vector<16x1xf32>
    %222 = vector.extract_strided_slice %71 {offsets = [9, 0], sizes = [1, 64], strides = [1, 1]} : vector<16x64xf32> to vector<1x64xf32>
    %223 = vector.broadcast %221 : vector<16x1xf32> to vector<16x64xf32>
    %224 = vector.broadcast %222 : vector<1x64xf32> to vector<16x64xf32>
    %225 = arith.mulf %223, %224 : vector<16x64xf32>
    %226 = arith.mulf %220, %211 : vector<16x64xf32>
    %227 = arith.addf %226, %225 : vector<16x64xf32>
    %228 = vector.extract_strided_slice %69 {offsets = [0, 9], sizes = [16, 1], strides = [1, 1]} : vector<16x16xf32> to vector<16x1xf32>
    %229 = vector.broadcast %228 : vector<16x1xf32> to vector<16x64xf32>
    %230 = arith.mulf %229, %227 : vector<16x64xf32>
    %cst_46 = arith.constant dense<0.000000e+00> : vector<64xf32>
    %231 = vector.multi_reduction <add>, %230, %cst_46 [0] : vector<16x64xf32> to vector<64xf32>
    %232 = vector.shape_cast %231 : vector<64xf32> to vector<1x64xf32>
    %233 = vector.extract_strided_slice %65 {offsets = [10, 0], sizes = [1, 64], strides = [1, 1]} : vector<16x64xf32> to vector<1x64xf32>
    %234 = vector.broadcast %233 : vector<1x64xf32> to vector<16x64xf32>
    %235 = arith.mulf %234, %70 : vector<16x64xf32>
    %236 = math.exp %235 : vector<16x64xf32>
    %237 = vector.extract_strided_slice %68 {offsets = [0, 10], sizes = [16, 1], strides = [1, 1]} : vector<16x16xf32> to vector<16x1xf32>
    %238 = vector.extract_strided_slice %71 {offsets = [10, 0], sizes = [1, 64], strides = [1, 1]} : vector<16x64xf32> to vector<1x64xf32>
    %239 = vector.broadcast %237 : vector<16x1xf32> to vector<16x64xf32>
    %240 = vector.broadcast %238 : vector<1x64xf32> to vector<16x64xf32>
    %241 = arith.mulf %239, %240 : vector<16x64xf32>
    %242 = arith.mulf %236, %227 : vector<16x64xf32>
    %243 = arith.addf %242, %241 : vector<16x64xf32>
    %244 = vector.extract_strided_slice %69 {offsets = [0, 10], sizes = [16, 1], strides = [1, 1]} : vector<16x16xf32> to vector<16x1xf32>
    %245 = vector.broadcast %244 : vector<16x1xf32> to vector<16x64xf32>
    %246 = arith.mulf %245, %243 : vector<16x64xf32>
    %cst_47 = arith.constant dense<0.000000e+00> : vector<64xf32>
    %247 = vector.multi_reduction <add>, %246, %cst_47 [0] : vector<16x64xf32> to vector<64xf32>
    %248 = vector.shape_cast %247 : vector<64xf32> to vector<1x64xf32>
    %249 = vector.extract_strided_slice %65 {offsets = [11, 0], sizes = [1, 64], strides = [1, 1]} : vector<16x64xf32> to vector<1x64xf32>
    %250 = vector.broadcast %249 : vector<1x64xf32> to vector<16x64xf32>
    %251 = arith.mulf %250, %70 : vector<16x64xf32>
    %252 = math.exp %251 : vector<16x64xf32>
    %253 = vector.extract_strided_slice %68 {offsets = [0, 11], sizes = [16, 1], strides = [1, 1]} : vector<16x16xf32> to vector<16x1xf32>
    %254 = vector.extract_strided_slice %71 {offsets = [11, 0], sizes = [1, 64], strides = [1, 1]} : vector<16x64xf32> to vector<1x64xf32>
    %255 = vector.broadcast %253 : vector<16x1xf32> to vector<16x64xf32>
    %256 = vector.broadcast %254 : vector<1x64xf32> to vector<16x64xf32>
    %257 = arith.mulf %255, %256 : vector<16x64xf32>
    %258 = arith.mulf %252, %243 : vector<16x64xf32>
    %259 = arith.addf %258, %257 : vector<16x64xf32>
    %260 = vector.extract_strided_slice %69 {offsets = [0, 11], sizes = [16, 1], strides = [1, 1]} : vector<16x16xf32> to vector<16x1xf32>
    %261 = vector.broadcast %260 : vector<16x1xf32> to vector<16x64xf32>
    %262 = arith.mulf %261, %259 : vector<16x64xf32>
    %cst_48 = arith.constant dense<0.000000e+00> : vector<64xf32>
    %263 = vector.multi_reduction <add>, %262, %cst_48 [0] : vector<16x64xf32> to vector<64xf32>
    %264 = vector.shape_cast %263 : vector<64xf32> to vector<1x64xf32>
    %265 = vector.extract_strided_slice %65 {offsets = [12, 0], sizes = [1, 64], strides = [1, 1]} : vector<16x64xf32> to vector<1x64xf32>
    %266 = vector.broadcast %265 : vector<1x64xf32> to vector<16x64xf32>
    %267 = arith.mulf %266, %70 : vector<16x64xf32>
    %268 = math.exp %267 : vector<16x64xf32>
    %269 = vector.extract_strided_slice %68 {offsets = [0, 12], sizes = [16, 1], strides = [1, 1]} : vector<16x16xf32> to vector<16x1xf32>
    %270 = vector.extract_strided_slice %71 {offsets = [12, 0], sizes = [1, 64], strides = [1, 1]} : vector<16x64xf32> to vector<1x64xf32>
    %271 = vector.broadcast %269 : vector<16x1xf32> to vector<16x64xf32>
    %272 = vector.broadcast %270 : vector<1x64xf32> to vector<16x64xf32>
    %273 = arith.mulf %271, %272 : vector<16x64xf32>
    %274 = arith.mulf %268, %259 : vector<16x64xf32>
    %275 = arith.addf %274, %273 : vector<16x64xf32>
    %276 = vector.extract_strided_slice %69 {offsets = [0, 12], sizes = [16, 1], strides = [1, 1]} : vector<16x16xf32> to vector<16x1xf32>
    %277 = vector.broadcast %276 : vector<16x1xf32> to vector<16x64xf32>
    %278 = arith.mulf %277, %275 : vector<16x64xf32>
    %cst_49 = arith.constant dense<0.000000e+00> : vector<64xf32>
    %279 = vector.multi_reduction <add>, %278, %cst_49 [0] : vector<16x64xf32> to vector<64xf32>
    %280 = vector.shape_cast %279 : vector<64xf32> to vector<1x64xf32>
    %281 = vector.extract_strided_slice %65 {offsets = [13, 0], sizes = [1, 64], strides = [1, 1]} : vector<16x64xf32> to vector<1x64xf32>
    %282 = vector.broadcast %281 : vector<1x64xf32> to vector<16x64xf32>
    %283 = arith.mulf %282, %70 : vector<16x64xf32>
    %284 = math.exp %283 : vector<16x64xf32>
    %285 = vector.extract_strided_slice %68 {offsets = [0, 13], sizes = [16, 1], strides = [1, 1]} : vector<16x16xf32> to vector<16x1xf32>
    %286 = vector.extract_strided_slice %71 {offsets = [13, 0], sizes = [1, 64], strides = [1, 1]} : vector<16x64xf32> to vector<1x64xf32>
    %287 = vector.broadcast %285 : vector<16x1xf32> to vector<16x64xf32>
    %288 = vector.broadcast %286 : vector<1x64xf32> to vector<16x64xf32>
    %289 = arith.mulf %287, %288 : vector<16x64xf32>
    %290 = arith.mulf %284, %275 : vector<16x64xf32>
    %291 = arith.addf %290, %289 : vector<16x64xf32>
    %292 = vector.extract_strided_slice %69 {offsets = [0, 13], sizes = [16, 1], strides = [1, 1]} : vector<16x16xf32> to vector<16x1xf32>
    %293 = vector.broadcast %292 : vector<16x1xf32> to vector<16x64xf32>
    %294 = arith.mulf %293, %291 : vector<16x64xf32>
    %cst_50 = arith.constant dense<0.000000e+00> : vector<64xf32>
    %295 = vector.multi_reduction <add>, %294, %cst_50 [0] : vector<16x64xf32> to vector<64xf32>
    %296 = vector.shape_cast %295 : vector<64xf32> to vector<1x64xf32>
    %297 = vector.extract_strided_slice %65 {offsets = [14, 0], sizes = [1, 64], strides = [1, 1]} : vector<16x64xf32> to vector<1x64xf32>
    %298 = vector.broadcast %297 : vector<1x64xf32> to vector<16x64xf32>
    %299 = arith.mulf %298, %70 : vector<16x64xf32>
    %300 = math.exp %299 : vector<16x64xf32>
    %301 = vector.extract_strided_slice %68 {offsets = [0, 14], sizes = [16, 1], strides = [1, 1]} : vector<16x16xf32> to vector<16x1xf32>
    %302 = vector.extract_strided_slice %71 {offsets = [14, 0], sizes = [1, 64], strides = [1, 1]} : vector<16x64xf32> to vector<1x64xf32>
    %303 = vector.broadcast %301 : vector<16x1xf32> to vector<16x64xf32>
    %304 = vector.broadcast %302 : vector<1x64xf32> to vector<16x64xf32>
    %305 = arith.mulf %303, %304 : vector<16x64xf32>
    %306 = arith.mulf %300, %291 : vector<16x64xf32>
    %307 = arith.addf %306, %305 : vector<16x64xf32>
    %308 = vector.extract_strided_slice %69 {offsets = [0, 14], sizes = [16, 1], strides = [1, 1]} : vector<16x16xf32> to vector<16x1xf32>
    %309 = vector.broadcast %308 : vector<16x1xf32> to vector<16x64xf32>
    %310 = arith.mulf %309, %307 : vector<16x64xf32>
    %cst_51 = arith.constant dense<0.000000e+00> : vector<64xf32>
    %311 = vector.multi_reduction <add>, %310, %cst_51 [0] : vector<16x64xf32> to vector<64xf32>
    %312 = vector.shape_cast %311 : vector<64xf32> to vector<1x64xf32>
    %313 = vector.extract_strided_slice %65 {offsets = [15, 0], sizes = [1, 64], strides = [1, 1]} : vector<16x64xf32> to vector<1x64xf32>
    %314 = vector.broadcast %313 : vector<1x64xf32> to vector<16x64xf32>
    %315 = arith.mulf %314, %70 : vector<16x64xf32>
    %316 = math.exp %315 : vector<16x64xf32>
    %317 = vector.extract_strided_slice %68 {offsets = [0, 15], sizes = [16, 1], strides = [1, 1]} : vector<16x16xf32> to vector<16x1xf32>
    %318 = vector.extract_strided_slice %71 {offsets = [15, 0], sizes = [1, 64], strides = [1, 1]} : vector<16x64xf32> to vector<1x64xf32>
    %319 = vector.broadcast %317 : vector<16x1xf32> to vector<16x64xf32>
    %320 = vector.broadcast %318 : vector<1x64xf32> to vector<16x64xf32>
    %321 = arith.mulf %319, %320 : vector<16x64xf32>
    %322 = arith.mulf %316, %307 : vector<16x64xf32>
    %323 = arith.addf %322, %321 : vector<16x64xf32>
    %324 = vector.extract_strided_slice %69 {offsets = [0, 15], sizes = [16, 1], strides = [1, 1]} : vector<16x16xf32> to vector<16x1xf32>
    %325 = vector.broadcast %324 : vector<16x1xf32> to vector<16x64xf32>
    %326 = arith.mulf %325, %323 : vector<16x64xf32>
    %cst_52 = arith.constant dense<0.000000e+00> : vector<64xf32>
    %327 = vector.multi_reduction <add>, %326, %cst_52 [0] : vector<16x64xf32> to vector<64xf32>
    %328 = vector.shape_cast %327 : vector<64xf32> to vector<1x64xf32>
    %c0_53 = arith.constant 0 : index
    %c0_54 = arith.constant 0 : index
    %329 = vector.load %arg13[%c0_53, %c0_54] : memref<16x64xf32, #tpu.memory_space<vmem>>, vector<16x64xf32>
    tpu.vector_store %arg13[%c0_53, %c0_54], %323 {strides = array<i32>} : memref<16x64xf32, #tpu.memory_space<vmem>>, vector<16x64xf32>,
    %330 = tpu.concatenate %88, %104, %120, %136, %152, %168, %184, %200, %216, %232, %248, %264, %280, %296, %312, %328 in 0 : vector<1x64xf32>, vector<1x64xf32>, vector<1x64xf32>, vector<1x64xf32>, vector<1x64xf32>, vector<1x64xf32>, vector<1x64xf32>, vector<1x64xf32>, vector<1x64xf32>, vector<1x64xf32>, vector<1x64xf32>, vector<1x64xf32>, vector<1x64xf32>, vector<1x64xf32>, vector<1x64xf32>, vector<1x64xf32> -> vector<16x64xf32>
    %c0_55 = arith.constant 0 : index
    %c0_56 = arith.constant 0 : index
    %331 = vector.load %arg9[%c0_55, %c0_56] : memref<1x64xf32, #tpu.memory_space<vmem>>, vector<1x64xf32>
    %332 = vector.broadcast %331 : vector<1x64xf32> to vector<16x64xf32>
    %333 = arith.mulf %50, %332 : vector<16x64xf32>
    %334 = arith.addf %330, %333 : vector<16x64xf32>
    %335 = arith.mulf %334, %15 : vector<16x64xf32>
    %c0_57 = arith.constant 0 : index
    %c0_58 = arith.constant 0 : index
    %336 = vector.load %arg10[%c0_57, %c0_58] : memref<64x32xf32, #tpu.memory_space<vmem>>, vector<64x32xf32>
    %cst_59 = arith.constant dense<0.000000e+00> : vector<16x32xf32>
    %337 = tpu.matmul %335, %336, %cst_59 {dimension_numbers = #tpu.dot_dimension_numbers<[1], [0], [0], [1], [0, 0, 1, 1], [], []>} : vector<16x64xf32>, vector<64x32xf32>, vector<16x32xf32> -> vector<16x32xf32>
    %c0_60 = arith.constant 0 : index
    %c0_61 = arith.constant 0 : index
    %c0_62 = arith.constant 0 : index
    %338 = vector.load %arg11[%c0_60, %c0_61, %c0_62] : memref<1x16x32xf32, #tpu.memory_space<vmem>>, vector<1x16x32xf32>
    %339 = vector.shape_cast %338 : vector<1x16x32xf32> to vector<16x32xf32>
    %340 = vector.shape_cast %337 : vector<16x32xf32> to vector<1x16x32xf32>
    tpu.vector_store %arg11[%c0_60, %c0_61, %c0_62], %340 {strides = array<i32>} : memref<1x16x32xf32, #tpu.memory_space<vmem>>, vector<1x16x32xf32>,
    return
  }
  func.func @transform_0(%arg0: i32, %arg1: i32) -> (i32, i32, i32) {
    %c0_i32 = arith.constant 0 : i32
    %c0_i32_0 = arith.constant 0 : i32
    return %arg0, %arg1, %c0_i32 : i32, i32, i32
  }
  func.func @transform_1(%arg0: i32, %arg1: i32) -> (i32, i32) {
    %c0_i32 = arith.constant 0 : i32
    %c0_i32_0 = arith.constant 0 : i32
    %c0_i32_1 = arith.constant 0 : i32
    return %c0_i32, %c0_i32_0 : i32, i32
  }
  func.func @transform_2(%arg0: i32, %arg1: i32) -> (i32, i32) {
    %c0_i32 = arith.constant 0 : i32
    %c0_i32_0 = arith.constant 0 : i32
    %c0_i32_1 = arith.constant 0 : i32
    return %c0_i32, %c0_i32_0 : i32, i32
  }
  func.func @transform_3(%arg0: i32, %arg1: i32) -> (i32, i32) {
    %c0_i32 = arith.constant 0 : i32
    %c0_i32_0 = arith.constant 0 : i32
    %c0_i32_1 = arith.constant 0 : i32
    return %c0_i32, %c0_i32_0 : i32, i32
  }
  func.func @transform_4(%arg0: i32, %arg1: i32) -> (i32, i32) {
    %c0_i32 = arith.constant 0 : i32
    %c0_i32_0 = arith.constant 0 : i32
    %c0_i32_1 = arith.constant 0 : i32
    return %c0_i32, %c0_i32_0 : i32, i32
  }
  func.func @transform_5(%arg0: i32, %arg1: i32) -> (i32, i32) {
    %c0_i32 = arith.constant 0 : i32
    %c0_i32_0 = arith.constant 0 : i32
    %c0_i32_1 = arith.constant 0 : i32
    return %c0_i32, %c0_i32_0 : i32, i32
  }
  func.func @transform_6(%arg0: i32, %arg1: i32) -> (i32, i32) {
    %c0_i32 = arith.constant 0 : i32
    %c0_i32_0 = arith.constant 0 : i32
    %c0_i32_1 = arith.constant 0 : i32
    return %c0_i32, %c0_i32_0 : i32, i32
  }
  func.func @transform_7(%arg0: i32, %arg1: i32) -> (i32, i32) {
    %c0_i32 = arith.constant 0 : i32
    %c0_i32_0 = arith.constant 0 : i32
    %c0_i32_1 = arith.constant 0 : i32
    return %c0_i32, %c0_i32_0 : i32, i32
  }
  func.func @transform_8(%arg0: i32, %arg1: i32) -> (i32, i32) {
    %c0_i32 = arith.constant 0 : i32
    %c0_i32_0 = arith.constant 0 : i32
    %c0_i32_1 = arith.constant 0 : i32
    return %c0_i32, %c0_i32_0 : i32, i32
  }
  func.func @transform_9(%arg0: i32, %arg1: i32) -> (i32, i32, i32) {
    %c0_i32 = arith.constant 0 : i32
    %c0_i32_0 = arith.constant 0 : i32
    return %arg0, %arg1, %c0_i32 : i32, i32, i32
  }
}

module attributes {stable_mosaic.version = 11 : i64} {
  func.func @mamba_kernel(%arg0: i32, %arg1: i32, %arg2: memref<1x16x32xf32, #tpu.memory_space<vmem>>, %arg3: memref<32x128xf32, #tpu.memory_space<vmem>>, %arg4: memref<4x64xf32, #tpu.memory_space<vmem>>, %arg5: memref<1x64xf32, #tpu.memory_space<vmem>>, %arg6: memref<64x64xf32, #tpu.memory_space<vmem>>, %arg7: memref<32x64xf32, #tpu.memory_space<vmem>>, %arg8: memref<16x64xf32, #tpu.memory_space<vmem>>, %arg9: memref<1x64xf32, #tpu.memory_space<vmem>>, %arg10: memref<64x32xf32, #tpu.memory_space<vmem>>, %arg11: memref<1x16x32xf32, #tpu.memory_space<vmem>>, %arg12: memref<19x64xf32, #tpu.memory_space<vmem>>, %arg13: memref<16x64xf32, #tpu.memory_space<vmem>>) attributes {dimension_semantics = [#tpu.dimension_semantics<parallel>, #tpu.dimension_semantics<arbitrary>], iteration_bounds = array<i64: 2, 2>, scalar_prefetch = 0 : i64, scratch_operands = 2 : i64, tpu.core_type = #tpu.core_type<tc>, window_params = [{transform_indices = @transform_0, window_bounds = array<i64: 1, 16, 32>}, {pipeline_mode = #tpu.pipeline_mode<synchronous>, transform_indices = @transform_1, window_bounds = array<i64: 32, 128>}, {pipeline_mode = #tpu.pipeline_mode<synchronous>, transform_indices = @transform_2, window_bounds = array<i64: 4, 64>}, {pipeline_mode = #tpu.pipeline_mode<synchronous>, transform_indices = @transform_3, window_bounds = array<i64: 1, 64>}, {pipeline_mode = #tpu.pipeline_mode<synchronous>, transform_indices = @transform_4, window_bounds = array<i64: 64, 64>}, {pipeline_mode = #tpu.pipeline_mode<synchronous>, transform_indices = @transform_5, window_bounds = array<i64: 32, 64>}, {pipeline_mode = #tpu.pipeline_mode<synchronous>, transform_indices = @transform_6, window_bounds = array<i64: 16, 64>}, {pipeline_mode = #tpu.pipeline_mode<synchronous>, transform_indices = @transform_7, window_bounds = array<i64: 1, 64>}, {pipeline_mode = #tpu.pipeline_mode<synchronous>, transform_indices = @transform_8, window_bounds = array<i64: 64, 32>}, {transform_indices = @transform_9, window_bounds = array<i64: 1, 16, 32>}]} {
    %c0_i32 = arith.constant 0 : i32
    %0 = arith.cmpi eq, %arg1, %c0_i32 : i32
    %1 = arith.extui %0 : i1 to i32
    %c0_i32_0 = arith.constant 0 : i32
    %2 = arith.cmpi ne, %1, %c0_i32_0 : i32
    scf.if %2 {
      %cst_63 = arith.constant 0.000000e+00 : f32
      %341 = vector.broadcast %cst_63 : f32 to vector<16x64xf32>
      %c0_64 = arith.constant 0 : index
      %c0_65 = arith.constant 0 : index
      %342 = vector.load %arg13[%c0_64, %c0_65] : memref<16x64xf32, #tpu.memory_space<vmem>>, vector<16x64xf32>
      tpu.vector_store %arg13[%c0_64, %c0_65], %341 {strides = array<i32>} : memref<16x64xf32, #tpu.memory_space<vmem>>, vector<16x64xf32>,
      %cst_66 = arith.constant 0.000000e+00 : f32
      %343 = vector.broadcast %cst_66 : f32 to vector<3x64xf32>
      %c0_67 = arith.constant 0 : index
      %c0_68 = arith.constant 0 : index
      %344 = vector.load %arg12[%c0_67, %c0_68] : memref<19x64xf32, #tpu.memory_space<vmem>>, vector<3x64xf32>
      tpu.vector_store %arg12[%c0_67, %c0_68], %343 {strides = array<i32>} : memref<19x64xf32, #tpu.memory_space<vmem>>, vector<3x64xf32>,
    } else {
    }
    %c0 = arith.constant 0 : index
    %c0_1 = arith.constant 0 : index
    %c0_2 = arith.constant 0 : index
    %3 = vector.load %arg2[%c0, %c0_1, %c0_2] : memref<1x16x32xf32, #tpu.memory_space<vmem>>, vector<1x16x32xf32>
    %4 = vector.shape_cast %3 : vector<1x16x32xf32> to vector<16x32xf32>
    %c0_3 = arith.constant 0 : index
    %c0_4 = arith.constant 0 : index
    %5 = vector.load %arg3[%c0_3, %c0_4] : memref<32x128xf32, #tpu.memory_space<vmem>>, vector<32x128xf32>
    %cst = arith.constant dense<0.000000e+00> : vector<16x128xf32>
    %6 = tpu.matmul %4, %5, %cst {dimension_numbers = #tpu.dot_dimension_numbers<[1], [0], [0], [1], [0, 0, 1, 1], [], []>} : vector<16x32xf32>, vector<32x128xf32>, vector<16x128xf32> -> vector<16x128xf32>
    %7 = vector.extract_strided_slice %6 {offsets = [0, 0], sizes = [16, 64], strides = [1, 1]} : vector<16x128xf32> to vector<16x64xf32>
    %8 = vector.extract_strided_slice %6 {offsets = [0, 64], sizes = [16, 64], strides = [1, 1]} : vector<16x128xf32> to vector<16x64xf32>
    %cst_5 = arith.constant 0.000000e+00 : f32
    %9 = vector.broadcast %cst_5 : f32 to vector<16x64xf32>
    %10 = arith.subf %9, %8 : vector<16x64xf32>
    %11 = math.exp %10 : vector<16x64xf32>
    %cst_6 = arith.constant 1.000000e+00 : f32
    %12 = vector.broadcast %cst_6 : f32 to vector<16x64xf32>
    %13 = arith.addf %12, %11 : vector<16x64xf32>
    %14 = tpu.reciprocal %13 {approx = true} : vector<16x64xf32> -> vector<16x64xf32>
    %15 = arith.mulf %8, %14 : vector<16x64xf32>
    %c3 = arith.constant 3 : index
    %c0_7 = arith.constant 0 : index
    %16 = vector.load %arg12[%c3, %c0_7] : memref<19x64xf32, #tpu.memory_space<vmem>>, vector<16x64xf32>
    tpu.vector_store %arg12[%c3, %c0_7], %7 {strides = array<i32>} : memref<19x64xf32, #tpu.memory_space<vmem>>, vector<16x64xf32>,
    %c0_8 = arith.constant 0 : index
    %c0_9 = arith.constant 0 : index
    %17 = vector.load %arg4[%c0_8, %c0_9] : memref<4x64xf32, #tpu.memory_space<vmem>>, vector<4x64xf32>
    %cst_10 = arith.constant 0.000000e+00 : f32
    %18 = vector.broadcast %cst_10 : f32 to vector<16x64xf32>
    %c0_11 = arith.constant 0 : index
    %c0_12 = arith.constant 0 : index
    %19 = vector.load %arg5[%c0_11, %c0_12] : memref<1x64xf32, #tpu.memory_space<vmem>>, vector<1x64xf32>
    %20 = vector.broadcast %19 : vector<1x64xf32> to vector<16x64xf32>
    %21 = arith.addf %18, %20 : vector<16x64xf32>
    %c0_13 = arith.constant 0 : index
    %c0_14 = arith.constant 0 : index
    %22 = vector.load %arg12[%c0_13, %c0_14] : memref<19x64xf32, #tpu.memory_space<vmem>>, vector<16x64xf32>
    %23 = vector.extract_strided_slice %17 {offsets = [0, 0], sizes = [1, 64], strides = [1, 1]} : vector<4x64xf32> to vector<1x64xf32>
    %24 = vector.broadcast %23 : vector<1x64xf32> to vector<16x64xf32>
    %25 = arith.mulf %22, %24 : vector<16x64xf32>
    %26 = arith.addf %21, %25 : vector<16x64xf32>
    %c1 = arith.constant 1 : index
    %c0_15 = arith.constant 0 : index
    %27 = vector.load %arg12[%c1, %c0_15] : memref<19x64xf32, #tpu.memory_space<vmem>>, vector<16x64xf32>
    %28 = vector.extract_strided_slice %17 {offsets = [1, 0], sizes = [1, 64], strides = [1, 1]} : vector<4x64xf32> to vector<1x64xf32>
    %29 = vector.broadcast %28 : vector<1x64xf32> to vector<16x64xf32>
    %30 = arith.mulf %27, %29 : vector<16x64xf32>
    %31 = arith.addf %26, %30 : vector<16x64xf32>
    %c2 = arith.constant 2 : index
    %c0_16 = arith.constant 0 : index
    %32 = vector.load %arg12[%c2, %c0_16] : memref<19x64xf32, #tpu.memory_space<vmem>>, vector<16x64xf32>
    %33 = vector.extract_strided_slice %17 {offsets = [2, 0], sizes = [1, 64], strides = [1, 1]} : vector<4x64xf32> to vector<1x64xf32>
    %34 = vector.broadcast %33 : vector<1x64xf32> to vector<16x64xf32>
    %35 = arith.mulf %32, %34 : vector<16x64xf32>
    %36 = arith.addf %31, %35 : vector<16x64xf32>
    %c3_17 = arith.constant 3 : index
    %c0_18 = arith.constant 0 : index
    %37 = vector.load %arg12[%c3_17, %c0_18] : memref<19x64xf32, #tpu.memory_space<vmem>>, vector<16x64xf32>
    %38 = vector.extract_strided_slice %17 {offsets = [3, 0], sizes = [1, 64], strides = [1, 1]} : vector<4x64xf32> to vector<1x64xf32>
    %39 = vector.broadcast %38 : vector<1x64xf32> to vector<16x64xf32>
    %40 = arith.mulf %37, %39 : vector<16x64xf32>
    %41 = arith.addf %36, %40 : vector<16x64xf32>
    %42 = vector.extract_strided_slice %7 {offsets = [13, 0], sizes = [3, 64], strides = [1, 1]} : vector<16x64xf32> to vector<3x64xf32>
    %c0_19 = arith.constant 0 : index
    %c0_20 = arith.constant 0 : index
    %43 = vector.load %arg12[%c0_19, %c0_20] : memref<19x64xf32, #tpu.memory_space<vmem>>, vector<3x64xf32>
    tpu.vector_store %arg12[%c0_19, %c0_20], %42 {strides = array<i32>} : memref<19x64xf32, #tpu.memory_space<vmem>>, vector<3x64xf32>,
    %cst_21 = arith.constant 0.000000e+00 : f32
    %44 = vector.broadcast %cst_21 : f32 to vector<16x64xf32>
    %45 = arith.subf %44, %41 : vector<16x64xf32>
    %46 = math.exp %45 : vector<16x64xf32>
    %cst_22 = arith.constant 1.000000e+00 : f32
    %47 = vector.broadcast %cst_22 : f32 to vector<16x64xf32>
    %48 = arith.addf %47, %46 : vector<16x64xf32>
    %49 = tpu.reciprocal %48 {approx = true} : vector<16x64xf32> -> vector<16x64xf32>
    %50 = arith.mulf %41, %49 : vector<16x64xf32>
    %c0_23 = arith.constant 0 : index
    %c0_24 = arith.constant 0 : index
    %51 = vector.load %arg6[%c0_23, %c0_24] : memref<64x64xf32, #tpu.memory_space<vmem>>, vector<64x64xf32>
    %cst_25 = arith.constant dense<0.000000e+00> : vector<16x64xf32>
    %52 = tpu.matmul %50, %51, %cst_25 {dimension_numbers = #tpu.dot_dimension_numbers<[1], [0], [0], [1], [0, 0, 1, 1], [], []>} : vector<16x64xf32>, vector<64x64xf32>, vector<16x64xf32> -> vector<16x64xf32>
    %cst_26 = arith.constant 2.000000e+01 : f32
    %53 = vector.broadcast %cst_26 : f32 to vector<16x64xf32>
    %54 = arith.cmpf ogt, %52, %53 : vector<16x64xf32>
    %cst_27 = arith.constant 0.000000e+00 : f32
    %55 = vector.broadcast %cst_27 : f32 to vector<16x64xf32>
    %56 = arith.maximumf %52, %55 : vector<16x64xf32>
    %57 = math.absf %52 : vector<16x64xf32>
    %cst_28 = arith.constant 0.000000e+00 : f32
    %58 = vector.broadcast %cst_28 : f32 to vector<16x64xf32>
    %59 = arith.subf %58, %57 : vector<16x64xf32>
    %60 = math.exp %59 : vector<16x64xf32>
    %cst_29 = arith.constant 1.000000e+00 : f32
    %61 = vector.broadcast %cst_29 : f32 to vector<16x64xf32>
    %62 = arith.addf %61, %60 : vector<16x64xf32>
    %63 = math.log %62 : vector<16x64xf32>
    %64 = arith.addf %56, %63 : vector<16x64xf32>
    %65 = arith.select %54, %52, %64 : vector<16x64xi1>, vector<16x64xf32>
    %c0_30 = arith.constant 0 : index
    %c0_31 = arith.constant 0 : index
    %66 = vector.load %arg7[%c0_30, %c0_31] : memref<32x64xf32, #tpu.memory_space<vmem>>, vector<32x64xf32>
    %cst_32 = arith.constant dense<0.000000e+00> : vector<32x16xf32>
    %67 = tpu.matmul %66, %50, %cst_32 {dimension_numbers = #tpu.dot_dimension_numbers<[1], [1], [0], [0], [0, 0, 1, 0], [], []>} : vector<32x64xf32>, vector<16x64xf32>, vector<32x16xf32> -> vector<32x16xf32>
    %68 = vector.extract_strided_slice %67 {offsets = [0, 0], sizes = [16, 16], strides = [1, 1]} : vector<32x16xf32> to vector<16x16xf32>
    %69 = vector.extract_strided_slice %67 {offsets = [16, 0], sizes = [16, 16], strides = [1, 1]} : vector<32x16xf32> to vector<16x16xf32>
    %c0_33 = arith.constant 0 : index
    %c0_34 = arith.constant 0 : index
    %70 = vector.load %arg8[%c0_33, %c0_34] : memref<16x64xf32, #tpu.memory_space<vmem>>, vector<16x64xf32>
    %71 = arith.mulf %65, %50 : vector<16x64xf32>
    %c0_35 = arith.constant 0 : index
    %c0_36 = arith.constant 0 : index
    %72 = vector.load %arg13[%c0_35, %c0_36] : memref<16x64xf32, #tpu.memory_space<vmem>>, vector<16x64xf32>
    %73 = vector.extract_strided_slice %65 {offsets = [0, 0], sizes = [1, 64], strides = [1, 1]} : vector<16x64xf32> to vector<1x64xf32>
    %74 = vector.broadcast %73 : vector<1x64xf32> to vector<16x64xf32>
    %75 = arith.mulf %74, %70 : vector<16x64xf32>
    %76 = math.exp %75 : vector<16x64xf32>
    %77 = vector.extract_strided_slice %68 {offsets = [0, 0], sizes = [16, 1], strides = [1, 1]} : vector<16x16xf32> to vector<16x1xf32>
    %78 = vector.extract_strided_slice %71 {offsets = [0, 0], sizes = [1, 64], strides = [1, 1]} : vector<16x64xf32> to vector<1x64xf32>
    %79 = vector.broadcast %77 : vector<16x1xf32> to vector<16x64xf32>
    %80 = vector.broadcast %78 : vector<1x64xf32> to vector<16x64xf32>
    %81 = arith.mulf %79, %80 : vector<16x64xf32>
    %82 = arith.mulf %76, %72 : vector<16x64xf32>
    %83 = arith.addf %82, %81 : vector<16x64xf32>
    %84 = vector.extract_strided_slice %69 {offsets = [0, 0], sizes = [16, 1], strides = [1, 1]} : vector<16x16xf32> to vector<16x1xf32>
    %85 = vector.broadcast %84 : vector<16x1xf32> to vector<16x64xf32>
    %86 = arith.mulf %85, %83 : vector<16x64xf32>
    %cst_37 = arith.constant dense<0.000000e+00> : vector<64xf32>
    %87 = vector.multi_reduction <add>, %86, %cst_37 [0] : vector<16x64xf32> to vector<64xf32>
    %88 = vector.shape_cast %87 : vector<64xf32> to vector<1x64xf32>
    %89 = vector.extract_strided_slice %65 {offsets = [1, 0], sizes = [1, 64], strides = [1, 1]} : vector<16x64xf32> to vector<1x64xf32>
    %90 = vector.broadcast %89 : vector<1x64xf32> to vector<16x64xf32>
    %91 = arith.mulf %90, %70 : vector<16x64xf32>
    %92 = math.exp %91 : vector<16x64xf32>
    %93 = vector.extract_strided_slice %68 {offsets = [0, 1], sizes = [16, 1], strides = [1, 1]} : vector<16x16xf32> to vector<16x1xf32>
    %94 = vector.extract_strided_slice %71 {offsets = [1, 0], sizes = [1, 64], strides = [1, 1]} : vector<16x64xf32> to vector<1x64xf32>
    %95 = vector.broadcast %93 : vector<16x1xf32> to vector<16x64xf32>
    %96 = vector.broadcast %94 : vector<1x64xf32> to vector<16x64xf32>
    %97 = arith.mulf %95, %96 : vector<16x64xf32>
    %98 = arith.mulf %92, %83 : vector<16x64xf32>
    %99 = arith.addf %98, %97 : vector<16x64xf32>
    %100 = vector.extract_strided_slice %69 {offsets = [0, 1], sizes = [16, 1], strides = [1, 1]} : vector<16x16xf32> to vector<16x1xf32>
    %101 = vector.broadcast %100 : vector<16x1xf32> to vector<16x64xf32>
    %102 = arith.mulf %101, %99 : vector<16x64xf32>
    %cst_38 = arith.constant dense<0.000000e+00> : vector<64xf32>
    %103 = vector.multi_reduction <add>, %102, %cst_38 [0] : vector<16x64xf32> to vector<64xf32>
    %104 = vector.shape_cast %103 : vector<64xf32> to vector<1x64xf32>
    %105 = vector.extract_strided_slice %65 {offsets = [2, 0], sizes = [1, 64], strides = [1, 1]} : vector<16x64xf32> to vector<1x64xf32>
    %106 = vector.broadcast %105 : vector<1x64xf32> to vector<16x64xf32>
    %107 = arith.mulf %106, %70 : vector<16x64xf32>
    %108 = math.exp %107 : vector<16x64xf32>
    %109 = vector.extract_strided_slice %68 {offsets = [0, 2], sizes = [16, 1], strides = [1, 1]} : vector<16x16xf32> to vector<16x1xf32>
    %110 = vector.extract_strided_slice %71 {offsets = [2, 0], sizes = [1, 64], strides = [1, 1]} : vector<16x64xf32> to vector<1x64xf32>
    %111 = vector.broadcast %109 : vector<16x1xf32> to vector<16x64xf32>
    %112 = vector.broadcast %110 : vector<1x64xf32> to vector<16x64xf32>
    %113 = arith.mulf %111, %112 : vector<16x64xf32>
    %114 = arith.mulf %108, %99 : vector<16x64xf32>
    %115 = arith.addf %114, %113 : vector<16x64xf32>
    %116 = vector.extract_strided_slice %69 {offsets = [0, 2], sizes = [16, 1], strides = [1, 1]} : vector<16x16xf32> to vector<16x1xf32>
    %117 = vector.broadcast %116 : vector<16x1xf32> to vector<16x64xf32>
    %118 = arith.mulf %117, %115 : vector<16x64xf32>
    %cst_39 = arith.constant dense<0.000000e+00> : vector<64xf32>
    %119 = vector.multi_reduction <add>, %118, %cst_39 [0] : vector<16x64xf32> to vector<64xf32>
    %120 = vector.shape_cast %119 : vector<64xf32> to vector<1x64xf32>
    %121 = vector.extract_strided_slice %65 {offsets = [3, 0], sizes = [1, 64], strides = [1, 1]} : vector<16x64xf32> to vector<1x64xf32>
    %122 = vector.broadcast %121 : vector<1x64xf32> to vector<16x64xf32>
    %123 = arith.mulf %122, %70 : vector<16x64xf32>
    %124 = math.exp %123 : vector<16x64xf32>
    %125 = vector.extract_strided_slice %68 {offsets = [0, 3], sizes = [16, 1], strides = [1, 1]} : vector<16x16xf32> to vector<16x1xf32>
    %126 = vector.extract_strided_slice %71 {offsets = [3, 0], sizes = [1, 64], strides = [1, 1]} : vector<16x64xf32> to vector<1x64xf32>
    %127 = vector.broadcast %125 : vector<16x1xf32> to vector<16x64xf32>
    %128 = vector.broadcast %126 : vector<1x64xf32> to vector<16x64xf32>
    %129 = arith.mulf %127, %128 : vector<16x64xf32>
    %130 = arith.mulf %124, %115 : vector<16x64xf32>
    %131 = arith.addf %130, %129 : vector<16x64xf32>
    %132 = vector.extract_strided_slice %69 {offsets = [0, 3], sizes = [16, 1], strides = [1, 1]} : vector<16x16xf32> to vector<16x1xf32>
    %133 = vector.broadcast %132 : vector<16x1xf32> to vector<16x64xf32>
    %134 = arith.mulf %133, %131 : vector<16x64xf32>
    %cst_40 = arith.constant dense<0.000000e+00> : vector<64xf32>
    %135 = vector.multi_reduction <add>, %134, %cst_40 [0] : vector<16x64xf32> to vector<64xf32>
    %136 = vector.shape_cast %135 : vector<64xf32> to vector<1x64xf32>
    %137 = vector.extract_strided_slice %65 {offsets = [4, 0], sizes = [1, 64], strides = [1, 1]} : vector<16x64xf32> to vector<1x64xf32>
    %138 = vector.broadcast %137 : vector<1x64xf32> to vector<16x64xf32>
    %139 = arith.mulf %138, %70 : vector<16x64xf32>
    %140 = math.exp %139 : vector<16x64xf32>
    %141 = vector.extract_strided_slice %68 {offsets = [0, 4], sizes = [16, 1], strides = [1, 1]} : vector<16x16xf32> to vector<16x1xf32>
    %142 = vector.extract_strided_slice %71 {offsets = [4, 0], sizes = [1, 64], strides = [1, 1]} : vector<16x64xf32> to vector<1x64xf32>
    %143 = vector.broadcast %141 : vector<16x1xf32> to vector<16x64xf32>
    %144 = vector.broadcast %142 : vector<1x64xf32> to vector<16x64xf32>
    %145 = arith.mulf %143, %144 : vector<16x64xf32>
    %146 = arith.mulf %140, %131 : vector<16x64xf32>
    %147 = arith.addf %146, %145 : vector<16x64xf32>
    %148 = vector.extract_strided_slice %69 {offsets = [0, 4], sizes = [16, 1], strides = [1, 1]} : vector<16x16xf32> to vector<16x1xf32>
    %149 = vector.broadcast %148 : vector<16x1xf32> to vector<16x64xf32>
    %150 = arith.mulf %149, %147 : vector<16x64xf32>
    %cst_41 = arith.constant dense<0.000000e+00> : vector<64xf32>
    %151 = vector.multi_reduction <add>, %150, %cst_41 [0] : vector<16x64xf32> to vector<64xf32>
    %152 = vector.shape_cast %151 : vector<64xf32> to vector<1x64xf32>
    %153 = vector.extract_strided_slice %65 {offsets = [5, 0], sizes = [1, 64], strides = [1, 1]} : vector<16x64xf32> to vector<1x64xf32>
    %154 = vector.broadcast %153 : vector<1x64xf32> to vector<16x64xf32>
    %155 = arith.mulf %154, %70 : vector<16x64xf32>
    %156 = math.exp %155 : vector<16x64xf32>
    %157 = vector.extract_strided_slice %68 {offsets = [0, 5], sizes = [16, 1], strides = [1, 1]} : vector<16x16xf32> to vector<16x1xf32>
    %158 = vector.extract_strided_slice %71 {offsets = [5, 0], sizes = [1, 64], strides = [1, 1]} : vector<16x64xf32> to vector<1x64xf32>
    %159 = vector.broadcast %157 : vector<16x1xf32> to vector<16x64xf32>
    %160 = vector.broadcast %158 : vector<1x64xf32> to vector<16x64xf32>
    %161 = arith.mulf %159, %160 : vector<16x64xf32>
    %162 = arith.mulf %156, %147 : vector<16x64xf32>
    %163 = arith.addf %162, %161 : vector<16x64xf32>
    %164 = vector.extract_strided_slice %69 {offsets = [0, 5], sizes = [16, 1], strides = [1, 1]} : vector<16x16xf32> to vector<16x1xf32>
    %165 = vector.broadcast %164 : vector<16x1xf32> to vector<16x64xf32>
    %166 = arith.mulf %165, %163 : vector<16x64xf32>
    %cst_42 = arith.constant dense<0.000000e+00> : vector<64xf32>
    %167 = vector.multi_reduction <add>, %166, %cst_42 [0] : vector<16x64xf32> to vector<64xf32>
    %168 = vector.shape_cast %167 : vector<64xf32> to vector<1x64xf32>
    %169 = vector.extract_strided_slice %65 {offsets = [6, 0], sizes = [1, 64], strides = [1, 1]} : vector<16x64xf32> to vector<1x64xf32>
    %170 = vector.broadcast %169 : vector<1x64xf32> to vector<16x64xf32>
    %171 = arith.mulf %170, %70 : vector<16x64xf32>
    %172 = math.exp %171 : vector<16x64xf32>
    %173 = vector.extract_strided_slice %68 {offsets = [0, 6], sizes = [16, 1], strides = [1, 1]} : vector<16x16xf32> to vector<16x1xf32>
    %174 = vector.extract_strided_slice %71 {offsets = [6, 0], sizes = [1, 64], strides = [1, 1]} : vector<16x64xf32> to vector<1x64xf32>
    %175 = vector.broadcast %173 : vector<16x1xf32> to vector<16x64xf32>
    %176 = vector.broadcast %174 : vector<1x64xf32> to vector<16x64xf32>
    %177 = arith.mulf %175, %176 : vector<16x64xf32>
    %178 = arith.mulf %172, %163 : vector<16x64xf32>
    %179 = arith.addf %178, %177 : vector<16x64xf32>
    %180 = vector.extract_strided_slice %69 {offsets = [0, 6], sizes = [16, 1], strides = [1, 1]} : vector<16x16xf32> to vector<16x1xf32>
    %181 = vector.broadcast %180 : vector<16x1xf32> to vector<16x64xf32>
    %182 = arith.mulf %181, %179 : vector<16x64xf32>
    %cst_43 = arith.constant dense<0.000000e+00> : vector<64xf32>
    %183 = vector.multi_reduction <add>, %182, %cst_43 [0] : vector<16x64xf32> to vector<64xf32>
    %184 = vector.shape_cast %183 : vector<64xf32> to vector<1x64xf32>
    %185 = vector.extract_strided_slice %65 {offsets = [7, 0], sizes = [1, 64], strides = [1, 1]} : vector<16x64xf32> to vector<1x64xf32>
    %186 = vector.broadcast %185 : vector<1x64xf32> to vector<16x64xf32>
    %187 = arith.mulf %186, %70 : vector<16x64xf32>
    %188 = math.exp %187 : vector<16x64xf32>
    %189 = vector.extract_strided_slice %68 {offsets = [0, 7], sizes = [16, 1], strides = [1, 1]} : vector<16x16xf32> to vector<16x1xf32>
    %190 = vector.extract_strided_slice %71 {offsets = [7, 0], sizes = [1, 64], strides = [1, 1]} : vector<16x64xf32> to vector<1x64xf32>
    %191 = vector.broadcast %189 : vector<16x1xf32> to vector<16x64xf32>
    %192 = vector.broadcast %190 : vector<1x64xf32> to vector<16x64xf32>
    %193 = arith.mulf %191, %192 : vector<16x64xf32>
    %194 = arith.mulf %188, %179 : vector<16x64xf32>
    %195 = arith.addf %194, %193 : vector<16x64xf32>
    %196 = vector.extract_strided_slice %69 {offsets = [0, 7], sizes = [16, 1], strides = [1, 1]} : vector<16x16xf32> to vector<16x1xf32>
    %197 = vector.broadcast %196 : vector<16x1xf32> to vector<16x64xf32>
    %198 = arith.mulf %197, %195 : vector<16x64xf32>
    %cst_44 = arith.constant dense<0.000000e+00> : vector<64xf32>
    %199 = vector.multi_reduction <add>, %198, %cst_44 [0] : vector<16x64xf32> to vector<64xf32>
    %200 = vector.shape_cast %199 : vector<64xf32> to vector<1x64xf32>
    %201 = vector.extract_strided_slice %65 {offsets = [8, 0], sizes = [1, 64], strides = [1, 1]} : vector<16x64xf32> to vector<1x64xf32>
    %202 = vector.broadcast %201 : vector<1x64xf32> to vector<16x64xf32>
    %203 = arith.mulf %202, %70 : vector<16x64xf32>
    %204 = math.exp %203 : vector<16x64xf32>
    %205 = vector.extract_strided_slice %68 {offsets = [0, 8], sizes = [16, 1], strides = [1, 1]} : vector<16x16xf32> to vector<16x1xf32>
    %206 = vector.extract_strided_slice %71 {offsets = [8, 0], sizes = [1, 64], strides = [1, 1]} : vector<16x64xf32> to vector<1x64xf32>
    %207 = vector.broadcast %205 : vector<16x1xf32> to vector<16x64xf32>
    %208 = vector.broadcast %206 : vector<1x64xf32> to vector<16x64xf32>
    %209 = arith.mulf %207, %208 : vector<16x64xf32>
    %210 = arith.mulf %204, %195 : vector<16x64xf32>
    %211 = arith.addf %210, %209 : vector<16x64xf32>
    %212 = vector.extract_strided_slice %69 {offsets = [0, 8], sizes = [16, 1], strides = [1, 1]} : vector<16x16xf32> to vector<16x1xf32>
    %213 = vector.broadcast %212 : vector<16x1xf32> to vector<16x64xf32>
    %214 = arith.mulf %213, %211 : vector<16x64xf32>
    %cst_45 = arith.constant dense<0.000000e+00> : vector<64xf32>
    %215 = vector.multi_reduction <add>, %214, %cst_45 [0] : vector<16x64xf32> to vector<64xf32>
    %216 = vector.shape_cast %215 : vector<64xf32> to vector<1x64xf32>
    %217 = vector.extract_strided_slice %65 {offsets = [9, 0], sizes = [1, 64], strides = [1, 1]} : vector<16x64xf32> to vector<1x64xf32>
    %218 = vector.broadcast %217 : vector<1x64xf32> to vector<16x64xf32>
    %219 = arith.mulf %218, %70 : vector<16x64xf32>
    %220 = math.exp %219 : vector<16x64xf32>
    %221 = vector.extract_strided_slice %68 {offsets = [0, 9], sizes = [16, 1], strides = [1, 1]} : vector<16x16xf32> to vector<16x1xf32>
    %222 = vector.extract_strided_slice %71 {offsets = [9, 0], sizes = [1, 64], strides = [1, 1]} : vector<16x64xf32> to vector<1x64xf32>
    %223 = vector.broadcast %221 : vector<16x1xf32> to vector<16x64xf32>
    %224 = vector.broadcast %222 : vector<1x64xf32> to vector<16x64xf32>
    %225 = arith.mulf %223, %224 : vector<16x64xf32>
    %226 = arith.mulf %220, %211 : vector<16x64xf32>
    %227 = arith.addf %226, %225 : vector<16x64xf32>
    %228 = vector.extract_strided_slice %69 {offsets = [0, 9], sizes = [16, 1], strides = [1, 1]} : vector<16x16xf32> to vector<16x1xf32>
    %229 = vector.broadcast %228 : vector<16x1xf32> to vector<16x64xf32>
    %230 = arith.mulf %229, %227 : vector<16x64xf32>
    %cst_46 = arith.constant dense<0.000000e+00> : vector<64xf32>
    %231 = vector.multi_reduction <add>, %230, %cst_46 [0] : vector<16x64xf32> to vector<64xf32>
    %232 = vector.shape_cast %231 : vector<64xf32> to vector<1x64xf32>
    %233 = vector.extract_strided_slice %65 {offsets = [10, 0], sizes = [1, 64], strides = [1, 1]} : vector<16x64xf32> to vector<1x64xf32>
    %234 = vector.broadcast %233 : vector<1x64xf32> to vector<16x64xf32>
    %235 = arith.mulf %234, %70 : vector<16x64xf32>
    %236 = math.exp %235 : vector<16x64xf32>
    %237 = vector.extract_strided_slice %68 {offsets = [0, 10], sizes = [16, 1], strides = [1, 1]} : vector<16x16xf32> to vector<16x1xf32>
    %238 = vector.extract_strided_slice %71 {offsets = [10, 0], sizes = [1, 64], strides = [1, 1]} : vector<16x64xf32> to vector<1x64xf32>
    %239 = vector.broadcast %237 : vector<16x1xf32> to vector<16x64xf32>
    %240 = vector.broadcast %238 : vector<1x64xf32> to vector<16x64xf32>
    %241 = arith.mulf %239, %240 : vector<16x64xf32>
    %242 = arith.mulf %236, %227 : vector<16x64xf32>
    %243 = arith.addf %242, %241 : vector<16x64xf32>
    %244 = vector.extract_strided_slice %69 {offsets = [0, 10], sizes = [16, 1], strides = [1, 1]} : vector<16x16xf32> to vector<16x1xf32>
    %245 = vector.broadcast %244 : vector<16x1xf32> to vector<16x64xf32>
    %246 = arith.mulf %245, %243 : vector<16x64xf32>
    %cst_47 = arith.constant dense<0.000000e+00> : vector<64xf32>
    %247 = vector.multi_reduction <add>, %246, %cst_47 [0] : vector<16x64xf32> to vector<64xf32>
    %248 = vector.shape_cast %247 : vector<64xf32> to vector<1x64xf32>
    %249 = vector.extract_strided_slice %65 {offsets = [11, 0], sizes = [1, 64], strides = [1, 1]} : vector<16x64xf32> to vector<1x64xf32>
    %250 = vector.broadcast %249 : vector<1x64xf32> to vector<16x64xf32>
    %251 = arith.mulf %250, %70 : vector<16x64xf32>
    %252 = math.exp %251 : vector<16x64xf32>
    %253 = vector.extract_strided_slice %68 {offsets = [0, 11], sizes = [16, 1], strides = [1, 1]} : vector<16x16xf32> to vector<16x1xf32>
    %254 = vector.extract_strided_slice %71 {offsets = [11, 0], sizes = [1, 64], strides = [1, 1]} : vector<16x64xf32> to vector<1x64xf32>
    %255 = vector.broadcast %253 : vector<16x1xf32> to vector<16x64xf32>
    %256 = vector.broadcast %254 : vector<1x64xf32> to vector<16x64xf32>
    %257 = arith.mulf %255, %256 : vector<16x64xf32>
    %258 = arith.mulf %252, %243 : vector<16x64xf32>
    %259 = arith.addf %258, %257 : vector<16x64xf32>
    %260 = vector.extract_strided_slice %69 {offsets = [0, 11], sizes = [16, 1], strides = [1, 1]} : vector<16x16xf32> to vector<16x1xf32>
    %261 = vector.broadcast %260 : vector<16x1xf32> to vector<16x64xf32>
    %262 = arith.mulf %261, %259 : vector<16x64xf32>
    %cst_48 = arith.constant dense<0.000000e+00> : vector<64xf32>
    %263 = vector.multi_reduction <add>, %262, %cst_48 [0] : vector<16x64xf32> to vector<64xf32>
    %264 = vector.shape_cast %263 : vector<64xf32> to vector<1x64xf32>
    %265 = vector.extract_strided_slice %65 {offsets = [12, 0], sizes = [1, 64], strides = [1, 1]} : vector<16x64xf32> to vector<1x64xf32>
    %266 = vector.broadcast %265 : vector<1x64xf32> to vector<16x64xf32>
    %267 = arith.mulf %266, %70 : vector<16x64xf32>
    %268 = math.exp %267 : vector<16x64xf32>
    %269 = vector.extract_strided_slice %68 {offsets = [0, 12], sizes = [16, 1], strides = [1, 1]} : vector<16x16xf32> to vector<16x1xf32>
    %270 = vector.extract_strided_slice %71 {offsets = [12, 0], sizes = [1, 64], strides = [1, 1]} : vector<16x64xf32> to vector<1x64xf32>
    %271 = vector.broadcast %269 : vector<16x1xf32> to vector<16x64xf32>
    %272 = vector.broadcast %270 : vector<1x64xf32> to vector<16x64xf32>
    %273 = arith.mulf %271, %272 : vector<16x64xf32>
    %274 = arith.mulf %268, %259 : vector<16x64xf32>
    %275 = arith.addf %274, %273 : vector<16x64xf32>
    %276 = vector.extract_strided_slice %69 {offsets = [0, 12], sizes = [16, 1], strides = [1, 1]} : vector<16x16xf32> to vector<16x1xf32>
    %277 = vector.broadcast %276 : vector<16x1xf32> to vector<16x64xf32>
    %278 = arith.mulf %277, %275 : vector<16x64xf32>
    %cst_49 = arith.constant dense<0.000000e+00> : vector<64xf32>
    %279 = vector.multi_reduction <add>, %278, %cst_49 [0] : vector<16x64xf32> to vector<64xf32>
    %280 = vector.shape_cast %279 : vector<64xf32> to vector<1x64xf32>
    %281 = vector.extract_strided_slice %65 {offsets = [13, 0], sizes = [1, 64], strides = [1, 1]} : vector<16x64xf32> to vector<1x64xf32>
    %282 = vector.broadcast %281 : vector<1x64xf32> to vector<16x64xf32>
    %283 = arith.mulf %282, %70 : vector<16x64xf32>
    %284 = math.exp %283 : vector<16x64xf32>
    %285 = vector.extract_strided_slice %68 {offsets = [0, 13], sizes = [16, 1], strides = [1, 1]} : vector<16x16xf32> to vector<16x1xf32>
    %286 = vector.extract_strided_slice %71 {offsets = [13, 0], sizes = [1, 64], strides = [1, 1]} : vector<16x64xf32> to vector<1x64xf32>
    %287 = vector.broadcast %285 : vector<16x1xf32> to vector<16x64xf32>
    %288 = vector.broadcast %286 : vector<1x64xf32> to vector<16x64xf32>
    %289 = arith.mulf %287, %288 : vector<16x64xf32>
    %290 = arith.mulf %284, %275 : vector<16x64xf32>
    %291 = arith.addf %290, %289 : vector<16x64xf32>
    %292 = vector.extract_strided_slice %69 {offsets = [0, 13], sizes = [16, 1], strides = [1, 1]} : vector<16x16xf32> to vector<16x1xf32>
    %293 = vector.broadcast %292 : vector<16x1xf32> to vector<16x64xf32>
    %294 = arith.mulf %293, %291 : vector<16x64xf32>
    %cst_50 = arith.constant dense<0.000000e+00> : vector<64xf32>
    %295 = vector.multi_reduction <add>, %294, %cst_50 [0] : vector<16x64xf32> to vector<64xf32>
    %296 = vector.shape_cast %295 : vector<64xf32> to vector<1x64xf32>
    %297 = vector.extract_strided_slice %65 {offsets = [14, 0], sizes = [1, 64], strides = [1, 1]} : vector<16x64xf32> to vector<1x64xf32>
    %298 = vector.broadcast %297 : vector<1x64xf32> to vector<16x64xf32>
    %299 = arith.mulf %298, %70 : vector<16x64xf32>
    %300 = math.exp %299 : vector<16x64xf32>
    %301 = vector.extract_strided_slice %68 {offsets = [0, 14], sizes = [16, 1], strides = [1, 1]} : vector<16x16xf32> to vector<16x1xf32>
    %302 = vector.extract_strided_slice %71 {offsets = [14, 0], sizes = [1, 64], strides = [1, 1]} : vector<16x64xf32> to vector<1x64xf32>
    %303 = vector.broadcast %301 : vector<16x1xf32> to vector<16x64xf32>
    %304 = vector.broadcast %302 : vector<1x64xf32> to vector<16x64xf32>
    %305 = arith.mulf %303, %304 : vector<16x64xf32>
    %306 = arith.mulf %300, %291 : vector<16x64xf32>
    %307 = arith.addf %306, %305 : vector<16x64xf32>
    %308 = vector.extract_strided_slice %69 {offsets = [0, 14], sizes = [16, 1], strides = [1, 1]} : vector<16x16xf32> to vector<16x1xf32>
    %309 = vector.broadcast %308 : vector<16x1xf32> to vector<16x64xf32>
    %310 = arith.mulf %309, %307 : vector<16x64xf32>
    %cst_51 = arith.constant dense<0.000000e+00> : vector<64xf32>
    %311 = vector.multi_reduction <add>, %310, %cst_51 [0] : vector<16x64xf32> to vector<64xf32>
    %312 = vector.shape_cast %311 : vector<64xf32> to vector<1x64xf32>
    %313 = vector.extract_strided_slice %65 {offsets = [15, 0], sizes = [1, 64], strides = [1, 1]} : vector<16x64xf32> to vector<1x64xf32>
    %314 = vector.broadcast %313 : vector<1x64xf32> to vector<16x64xf32>
    %315 = arith.mulf %314, %70 : vector<16x64xf32>
    %316 = math.exp %315 : vector<16x64xf32>
    %317 = vector.extract_strided_slice %68 {offsets = [0, 15], sizes = [16, 1], strides = [1, 1]} : vector<16x16xf32> to vector<16x1xf32>
    %318 = vector.extract_strided_slice %71 {offsets = [15, 0], sizes = [1, 64], strides = [1, 1]} : vector<16x64xf32> to vector<1x64xf32>
    %319 = vector.broadcast %317 : vector<16x1xf32> to vector<16x64xf32>
    %320 = vector.broadcast %318 : vector<1x64xf32> to vector<16x64xf32>
    %321 = arith.mulf %319, %320 : vector<16x64xf32>
    %322 = arith.mulf %316, %307 : vector<16x64xf32>
    %323 = arith.addf %322, %321 : vector<16x64xf32>
    %324 = vector.extract_strided_slice %69 {offsets = [0, 15], sizes = [16, 1], strides = [1, 1]} : vector<16x16xf32> to vector<16x1xf32>
    %325 = vector.broadcast %324 : vector<16x1xf32> to vector<16x64xf32>
    %326 = arith.mulf %325, %323 : vector<16x64xf32>
    %cst_52 = arith.constant dense<0.000000e+00> : vector<64xf32>
    %327 = vector.multi_reduction <add>, %326, %cst_52 [0] : vector<16x64xf32> to vector<64xf32>
    %328 = vector.shape_cast %327 : vector<64xf32> to vector<1x64xf32>
    %c0_53 = arith.constant 0 : index
    %c0_54 = arith.constant 0 : index
    %329 = vector.load %arg13[%c0_53, %c0_54] : memref<16x64xf32, #tpu.memory_space<vmem>>, vector<16x64xf32>
    tpu.vector_store %arg13[%c0_53, %c0_54], %323 {strides = array<i32>} : memref<16x64xf32, #tpu.memory_space<vmem>>, vector<16x64xf32>,
    %330 = tpu.concatenate %88, %104, %120, %136, %152, %168, %184, %200, %216, %232, %248, %264, %280, %296, %312, %328 in 0 : vector<1x64xf32>, vector<1x64xf32>, vector<1x64xf32>, vector<1x64xf32>, vector<1x64xf32>, vector<1x64xf32>, vector<1x64xf32>, vector<1x64xf32>, vector<1x64xf32>, vector<1x64xf32>, vector<1x64xf32>, vector<1x64xf32>, vector<1x64xf32>, vector<1x64xf32>, vector<1x64xf32>, vector<1x64xf32> -> vector<16x64xf32>
    %c0_55 = arith.constant 0 : index
    %c0_56 = arith.constant 0 : index
    %331 = vector.load %arg9[%c0_55, %c0_56] : memref<1x64xf32, #tpu.memory_space<vmem>>, vector<1x64xf32>
    %332 = vector.broadcast %331 : vector<1x64xf32> to vector<16x64xf32>
    %333 = arith.mulf %50, %332 : vector<16x64xf32>
    %334 = arith.addf %330, %333 : vector<16x64xf32>
    %335 = arith.mulf %334, %15 : vector<16x64xf32>
    %c0_57 = arith.constant 0 : index
    %c0_58 = arith.constant 0 : index
    %336 = vector.load %arg10[%c0_57, %c0_58] : memref<64x32xf32, #tpu.memory_space<vmem>>, vector<64x32xf32>
    %cst_59 = arith.constant dense<0.000000e+00> : vector<16x32xf32>
    %337 = tpu.matmul %335, %336, %cst_59 {dimension_numbers = #tpu.dot_dimension_numbers<[1], [0], [0], [1], [0, 0, 1, 1], [], []>} : vector<16x64xf32>, vector<64x32xf32>, vector<16x32xf32> -> vector<16x32xf32>
    %c0_60 = arith.constant 0 : index
    %c0_61 = arith.constant 0 : index
    %c0_62 = arith.constant 0 : index
    %338 = vector.load %arg11[%c0_60, %c0_61, %c0_62] : memref<1x16x32xf32, #tpu.memory_space<vmem>>, vector<1x16x32xf32>
    %339 = vector.shape_cast %338 : vector<1x16x32xf32> to vector<16x32xf32>
    %340 = vector.shape_cast %337 : vector<16x32xf32> to vector<1x16x32xf32>
    tpu.vector_store %arg11[%c0_60, %c0_61, %c0_62], %340 {strides = array<i32>} : memref<1x16x32xf32, #tpu.memory_space<vmem>>, vector<1x16x32xf32>,
    return
  }
  func.func @transform_0(%arg0: i32, %arg1: i32) -> (i32, i32, i32) {
    %c0_i32 = arith.constant 0 : i32
    %c0_i32_0 = arith.constant 0 : i32
    return %arg0, %arg1, %c0_i32 : i32, i32, i32
  }
  func.func @transform_1(%arg0: i32, %arg1: i32) -> (i32, i32) {
    %c0_i32 = arith.constant 0 : i32
    %c0_i32_0 = arith.constant 0 : i32
    %c0_i32_1 = arith.constant 0 : i32
    return %c0_i32, %c0_i32_0 : i32, i32
  }
  func.func @transform_2(%arg0: i32, %arg1: i32) -> (i32, i32) {
    %c0_i32 = arith.constant 0 : i32
    %c0_i32_0 = arith.constant 0 : i32
    %c0_i32_1 = arith.constant 0 : i32
    return %c0_i32, %c0_i32_0 : i32, i32
  }
  func.func @transform_3(%arg0: i32, %arg1: i32) -> (i32, i32) {
    %c0_i32 = arith.constant 0 : i32
    %c0_i32_0 = arith.constant 0 : i32
    %c0_i32_1 = arith.constant 0 : i32
    return %c0_i32, %c0_i32_0 : i32, i32
  }
  func.func @transform_4(%arg0: i32, %arg1: i32) -> (i32, i32) {
    %c0_i32 = arith.constant 0 : i32
    %c0_i32_0 = arith.constant 0 : i32
    %c0_i32_1 = arith.constant 0 : i32
    return %c0_i32, %c0_i32_0 : i32, i32
  }
  func.func @transform_5(%arg0: i32, %arg1: i32) -> (i32, i32) {
    %c0_i32 = arith.constant 0 : i32
    %c0_i32_0 = arith.constant 0 : i32
    %c0_i32_1 = arith.constant 0 : i32
    return %c0_i32, %c0_i32_0 : i32, i32
  }
  func.func @transform_6(%arg0: i32, %arg1: i32) -> (i32, i32) {
    %c0_i32 = arith.constant 0 : i32
    %c0_i32_0 = arith.constant 0 : i32
    %c0_i32_1 = arith.constant 0 : i32
    return %c0_i32, %c0_i32_0 : i32, i32
  }
  func.func @transform_7(%arg0: i32, %arg1: i32) -> (i32, i32) {
    %c0_i32 = arith.constant 0 : i32
    %c0_i32_0 = arith.constant 0 : i32
    %c0_i32_1 = arith.constant 0 : i32
    return %c0_i32, %c0_i32_0 : i32, i32
  }
  func.func @transform_8(%arg0: i32, %arg1: i32) -> (i32, i32) {
    %c0_i32 = arith.constant 0 : i32
    %c0_i32_0 = arith.constant 0 : i32
    %c0_i32_1 = arith.constant 0 : i32
    return %c0_i32, %c0_i32_0 : i32, i32
  }
  func.func @transform_9(%arg0: i32, %arg1: i32) -> (i32, i32, i32) {
    %c0_i32 = arith.constant 0 : i32
    %c0_i32_0 = arith.constant 0 : i32
    return %arg0, %arg1, %c0_i32 : i32, i32, i32
  }
}

</mosaic_0001>

<llo_original>
// kernel: tpu_custom_call.1
$region0: #{tpu_custom_call.1}
  #allocation0 [shape = 'u32[]', space=smem, size = 0x4, offset = 0x4, fixed_abs, tag = 'smem constant byte address 0x4 - core index']
  #allocation1 [shape = 'u32[144,128]{1,0:T(1,128)}', space=vmem, size = 0x12000, scoped, tag = 'internal scratch']
  #allocation2 [shape = 'f32[19,64]{1,0:T(8,128)}', space=vmem, size = 0x3000, scoped, tag = 'scratch operand']
  #allocation3 [shape = 'f32[16,64]{1,0:T(8,128)}', space=vmem, size = 0x2000, scoped, tag = 'scratch operand']
  %s0 = inlined_call_operand.vmem [shape: f32[2,32,32], index: 0, kind: input, shape index: {}]
  %s1 = inlined_call_operand.vmem [shape: f32[32,128], index: 1, kind: input, shape index: {}]
  %s2 = inlined_call_operand.hbm [shape: f32[4,64], index: 2, kind: input, shape index: {}]
  %s3 = inlined_call_operand.vmem [shape: f32[1,64], index: 3, kind: input, shape index: {}]
  %s4 = inlined_call_operand.hbm [shape: f32[64,64], index: 4, kind: input, shape index: {}]
  %s5 = inlined_call_operand.hbm [shape: f32[32,64], index: 5, kind: input, shape index: {}]
  %s6 = inlined_call_operand.vmem [shape: f32[16,64], index: 6, kind: input, shape index: {}]
  %s7 = inlined_call_operand.vmem [shape: f32[1,64], index: 7, kind: input, shape index: {}]
  %s8 = inlined_call_operand.vmem [shape: f32[64,32], index: 8, kind: input, shape index: {}]
  %s9 = inlined_call_operand.hbm [shape: f32[2,32,32], index: 9, kind: output, shape index: {}]
  %s10 = sld [smem:[#allocation0]]
  $region85: #{tpu_custom_call.1} parent=0
    _
  %s12 = ssub.s32 1, %s10
  %s13 = scalar_select 0, %s12, %s10
  $region1: #{tpu_custom_call.1} parent=0
    #allocation4 [shape = 'u8[2048]{0}', space=vmem, size = 0x800, scoped, tag = 'input window, operand 2, single buffered']
    #allocation5 [shape = 's32[2]{0}', space=sflag, size = 0x8, scoped, tag = 'scoped memory for tpu_custom_call.1']
    #allocation6 [shape = 's32[2]{0}', space=sflag, size = 0x8, scoped, tag = 'scoped memory for tpu_custom_call.1']
    #allocation7 [shape = 'u8[32768]{0}', space=vmem, size = 0x8000, scoped, tag = 'input window, operand 4, single buffered']
    #allocation8 [shape = 's32[1]{0}', space=sflag, size = 0x4, scoped, tag = 'scoped memory for tpu_custom_call.1']
    #allocation9 [shape = 'u8[16384]{0}', space=vmem, size = 0x4000, scoped, tag = 'input window, operand 5, single buffered']
    #allocation10 [shape = 'u8[16384]{0}', space=vmem, size = 0x4000, scoped, tag = 'output window, operand 0']
    %14 = vsyncpa [#allocation5], 0
    %15 = vsyncpa [#allocation8], 0
    %16 = vsyncpa [#allocation6], 0
    %s17 = scalar_lea.sflag [#allocation6], 1
    %18 = vsyncpa %s17, 0
    loop: start=0, step=1, limit=6
    $region2: #{tpu_custom_call.1} parent=1 // loop_pre_header
      _
    $region3: #{tpu_custom_call.1} parent=1 // loop_header
      %s20 = sphi 0, %s24
      %p21 = scmp.ge.s32.totalorder %s20, 6
      %s27 = sphi 0, %s39
      %s28 = sphi 0, %s35
      %s29 = sphi 0, %s27
      %s30 = sphi 0, %s28
      %s31 = sphi 0, %s29
      %s32 = sphi 0, %s30
      %s44 = sphi 0, %s46
      %s47 = sphi 0, %s44
      %s48 = sphi 0, %s47
      %s64 = sphi 0, %s48
      %s68 = sphi 0, %s68
      %s70 = sphi 0, %s68
      %s71 = sphi 0, %s70
      %s85 = sphi 0, %s71
      %s89 = sphi 0, %s89
      %s91 = sphi 0, %s89
      %s92 = sphi 0, %s91
      %s106 = sphi 0, %s92
      %s110 = sphi 0, %s110
      %s112 = sphi 0, %s110
      %s113 = sphi 0, %s112
      %s127 = sphi 0, %s113
      %s131 = sphi 0, %s131
      %s133 = sphi 0, %s131
      %s134 = sphi 0, %s133
      %s148 = sphi 0, %s134
      %s152 = sphi 0, %s152
      %s154 = sphi 0, %s152
      %s155 = sphi 0, %s154
      %s169 = sphi 0, %s155
      %s173 = sphi 0, %s173
      %s175 = sphi 0, %s173
      %s176 = sphi 0, %s175
      %s190 = sphi 0, %s176
      %s194 = sphi 0, %s194
      %s196 = sphi 0, %s194
      %s197 = sphi 0, %s196
      %s211 = sphi 0, %s197
      %s215 = sphi 0, %s215
      %s217 = sphi 0, %s215
      %s218 = sphi 0, %s217
      %s232 = sphi 0, %s218
      %s240 = sphi 0, %s242
      %s243 = sphi 0, %s240
      %s244 = sphi 0, %s243
      %s260 = sphi 0, %s244
    $region4: #{tpu_custom_call.1} parent=1 // loop_header_branch
      %23 = sbr.rel (%p21) target = $region8
    $region5: #{tpu_custom_call.1} parent=1 // loop_body
      %s25 = ssub.s32 %s20, 1
      %s26 = ssub.s32 %s20, 2
      %s33 = sadd.s32 1, %s28
      %p34 = scmp.ge.s32.totalorder %s33, 2
      %s35 = scalar_select %p34, 0, %s33
      %s36 = sadd.s32 1, %s27
      %s37 = scalar_select %p34, %s36, %s27
      %p38 = scmp.ge.s32.totalorder %s37, 2
      %s39 = scalar_select %p38, 0, %s37
      %s40 = ssub.s32 %s27, %s39
      %s41 = ssub.s32 %s28, %s35
      %s42 = sor.u32 %s40, %s41
      %p43 = scmp.eq.s32.totalorder %s42, 0
      %s45 = sadd.s32 %s44, 1
      %s46 = scalar_select %p43, %s44, %s45
      %p49 = pneg %p43
      %p50 = scmp.eq.s32.totalorder %s20, 3
      %p51 = por %p49, %p50
      %p52 = scmp.ne.s32.totalorder %s44, %s47
      %p53 = scmp.eq.s32.totalorder %s20, 0
      %p54 = por %p52, %p53
      %p55 = scmp.ne.s32.totalorder %s44, %s47
      %p56 = scmp.eq.s32.totalorder %s25, 3
      %p57 = por %p55, %p56
      %p58 = scmp.ne.s32.totalorder %s47, %s48
      %p59 = scmp.eq.s32.totalorder %s25, 0
      %p60 = por %p58, %p59
      %p61 = scmp.ne.s32.totalorder %s47, %s48
      %p62 = scmp.eq.s32.totalorder %s26, 3
      %p63 = por %p61, %p62
      %p65 = scmp.ne.s32.totalorder %s48, %s64
      %p66 = scmp.eq.s32.totalorder %s26, 0
      %p67 = por %p65, %p66
      %s69 = sadd.s32 %s68, 1
      %p72 = scmp.eq.s32.totalorder %s20, 3
      %p73 = scmp.ne.s32.totalorder %s68, %s70
      %p74 = scmp.eq.s32.totalorder %s20, 0
      %p75 = por %p73, %p74
      %p76 = scmp.ne.s32.totalorder %s68, %s70
      %p77 = scmp.eq.s32.totalorder %s25, 3
      %p78 = por %p76, %p77
      %p79 = scmp.ne.s32.totalorder %s70, %s71
      %p80 = scmp.eq.s32.totalorder %s25, 0
      %p81 = por %p79, %p80
      %p82 = scmp.ne.s32.totalorder %s70, %s71
      %p83 = scmp.eq.s32.totalorder %s26, 3
      %p84 = por %p82, %p83
      %p86 = scmp.ne.s32.totalorder %s71, %s85
      %p87 = scmp.eq.s32.totalorder %s26, 0
      %p88 = por %p86, %p87
      %s90 = sadd.s32 %s89, 1
      %p93 = scmp.eq.s32.totalorder %s20, 3
      %p94 = scmp.ne.s32.totalorder %s89, %s91
      %p95 = scmp.eq.s32.totalorder %s20, 0
      %p96 = por %p94, %p95
      %p97 = scmp.ne.s32.totalorder %s89, %s91
      %p98 = scmp.eq.s32.totalorder %s25, 3
      %p99 = por %p97, %p98
      %p100 = scmp.ne.s32.totalorder %s91, %s92
      %p101 = scmp.eq.s32.totalorder %s25, 0
      %p102 = por %p100, %p101
      %p103 = scmp.ne.s32.totalorder %s91, %s92
      %p104 = scmp.eq.s32.totalorder %s26, 3
      %p105 = por %p103, %p104
      %p107 = scmp.ne.s32.totalorder %s92, %s106
      %p108 = scmp.eq.s32.totalorder %s26, 0
      %p109 = por %p107, %p108
      %s111 = sadd.s32 %s110, 1
      %p114 = scmp.eq.s32.totalorder %s20, 3
      %p115 = scmp.ne.s32.totalorder %s110, %s112
      %p116 = scmp.eq.s32.totalorder %s20, 0
      %p117 = por %p115, %p116
      %p118 = scmp.ne.s32.totalorder %s110, %s112
      %p119 = scmp.eq.s32.totalorder %s25, 3
      %p120 = por %p118, %p119
      %p121 = scmp.ne.s32.totalorder %s112, %s113
      %p122 = scmp.eq.s32.totalorder %s25, 0
      %p123 = por %p121, %p122
      %p124 = scmp.ne.s32.totalorder %s112, %s113
      %p125 = scmp.eq.s32.totalorder %s26, 3
      %p126 = por %p124, %p125
      %p128 = scmp.ne.s32.totalorder %s113, %s127
      %p129 = scmp.eq.s32.totalorder %s26, 0
      %p130 = por %p128, %p129
      %s132 = sadd.s32 %s131, 1
      %p135 = scmp.eq.s32.totalorder %s20, 3
      %p136 = scmp.ne.s32.totalorder %s131, %s133
      %p137 = scmp.eq.s32.totalorder %s20, 0
      %p138 = por %p136, %p137
      %p139 = scmp.ne.s32.totalorder %s131, %s133
      %p140 = scmp.eq.s32.totalorder %s25, 3
      %p141 = por %p139, %p140
      %p142 = scmp.ne.s32.totalorder %s133, %s134
      %p143 = scmp.eq.s32.totalorder %s25, 0
      %p144 = por %p142, %p143
      %p145 = scmp.ne.s32.totalorder %s133, %s134
      %p146 = scmp.eq.s32.totalorder %s26, 3
      %p147 = por %p145, %p146
      %p149 = scmp.ne.s32.totalorder %s134, %s148
      %p150 = scmp.eq.s32.totalorder %s26, 0
      %p151 = por %p149, %p150
      %s153 = sadd.s32 %s152, 1
      %p156 = scmp.eq.s32.totalorder %s20, 3
      %p157 = scmp.ne.s32.totalorder %s152, %s154
      %p158 = scmp.eq.s32.totalorder %s20, 0
      %p159 = por %p157, %p158
      %p160 = scmp.ne.s32.totalorder %s152, %s154
      %p161 = scmp.eq.s32.totalorder %s25, 3
      %p162 = por %p160, %p161
      %p163 = scmp.ne.s32.totalorder %s154, %s155
      %p164 = scmp.eq.s32.totalorder %s25, 0
      %p165 = por %p163, %p164
      %p166 = scmp.ne.s32.totalorder %s154, %s155
      %p167 = scmp.eq.s32.totalorder %s26, 3
      %p168 = por %p166, %p167
      %p170 = scmp.ne.s32.totalorder %s155, %s169
      %p171 = scmp.eq.s32.totalorder %s26, 0
      %p172 = por %p170, %p171
      %s174 = sadd.s32 %s173, 1
      %p177 = scmp.eq.s32.totalorder %s20, 3
      %p178 = scmp.ne.s32.totalorder %s173, %s175
      %p179 = scmp.eq.s32.totalorder %s20, 0
      %p180 = por %p178, %p179
      %p181 = scmp.ne.s32.totalorder %s173, %s175
      %p182 = scmp.eq.s32.totalorder %s25, 3
      %p183 = por %p181, %p182
      %p184 = scmp.ne.s32.totalorder %s175, %s176
      %p185 = scmp.eq.s32.totalorder %s25, 0
      %p186 = por %p184, %p185
      %p187 = scmp.ne.s32.totalorder %s175, %s176
      %p188 = scmp.eq.s32.totalorder %s26, 3
      %p189 = por %p187, %p188
      %p191 = scmp.ne.s32.totalorder %s176, %s190
      %p192 = scmp.eq.s32.totalorder %s26, 0
      %p193 = por %p191, %p192
      %s195 = sadd.s32 %s194, 1
      %p198 = scmp.eq.s32.totalorder %s20, 3
      %p199 = scmp.ne.s32.totalorder %s194, %s196
      %p200 = scmp.eq.s32.totalorder %s20, 0
      %p201 = por %p199, %p200
      %p202 = scmp.ne.s32.totalorder %s194, %s196
      %p203 = scmp.eq.s32.totalorder %s25, 3
      %p204 = por %p202, %p203
      %p205 = scmp.ne.s32.totalorder %s196, %s197
      %p206 = scmp.eq.s32.totalorder %s25, 0
      %p207 = por %p205, %p206
      %p208 = scmp.ne.s32.totalorder %s196, %s197
      %p209 = scmp.eq.s32.totalorder %s26, 3
      %p210 = por %p208, %p209
      %p212 = scmp.ne.s32.totalorder %s197, %s211
      %p213 = scmp.eq.s32.totalorder %s26, 0
      %p214 = por %p212, %p213
      %s216 = sadd.s32 %s215, 1
      %p219 = scmp.eq.s32.totalorder %s20, 3
      %p220 = scmp.ne.s32.totalorder %s215, %s217
      %p221 = scmp.eq.s32.totalorder %s20, 0
      %p222 = por %p220, %p221
      %p223 = scmp.ne.s32.totalorder %s215, %s217
      %p224 = scmp.eq.s32.totalorder %s25, 3
      %p225 = por %p223, %p224
      %p226 = scmp.ne.s32.totalorder %s217, %s218
      %p227 = scmp.eq.s32.totalorder %s25, 0
      %p228 = por %p226, %p227
      %p229 = scmp.ne.s32.totalorder %s217, %s218
      %p230 = scmp.eq.s32.totalorder %s26, 3
      %p231 = por %p229, %p230
      %p233 = scmp.ne.s32.totalorder %s218, %s232
      %p234 = scmp.eq.s32.totalorder %s26, 0
      %p235 = por %p233, %p234
      %s236 = ssub.s32 %s27, %s39
      %s237 = ssub.s32 %s28, %s35
      %s238 = sor.u32 %s236, %s237
      %p239 = scmp.eq.s32.totalorder %s238, 0
      %s241 = sadd.s32 %s240, 1
      %s242 = scalar_select %p239, %s240, %s241
      %p245 = pneg %p239
      %p246 = scmp.eq.s32.totalorder %s20, 3
      %p247 = por %p245, %p246
      %p248 = scmp.ne.s32.totalorder %s240, %s243
      %p249 = scmp.eq.s32.totalorder %s20, 0
      %p250 = por %p248, %p249
      %p251 = scmp.ne.s32.totalorder %s240, %s243
      %p252 = scmp.eq.s32.totalorder %s25, 3
      %p253 = por %p251, %p252
      %p254 = scmp.ne.s32.totalorder %s243, %s244
      %p255 = scmp.eq.s32.totalorder %s25, 0
      %p256 = por %p254, %p255
      %p257 = scmp.ne.s32.totalorder %s243, %s244
      %p258 = scmp.eq.s32.totalorder %s26, 3
      %p259 = por %p257, %p258
      %p261 = scmp.ne.s32.totalorder %s244, %s260
      %p262 = scmp.eq.s32.totalorder %s26, 0
      %p263 = por %p261, %p262
      %p264 = scmp.le.s32.totalorder 1, %s20
      %p265 = scmp.lt.s32.totalorder %s20, 5
      %p266 = pnand %p264, %p265
      %p267 = pneg %p266
      // Predicated region
      $region9: #{tpu_custom_call.1} parent=5 // pred_check
        _
      $region10: #{tpu_custom_call.1} parent=5 // pred_check_branch
        %269 = sbr.rel (%p266) target = $region12
      $region11: #{tpu_custom_call.1} parent=5 // pred_region
        %s270 = ssub.s32 %s20, 1
        // Predicated region
        $region13: #{tpu_custom_call.1} parent=11 // pred_check
          %p271 = pneg %p81
        $region14: #{tpu_custom_call.1} parent=11 // pred_check_branch
          %273 = sbr.rel (%p271) target = $region16
        $region15: #{tpu_custom_call.1} parent=11 // pred_region
          _
        $region16: #{tpu_custom_call.1} parent=11 // pred_fallthru
          _
        // Predicated region
        $region17: #{tpu_custom_call.1} parent=11 // pred_check
          %p274 = pneg %p102
        $region18: #{tpu_custom_call.1} parent=11 // pred_check_branch
          %276 = sbr.rel (%p274) target = $region20
        $region19: #{tpu_custom_call.1} parent=11 // pred_region
          %s278 = ssub.s32 64, 64
          %279 = vsyncadd [#allocation5], %s278
          %s281 = sshll.u32 [#allocation4], 4
          %s282 = int_to_ptr.vmem [resolvable:$true] %s281
          %284 = dma.hbm_to_vmem [thread:$0]  %s2, 64, %s282, [#allocation5]
        $region20: #{tpu_custom_call.1} parent=11 // pred_fallthru
          _
        // Predicated region
        $region21: #{tpu_custom_call.1} parent=11 // pred_check
          %p285 = pneg %p123
        $region22: #{tpu_custom_call.1} parent=11 // pred_check_branch
          %287 = sbr.rel (%p285) target = $region24
        $region23: #{tpu_custom_call.1} parent=11 // pred_region
          _
        $region24: #{tpu_custom_call.1} parent=11 // pred_fallthru
          _
        // Predicated region
        $region25: #{tpu_custom_call.1} parent=11 // pred_check
          %p288 = pneg %p144
        $region26: #{tpu_custom_call.1} parent=11 // pred_check_branch
          %290 = sbr.rel (%p288) target = $region28
        $region27: #{tpu_custom_call.1} parent=11 // pred_region
          %s292 = ssub.s32 1024, 1024
          %293 = vsyncadd [#allocation8], %s292
          %s294 = sshll.u32 [#allocation7], 4
          %s295 = int_to_ptr.vmem [resolvable:$true] %s294
          %300 = dma.hbm_to_vmem [thread:$0]  %s4, 1024, %s295, [#allocation8], 128, 128, 8
        $region28: #{tpu_custom_call.1} parent=11 // pred_fallthru
          _
        // Predicated region
        $region29: #{tpu_custom_call.1} parent=11 // pred_check
          %p301 = pneg %p165
        $region30: #{tpu_custom_call.1} parent=11 // pred_check_branch
          %303 = sbr.rel (%p301) target = $region32
        $region31: #{tpu_custom_call.1} parent=11 // pred_region
          %s305 = ssub.s32 512, 512
          %306 = vsyncadd [#allocation8], %s305
          %s307 = sshll.u32 [#allocation9], 4
          %s308 = int_to_ptr.vmem [resolvable:$true] %s307
          %313 = dma.hbm_to_vmem [thread:$0]  %s5, 512, %s308, [#allocation8], 128, 128, 8
        $region32: #{tpu_custom_call.1} parent=11 // pred_fallthru
          _
        // Predicated region
        $region33: #{tpu_custom_call.1} parent=11 // pred_check
          %p314 = pneg %p186
        $region34: #{tpu_custom_call.1} parent=11 // pred_check_branch
          %316 = sbr.rel (%p314) target = $region36
        $region35: #{tpu_custom_call.1} parent=11 // pred_region
          _
        $region36: #{tpu_custom_call.1} parent=11 // pred_fallthru
          _
        // Predicated region
        $region37: #{tpu_custom_call.1} parent=11 // pred_check
          %p317 = pneg %p207
        $region38: #{tpu_custom_call.1} parent=11 // pred_check_branch
          %319 = sbr.rel (%p317) target = $region40
        $region39: #{tpu_custom_call.1} parent=11 // pred_region
          _
        $region40: #{tpu_custom_call.1} parent=11 // pred_fallthru
          _
        // Predicated region
        $region41: #{tpu_custom_call.1} parent=11 // pred_check
          %p320 = pneg %p228
        $region42: #{tpu_custom_call.1} parent=11 // pred_check_branch
          %322 = sbr.rel (%p320) target = $region44
        $region43: #{tpu_custom_call.1} parent=11 // pred_region
          _
        $region44: #{tpu_custom_call.1} parent=11 // pred_fallthru
          _
      $region12: #{tpu_custom_call.1} parent=5 // pred_fallthru
        _
      %p323 = scmp.lt.s32.totalorder %s20, 4
      // Predicated region
      $region45: #{tpu_custom_call.1} parent=5 // pred_check
        %p324 = pneg %p323
      $region46: #{tpu_custom_call.1} parent=5 // pred_check_branch
        %326 = sbr.rel (%p324) target = $region48
      $region47: #{tpu_custom_call.1} parent=5 // pred_region
        // Predicated region
        $region49: #{tpu_custom_call.1} parent=47 // pred_check
          %p327 = pneg %p54
        $region50: #{tpu_custom_call.1} parent=47 // pred_check_branch
          %329 = sbr.rel (%p327) target = $region52
        $region51: #{tpu_custom_call.1} parent=47 // pred_region
          %s330 = smul.u32 2, %s28
          %p331 = scmp.lt.s32.totalorder %s27, 1
          %s332 = scalar_select %p331, %s27, 1
          %p333 = scmp.lt.s32.totalorder %s330, 3
          %s334 = scalar_select %p333, %s330, 3
          %s335 = smul.addr %s332, 4
          %s336 = sadd.s32 %s334, %s335
          %s337 = smul.addr %s336, 8
          %s338 = scalar_lea.vmem %s0, %s337
          %s339 = smul.u32 2, %s28
        $region52: #{tpu_custom_call.1} parent=47 // pred_fallthru
          _
      $region48: #{tpu_custom_call.1} parent=5 // pred_fallthru
        _
      %p340 = scmp.le.s32.totalorder 1, %s20
      %p341 = scmp.lt.s32.totalorder %s20, 5
      %p342 = pnand %p340, %p341
      %p343 = pneg %p342
      // Predicated region
      $region53: #{tpu_custom_call.1} parent=5 // pred_check
        _
      $region54: #{tpu_custom_call.1} parent=5 // pred_check_branch
        %345 = sbr.rel (%p342) target = $region56
      $region55: #{tpu_custom_call.1} parent=5 // pred_region
        %s346 = ssub.s32 %s20, 1
        // Predicated region
        $region57: #{tpu_custom_call.1} parent=55 // pred_check
          %p347 = pneg %p102
        $region58: #{tpu_custom_call.1} parent=55 // pred_check_branch
          %349 = sbr.rel (%p347) target = $region60
        $region59: #{tpu_custom_call.1} parent=55 // pred_region
          %350 = dma.done [#allocation5], 64
        $region60: #{tpu_custom_call.1} parent=55 // pred_fallthru
          _
        // Predicated region
        $region61: #{tpu_custom_call.1} parent=55 // pred_check
          %p351 = pneg %p144
        $region62: #{tpu_custom_call.1} parent=55 // pred_check_branch
          %353 = sbr.rel (%p351) target = $region64
        $region63: #{tpu_custom_call.1} parent=55 // pred_region
          %354 = dma.done [#allocation8], 1024
        $region64: #{tpu_custom_call.1} parent=55 // pred_fallthru
          _
        // Predicated region
        $region65: #{tpu_custom_call.1} parent=55 // pred_check
          %p355 = pneg %p165
        $region66: #{tpu_custom_call.1} parent=55 // pred_check_branch
          %357 = sbr.rel (%p355) target = $region68
        $region67: #{tpu_custom_call.1} parent=55 // pred_region
          %358 = dma.done [#allocation8], 512
        $region68: #{tpu_custom_call.1} parent=55 // pred_fallthru
          _
        %s359 = smul.u32 2, %s30
        %p360 = scmp.lt.s32.totalorder %s29, 1
        %s361 = scalar_select %p360, %s29, 1
        %p362 = scmp.lt.s32.totalorder %s359, 3
        %s363 = scalar_select %p362, %s359, 3
        %s364 = smul.addr %s361, 4
        %s365 = sadd.s32 %s363, %s364
        %s366 = smul.addr %s365, 8
        %s367 = scalar_lea.vmem %s0, %s366
        %p368 = pneg %p60
        %p369 = pneg %p57
        %p370 = pneg %p81
        %p371 = pneg %p78
        %p372 = pneg %p102
        %p373 = pneg %p99
        %p374 = pneg %p123
        %p375 = pneg %p120
        %p376 = pneg %p144
        %p377 = pneg %p141
        %p378 = pneg %p165
        %p379 = pneg %p162
        %p380 = pneg %p186
        %p381 = pneg %p183
        %p382 = pneg %p207
        %p383 = pneg %p204
        %p384 = pneg %p228
        %p385 = pneg %p225
        %p386 = pneg %p256
        %p387 = pneg %p253
        %s388 = sand.u32 %s243, 1
        %s389 = scalar_lea.sflag [#allocation6], %s388
        %s390 = sand.u32 %s243, 1
        %s391 = smul.addr %s390, 16
        %s392 = scalar_lea.vmem [#allocation10], %s391
        %s393 = smul.u32 2, %s30
        %p394 = scmp.lt.s32.totalorder %s29, 1
        %s395 = scalar_select %p394, %s29, 1
        %p396 = scmp.lt.s32.totalorder %s393, 3
        %s397 = scalar_select %p396, %s393, 3
        %s398 = smul.addr %s395, 4
        %s399 = sadd.s32 %s397, %s398
        %s400 = smul.addr %s399, 8
        %s401 = scalar_lea.vmem %s0, %s400
        %s402 = smul.u32 2, %s30
        %s403 = smul.u32 2, %s30
        %p404 = scmp.eq.s32.totalorder %s30, 0
        // Predicated region
        $region69: #{tpu_custom_call.1} parent=55 // pred_check
          %p405 = pneg %p404
        $region70: #{tpu_custom_call.1} parent=55 // pred_check_branch
          %407 = sbr.rel (%p405) target = $region72
        $region71: #{tpu_custom_call.1} parent=55 // pred_region
          %vm408 = vcmask 523264
          %409 = vst.msk [vmem:[#allocation3] sm:$0xff] %vm408, 0.0
          %410 = vst.msk [vmem:[#allocation3 + $0x8] sm:$0xff] %vm408, 0.0
          %vm411 = vcmask 518144
          %412 = vst.msk [vmem:[#allocation2] sm:$0x7] %vm411, 0.0
        $region72: #{tpu_custom_call.1} parent=55 // pred_fallthru
          _
        %v413 = vld [vmem:[%s401] sm:$0xff]
        %v414 = vld [vmem:[%s401 + $0x8] sm:$0xff]
        %v415 = vld [vmem:[%s1] sm:$0xff]
        %v416 = vld [vmem:[%s1 + $0x8] sm:$0xff]
        %v417 = vld [vmem:[%s1 + $0x10] sm:$0xff]
        %v418 = vld [vmem:[%s1 + $0x18] sm:$0xff]
        %vm419 = vcmask 261120
        %v421 = vsel %vm419, %v413, 0
        %v424 = vsel %vm419, %v414, 0
        %426 = vmatprep.subr.mxu0 0.0
        %427 = vmatpush1.msra.mxu0 %v415
        %428 = vmatprep.subr.mxu0 0.0
        %429 = vmatpush1.msra.mxu0 %v416
        %430 = vmatprep.subr.mxu0 0.0
        %431 = vmatpush1.msra.mxu0 %v417
        %432 = vmatprep.subr.mxu0 0.0
        %433 = vmatpush1.msra.mxu0 %v418
        %434 = vmatprep.subr.mxu0 0.0
        %435 = vmatpush1.msra.mxu0 0.0
        %436 = vmatprep.subr.mxu0 0.0
        %437 = vmatpush1.msra.mxu0 0.0
        %438 = vmatprep.subr.mxu0 0.0
        %439 = vmatpush1.msra.mxu0 0.0
        %440 = vmatprep.subr.mxu0 0.0
        %441 = vmatpush1.msra.mxu0 0.0
        %442 = vmatprep.subr.mxu0 0.0
        %443 = vmatpush1.msra.mxu0 0.0
        %444 = vmatprep.subr.mxu0 0.0
        %445 = vmatpush1.msra.mxu0 0.0
        %446 = vmatprep.subr.mxu0 0.0
        %447 = vmatpush1.msra.mxu0 0.0
        %448 = vmatprep.subr.mxu0 0.0
        %449 = vmatpush1.msra.mxu0 0.0
        %450 = vmatprep.subr.mxu0 0.0
        %451 = vmatpush1.msra.mxu0 0.0
        %452 = vmatprep.subr.mxu0 0.0
        %453 = vmatpush1.msra.mxu0 0.0
        %454 = vmatprep.subr.mxu0 0.0
        %455 = vmatpush1.msra.mxu0 0.0
        %456 = vmatprep.subr.mxu0 0.0
        %457 = vmatpush1.msra.mxu0 0.0
        %458 = vmatprep.subr.mxu0 0.0
        %459 = vmatpush1.msra.mxu0 0.0
        %460 = vmatprep.subr.mxu0 0.0
        %461 = vmatpush1.msra.mxu0 0.0
        %462 = vmatprep.subr.mxu0 0.0
        %463 = vmatpush1.msra.mxu0 0.0
        %464 = vmatprep.subr.mxu0 0.0
        %465 = vmatpush1.msra.mxu0 0.0
        %466 = vmatprep.subr.mxu0 0.0
        %467 = vmatpush1.msra.mxu0 0.0
        %468 = vmatprep.subr.mxu0 0.0
        %469 = vmatpush1.msra.mxu0 0.0
        %470 = vmatprep.subr.mxu0 0.0
        %471 = vmatpush1.msra.mxu0 0.0
        %472 = vmatprep.subr.mxu0 0.0
        %473 = vmatpush1.msra.mxu0 0.0
        %474 = vmatprep.subr.mxu0 0.0
        %475 = vmatpush1.msra.mxu0 0.0
        %476 = vmatprep.subr.mxu0 0.0
        %477 = vmatpush1.msra.mxu0 0.0
        %478 = vmatprep.subr.mxu0 0.0
        %479 = vmatpush1.msra.mxu0 0.0
        %480 = vmatprep.subr.mxu0 0.0
        %481 = vmatpush1.msra.mxu0 0.0
        %482 = vmatprep.subr.mxu0 0.0
        %483 = vmatpush1.msra.mxu0 0.0
        %484 = vmatprep.subr.mxu0 0.0
        %485 = vmatpush1.msra.mxu0 0.0
        %486 = vmatprep.subr.mxu0 0.0
        %487 = vmatpush1.msra.mxu0 0.0
        %488 = vmatprep.subr.mxu0 0.0
        %489 = vmatpush1.msra.mxu0 0.0
        %490 = vmatprep.mubr.f32.mxu0 0.0
        %491 = vmatmul.mubr.f32.gmra.mrb[0].mxu0 %v421
        %v492 = vpop.f32.mrb[0].mxu0
        %v493 = vadd.f32 0.0, %v492
        %v494 = vpop.f32.mrb[0].mxu0
        %495 = vmatprep.mubr.f32.mxu0 0.0
        %496 = vmatmul.mubr.f32.gmra.mrb[0].mxu0 %v424
        %v497 = vpop.f32.mrb[0].mxu0
        %v498 = vadd.f32 0.0, %v497
        %v499 = vpop.f32.mrb[0].mxu0
        %500 = vdwg.mxu0
        %v501 = vsub.f32 0.0, %v493
        %v502 = vsub.f32 0.0, %v498
        %v503 = vmul.f32 %v501, 1.442695
        %v504 = vpow.pop %v503
        %v505 = vmul.f32 %v502, 1.442695
        %v506 = vpow.pop %v505
        %v507 = vadd.f32 %v504, 1.0
        %v508 = vadd.f32 %v506, 1.0
        %v509 = vrcp.pop %v507
        %v510 = vrcp.pop %v508
        %v511 = vmul.f32 %v493, %v509
        %v512 = vmul.f32 %v498, %v510
        %vm513 = vcmask 523264
        %514 = vst.msk [vmem:[#allocation2 + $0x3] sm:$0xff] %vm513, %v493
        %515 = vst.msk [vmem:[#allocation2 + $0xb] sm:$0xff] %vm513, %v498
        %v516 = vld [vmem:[#allocation4] sm:$0xf]
        %v517 = vld [vmem:[%s3] sm:$0x1]
        %v519 = vlaneseq
        %v520 = vshrl.u32 %v519, 7
        %v521 = vsub.s32 0, %v520
        %v522 = vrot.slane %v517, %v521
        %v524 = vadd.f32 %v522, 0.0
        %v525 = vld [vmem:[#allocation2] sm:$0xff]
        %v526 = vld [vmem:[#allocation2 + $0x8] sm:$0xff]
        %v527 = vlaneseq
        %v528 = vshrl.u32 %v527, 7
        %v529 = vsub.s32 0, %v528
        %v530 = vrot.slane %v516, %v529
        %v531 = vmul.f32 %v525, %v530
        %v532 = vmul.f32 %v526, %v530
        %v533 = vadd.f32 %v524, %v531
        %v534 = vadd.f32 %v524, %v532
        %v535 = vld [vmem:[#allocation2 + $0x1] sm:$0xff]
        %v536 = vld [vmem:[#allocation2 + $0x9] sm:$0xff]
        %v537 = vlaneseq
        %v538 = vshrl.u32 %v537, 7
        %v539 = vsub.s32 1, %v538
        %v540 = vrot.slane %v516, %v539
        %v541 = vmul.f32 %v535, %v540
        %v542 = vmul.f32 %v536, %v540
        %v543 = vadd.f32 %v533, %v541
        %v544 = vadd.f32 %v534, %v542
        %v545 = vld [vmem:[#allocation2 + $0x2] sm:$0xff]
        %v546 = vld [vmem:[#allocation2 + $0xa] sm:$0xff]
        %v547 = vlaneseq
        %v548 = vshrl.u32 %v547, 7
        %v549 = vsub.s32 2, %v548
        %v550 = vrot.slane %v516, %v549
        %v551 = vmul.f32 %v545, %v550
        %v552 = vmul.f32 %v546, %v550
        %v553 = vadd.f32 %v543, %v551
        %v554 = vadd.f32 %v544, %v552
        %v555 = vld [vmem:[#allocation2 + $0x3] sm:$0xff]
        %v556 = vld [vmem:[#allocation2 + $0xb] sm:$0xff]
        %v557 = vlaneseq
        %v558 = vshrl.u32 %v557, 7
        %v559 = vsub.s32 3, %v558
        %v560 = vrot.slane %v516, %v559
        %v561 = vmul.f32 %v555, %v560
        %v562 = vmul.f32 %v556, %v560
        %v563 = vadd.f32 %v553, %v561
        %v564 = vadd.f32 %v554, %v562
        %vm565 = vcmask 523269
        %566 = vst.msk [vmem:[#allocation2 - $0x5] sm:$0xe0] %vm565, %v498
        %v567 = vsub.f32 0.0, %v563
        %v568 = vsub.f32 0.0, %v564
        %v569 = vmul.f32 %v567, 1.442695
        %v570 = vpow.pop %v569
        %v571 = vmul.f32 %v568, 1.442695
        %v572 = vpow.pop %v571
        %v573 = vadd.f32 %v570, 1.0
        %v574 = vadd.f32 %v572, 1.0
        %v575 = vrcp.pop %v573
        %v576 = vrcp.pop %v574
        %v577 = vmul.f32 %v563, %v575
        %v578 = vmul.f32 %v564, %v576
        %v579 = vld [vmem:[#allocation7] sm:$0xff]
        %v580 = vld [vmem:[#allocation7 + $0x8] sm:$0xff]
        %v581 = vld [vmem:[#allocation7 + $0x10] sm:$0xff]
        %v582 = vld [vmem:[#allocation7 + $0x18] sm:$0xff]
        %v583 = vld [vmem:[#allocation7 + $0x20] sm:$0xff]
        %v584 = vld [vmem:[#allocation7 + $0x28] sm:$0xff]
        %v585 = vld [vmem:[#allocation7 + $0x30] sm:$0xff]
        %v586 = vld [vmem:[#allocation7 + $0x38] sm:$0xff]
        %v588 = vsel %vm513, %v577, 0
        %v591 = vsel %vm513, %v578, 0
        %593 = vmatprep.subr.mxu0 0.0
        %594 = vmatpush1.msra.mxu0 %v579
        %595 = vmatprep.subr.mxu0 0.0
        %596 = vmatpush1.msra.mxu0 %v580
        %597 = vmatprep.subr.mxu0 0.0
        %598 = vmatpush1.msra.mxu0 %v581
        %599 = vmatprep.subr.mxu0 0.0
        %600 = vmatpush1.msra.mxu0 %v582
        %601 = vmatprep.subr.mxu0 0.0
        %602 = vmatpush1.msra.mxu0 %v583
        %603 = vmatprep.subr.mxu0 0.0
        %604 = vmatpush1.msra.mxu0 %v584
        %605 = vmatprep.subr.mxu0 0.0
        %606 = vmatpush1.msra.mxu0 %v585
        %607 = vmatprep.subr.mxu0 0.0
        %608 = vmatpush1.msra.mxu0 %v586
        %609 = vmatprep.subr.mxu0 0.0
        %610 = vmatpush1.msra.mxu0 0.0
        %611 = vmatprep.subr.mxu0 0.0
        %612 = vmatpush1.msra.mxu0 0.0
        %613 = vmatprep.subr.mxu0 0.0
        %614 = vmatpush1.msra.mxu0 0.0
        %615 = vmatprep.subr.mxu0 0.0
        %616 = vmatpush1.msra.mxu0 0.0
        %617 = vmatprep.subr.mxu0 0.0
        %618 = vmatpush1.msra.mxu0 0.0
        %619 = vmatprep.subr.mxu0 0.0
        %620 = vmatpush1.msra.mxu0 0.0
        %621 = vmatprep.subr.mxu0 0.0
        %622 = vmatpush1.msra.mxu0 0.0
        %623 = vmatprep.subr.mxu0 0.0
        %624 = vmatpush1.msra.mxu0 0.0
        %625 = vmatprep.subr.mxu0 0.0
        %626 = vmatpush1.msra.mxu0 0.0
        %627 = vmatprep.subr.mxu0 0.0
        %628 = vmatpush1.msra.mxu0 0.0
        %629 = vmatprep.subr.mxu0 0.0
        %630 = vmatpush1.msra.mxu0 0.0
        %631 = vmatprep.subr.mxu0 0.0
        %632 = vmatpush1.msra.mxu0 0.0
        %633 = vmatprep.subr.mxu0 0.0
        %634 = vmatpush1.msra.mxu0 0.0
        %635 = vmatprep.subr.mxu0 0.0
        %636 = vmatpush1.msra.mxu0 0.0
        %637 = vmatprep.subr.mxu0 0.0
        %638 = vmatpush1.msra.mxu0 0.0
        %639 = vmatprep.subr.mxu0 0.0
        %640 = vmatpush1.msra.mxu0 0.0
        %641 = vmatprep.subr.mxu0 0.0
        %642 = vmatpush1.msra.mxu0 0.0
        %643 = vmatprep.subr.mxu0 0.0
        %644 = vmatpush1.msra.mxu0 0.0
        %645 = vmatprep.subr.mxu0 0.0
        %646 = vmatpush1.msra.mxu0 0.0
        %647 = vmatprep.subr.mxu0 0.0
        %648 = vmatpush1.msra.mxu0 0.0
        %649 = vmatprep.subr.mxu0 0.0
        %650 = vmatpush1.msra.mxu0 0.0
        %651 = vmatprep.subr.mxu0 0.0
        %652 = vmatpush1.msra.mxu0 0.0
        %653 = vmatprep.subr.mxu0 0.0
        %654 = vmatpush1.msra.mxu0 0.0
        %655 = vmatprep.subr.mxu0 0.0
        %656 = vmatpush1.msra.mxu0 0.0
        %657 = vmatprep.mubr.f32.mxu0 0.0
        %658 = vmatmul.mubr.f32.gmra.mrb[0].mxu0 %v588
        %v659 = vpop.f32.mrb[0].mxu0
        %v660 = vadd.f32 0.0, %v659
        %v661 = vpop.f32.mrb[0].mxu0
        %662 = vmatprep.mubr.f32.mxu0 0.0
        %663 = vmatmul.mubr.f32.gmra.mrb[0].mxu0 %v591
        %v664 = vpop.f32.mrb[0].mxu0
        %v665 = vadd.f32 0.0, %v664
        %v666 = vpop.f32.mrb[0].mxu0
        %667 = vdwg.mxu0
        %vm668 = vcmp.gt.f32.partialorder %v660, 20.0
        %vm669 = vcmp.gt.f32.partialorder %v665, 20.0
        %v670 = vmax.f32 %v660, 0.0
        %v671 = vmax.f32 %v665, 0.0
        %v672 = vand.u32 2147483647, %v660
        %v673 = vand.u32 2147483647, %v665
        %v674 = vsub.f32 0.0, %v672
        %v675 = vsub.f32 0.0, %v673
        %v676 = vmul.f32 %v674, 1.442695
        %v677 = vpow.pop %v676
        %v678 = vmul.f32 %v675, 1.442695
        %v679 = vpow.pop %v678
        %v680 = vadd.f32 %v677, 1.0
        %v681 = vadd.f32 %v679, 1.0
        %v682 = vlog2.pop %v680
        %v683 = vmul.f32 %v682, 0.6931472
        %v684 = vlog2.pop %v681
        %v685 = vmul.f32 %v684, 0.6931472
        %v686 = vadd.f32 %v670, %v683
        %v687 = vadd.f32 %v671, %v685
        %v688 = vsel %vm668, %v660, %v686
        %v689 = vsel %vm669, %v665, %v687
        %v690 = vld [vmem:[#allocation9] sm:$0xff]
        %v691 = vld [vmem:[#allocation9 + $0x8] sm:$0xff]
        %v692 = vld [vmem:[#allocation9 + $0x10] sm:$0xff]
        %v693 = vld [vmem:[#allocation9 + $0x18] sm:$0xff]
        %v695 = vsel %vm513, %v690, 0
        %v698 = vsel %vm513, %v691, 0
        %v701 = vsel %vm513, %v692, 0
        %v704 = vsel %vm513, %v693, 0
        %706 = vmatprep.subr.mxu0 0.0
        %707 = vmatpush1.xpose.msra.mxu0 %v588
        %708 = vmatprep.subr.mxu0 0.0
        %709 = vmatpush1.xpose.msra.mxu0 %v591
        %710 = vmatprep.subr.mxu0 0.0
        %711 = vmatpush1.xpose.msra.mxu0 0.0
        %712 = vmatprep.subr.mxu0 0.0
        %713 = vmatpush1.xpose.msra.mxu0 0.0
        %714 = vmatprep.subr.mxu0 0.0
        %715 = vmatpush1.xpose.msra.mxu0 0.0
        %716 = vmatprep.subr.mxu0 0.0
        %717 = vmatpush1.xpose.msra.mxu0 0.0
        %718 = vmatprep.subr.mxu0 0.0
        %719 = vmatpush1.xpose.msra.mxu0 0.0
        %720 = vmatprep.subr.mxu0 0.0
        %721 = vmatpush1.xpose.msra.mxu0 0.0
        %722 = vmatprep.subr.mxu0 0.0
        %723 = vmatpush1.xpose.msra.mxu0 0.0
        %724 = vmatprep.subr.mxu0 0.0
        %725 = vmatpush1.xpose.msra.mxu0 0.0
        %726 = vmatprep.subr.mxu0 0.0
        %727 = vmatpush1.xpose.msra.mxu0 0.0
        %728 = vmatprep.subr.mxu0 0.0
        %729 = vmatpush1.xpose.msra.mxu0 0.0
        %730 = vmatprep.subr.mxu0 0.0
        %731 = vmatpush1.xpose.msra.mxu0 0.0
        %732 = vmatprep.subr.mxu0 0.0
        %733 = vmatpush1.xpose.msra.mxu0 0.0
        %734 = vmatprep.subr.mxu0 0.0
        %735 = vmatpush1.xpose.msra.mxu0 0.0
        %736 = vmatprep.subr.mxu0 0.0
        %737 = vmatpush1.xpose.msra.mxu0 0.0
        %738 = vmatprep.subr.mxu0 0.0
        %739 = vmatpush1.xpose.msra.mxu0 0.0
        %740 = vmatprep.subr.mxu0 0.0
        %741 = vmatpush1.xpose.msra.mxu0 0.0
        %742 = vmatprep.subr.mxu0 0.0
        %743 = vmatpush1.xpose.msra.mxu0 0.0
        %744 = vmatprep.subr.mxu0 0.0
        %745 = vmatpush1.xpose.msra.mxu0 0.0
        %746 = vmatprep.subr.mxu0 0.0
        %747 = vmatpush1.xpose.msra.mxu0 0.0
        %748 = vmatprep.subr.mxu0 0.0
        %749 = vmatpush1.xpose.msra.mxu0 0.0
        %750 = vmatprep.subr.mxu0 0.0
        %751 = vmatpush1.xpose.msra.mxu0 0.0
        %752 = vmatprep.subr.mxu0 0.0
        %753 = vmatpush1.xpose.msra.mxu0 0.0
        %754 = vmatprep.subr.mxu0 0.0
        %755 = vmatpush1.xpose.msra.mxu0 0.0
        %756 = vmatprep.subr.mxu0 0.0
        %757 = vmatpush1.xpose.msra.mxu0 0.0
        %758 = vmatprep.subr.mxu0 0.0
        %759 = vmatpush1.xpose.msra.mxu0 0.0
        %760 = vmatprep.subr.mxu0 0.0
        %761 = vmatpush1.xpose.msra.mxu0 0.0
        %762 = vmatprep.subr.mxu0 0.0
        %763 = vmatpush1.xpose.msra.mxu0 0.0
        %764 = vmatprep.subr.mxu0 0.0
        %765 = vmatpush1.xpose.msra.mxu0 0.0
        %766 = vmatprep.subr.mxu0 0.0
        %767 = vmatpush1.xpose.msra.mxu0 0.0
        %768 = vmatprep.subr.mxu0 0.0
        %769 = vmatpush1.xpose.msra.mxu0 0.0
        %770 = vmatprep.mubr.f32.mxu0 0.0
        %771 = vmatmul.mubr.f32.gmra.mrb[0].mxu0 %v695
        %v772 = vpop.f32.mrb[0].mxu0
        %v773 = vadd.f32 0.0, %v772
        %v774 = vpop.f32.mrb[0].mxu0
        %775 = vmatprep.mubr.f32.mxu0 0.0
        %776 = vmatmul.mubr.f32.gmra.mrb[0].mxu0 %v698
        %v777 = vpop.f32.mrb[0].mxu0
        %v778 = vadd.f32 0.0, %v777
        %v779 = vpop.f32.mrb[0].mxu0
        %780 = vmatprep.mubr.f32.mxu0 0.0
        %781 = vmatmul.mubr.f32.gmra.mrb[0].mxu0 %v701
        %v782 = vpop.f32.mrb[0].mxu0
        %v783 = vadd.f32 0.0, %v782
        %v784 = vpop.f32.mrb[0].mxu0
        %785 = vmatprep.mubr.f32.mxu0 0.0
        %786 = vmatmul.mubr.f32.gmra.mrb[0].mxu0 %v704
        %v787 = vpop.f32.mrb[0].mxu0
        %v788 = vadd.f32 0.0, %v787
        %v789 = vpop.f32.mrb[0].mxu0
        %790 = vdwg.mxu0
        %v791 = vld [vmem:[%s6] sm:$0xff]
        %v792 = vld [vmem:[%s6 + $0x8] sm:$0xff]
        %v793 = vmul.f32 %v688, %v577
        %v794 = vmul.f32 %v689, %v578
        %v795 = vld [vmem:[#allocation3] sm:$0xff]
        %v796 = vld [vmem:[#allocation3 + $0x8] sm:$0xff]
        %v797 = vlaneseq
        %v798 = vshrl.u32 %v797, 7
        %v799 = vsub.s32 0, %v798
        %v800 = vrot.slane %v688, %v799
        %v801 = vmul.f32 %v800, %v791
        %v802 = vmul.f32 %v800, %v792
        %v803 = vmul.f32 %v801, 1.442695
        %v804 = vpow.pop %v803
        %v805 = vmul.f32 %v802, 1.442695
        %v806 = vpow.pop %v805
        %808 = vset.pattern.permute.xlu0 0
        %809 = vperm.xlu0 %808, %v773
        %v810 = vpop.permute.xlu0 %809
        %813 = vset.pattern.permute.xlu0 0
        %814 = vperm.xlu0 %813, %v778
        %v815 = vpop.permute.xlu0 %814
        %v817 = vlaneseq
        %v818 = vshrl.u32 %v817, 7
        %v819 = vsub.s32 0, %v818
        %v820 = vrot.slane %v793, %v819
        %v821 = vmul.f32 %v810, %v820
        %v822 = vmul.f32 %v815, %v820
        %v823 = vmul.f32 %v804, %v795
        %v824 = vmul.f32 %v806, %v796
        %v825 = vadd.f32 %v823, %v821
        %v826 = vadd.f32 %v824, %v822
        %828 = vset.pattern.permute.xlu0 0
        %829 = vperm.xlu0 %828, %v783
        %v830 = vpop.permute.xlu0 %829
        %833 = vset.pattern.permute.xlu0 0
        %834 = vperm.xlu0 %833, %v788
        %v835 = vpop.permute.xlu0 %834
        %v837 = vmul.f32 %v830, %v825
        %v838 = vmul.f32 %v835, %v826
        %v839 = vsel %vm513, %v837, 0.0
        %v840 = vsel %vm513, %v838, 0.0
        %v841 = vadd.f32 %v839, %v840
        %v842 = vrot.slane %v841, 4
        %v843 = vadd.f32 %v841, %v842
        %v844 = vrot.slane %v843, 2
        %v845 = vadd.f32 %v843, %v844
        %v846 = vrot.slane %v845, 1
        %v847 = vadd.f32 %v845, %v846
        %v848 = vlaneseq
        %v849 = vshrl.u32 %v848, 7
        %v850 = vsub.s32 1, %v849
        %v851 = vrot.slane %v688, %v850
        %v852 = vmul.f32 %v851, %v791
        %v853 = vmul.f32 %v851, %v792
        %v854 = vmul.f32 %v852, 1.442695
        %v855 = vpow.pop %v854
        %v856 = vmul.f32 %v853, 1.442695
        %v857 = vpow.pop %v856
        %858 = vset.pattern.permute.xlu0 1
        %859 = vperm.xlu0 %858, %v773
        %v860 = vpop.permute.xlu0 %859
        %862 = vset.pattern.permute.xlu0 1
        %863 = vperm.xlu0 %862, %v778
        %v864 = vpop.permute.xlu0 %863
        %v866 = vlaneseq
        %v867 = vshrl.u32 %v866, 7
        %v868 = vsub.s32 1, %v867
        %v869 = vrot.slane %v793, %v868
        %v870 = vmul.f32 %v860, %v869
        %v871 = vmul.f32 %v864, %v869
        %v872 = vmul.f32 %v855, %v825
        %v873 = vmul.f32 %v857, %v826
        %v874 = vadd.f32 %v872, %v870
        %v875 = vadd.f32 %v873, %v871
        %876 = vset.pattern.permute.xlu0 1
        %877 = vperm.xlu0 %876, %v783
        %v878 = vpop.permute.xlu0 %877
        %880 = vset.pattern.permute.xlu0 1
        %881 = vperm.xlu0 %880, %v788
        %v882 = vpop.permute.xlu0 %881
        %v884 = vmul.f32 %v878, %v874
        %v885 = vmul.f32 %v882, %v875
        %v886 = vsel %vm513, %v884, 0.0
        %v887 = vsel %vm513, %v885, 0.0
        %v888 = vadd.f32 %v886, %v887
        %v889 = vrot.slane %v888, 4
        %v890 = vadd.f32 %v888, %v889
        %v891 = vrot.slane %v890, 2
        %v892 = vadd.f32 %v890, %v891
        %v893 = vrot.slane %v892, 1
        %v894 = vadd.f32 %v892, %v893
        %v895 = vlaneseq
        %v896 = vshrl.u32 %v895, 7
        %v897 = vsub.s32 2, %v896
        %v898 = vrot.slane %v688, %v897
        %v899 = vmul.f32 %v898, %v791
        %v900 = vmul.f32 %v898, %v792
        %v901 = vmul.f32 %v899, 1.442695
        %v902 = vpow.pop %v901
        %v903 = vmul.f32 %v900, 1.442695
        %v904 = vpow.pop %v903
        %905 = vset.pattern.permute.xlu0 2
        %906 = vperm.xlu0 %905, %v773
        %v907 = vpop.permute.xlu0 %906
        %909 = vset.pattern.permute.xlu0 2
        %910 = vperm.xlu0 %909, %v778
        %v911 = vpop.permute.xlu0 %910
        %v913 = vlaneseq
        %v914 = vshrl.u32 %v913, 7
        %v915 = vsub.s32 2, %v914
        %v916 = vrot.slane %v793, %v915
        %v917 = vmul.f32 %v907, %v916
        %v918 = vmul.f32 %v911, %v916
        %v919 = vmul.f32 %v902, %v874
        %v920 = vmul.f32 %v904, %v875
        %v921 = vadd.f32 %v919, %v917
        %v922 = vadd.f32 %v920, %v918
        %923 = vset.pattern.permute.xlu0 2
        %924 = vperm.xlu0 %923, %v783
        %v925 = vpop.permute.xlu0 %924
        %927 = vset.pattern.permute.xlu0 2
        %928 = vperm.xlu0 %927, %v788
        %v929 = vpop.permute.xlu0 %928
        %v931 = vmul.f32 %v925, %v921
        %v932 = vmul.f32 %v929, %v922
        %v933 = vsel %vm513, %v931, 0.0
        %v934 = vsel %vm513, %v932, 0.0
        %v935 = vadd.f32 %v933, %v934
        %v936 = vrot.slane %v935, 4
        %v937 = vadd.f32 %v935, %v936
        %v938 = vrot.slane %v937, 2
        %v939 = vadd.f32 %v937, %v938
        %v940 = vrot.slane %v939, 1
        %v941 = vadd.f32 %v939, %v940
        %v942 = vlaneseq
        %v943 = vshrl.u32 %v942, 7
        %v944 = vsub.s32 3, %v943
        %v945 = vrot.slane %v688, %v944
        %v946 = vmul.f32 %v945, %v791
        %v947 = vmul.f32 %v945, %v792
        %v948 = vmul.f32 %v946, 1.442695
        %v949 = vpow.pop %v948
        %v950 = vmul.f32 %v947, 1.442695
        %v951 = vpow.pop %v950
        %952 = vset.pattern.permute.xlu0 3
        %953 = vperm.xlu0 %952, %v773
        %v954 = vpop.permute.xlu0 %953
        %956 = vset.pattern.permute.xlu0 3
        %957 = vperm.xlu0 %956, %v778
        %v958 = vpop.permute.xlu0 %957
        %v960 = vlaneseq
        %v961 = vshrl.u32 %v960, 7
        %v962 = vsub.s32 3, %v961
        %v963 = vrot.slane %v793, %v962
        %v964 = vmul.f32 %v954, %v963
        %v965 = vmul.f32 %v958, %v963
        %v966 = vmul.f32 %v949, %v921
        %v967 = vmul.f32 %v951, %v922
        %v968 = vadd.f32 %v966, %v964
        %v969 = vadd.f32 %v967, %v965
        %970 = vset.pattern.permute.xlu0 3
        %971 = vperm.xlu0 %970, %v783
        %v972 = vpop.permute.xlu0 %971
        %974 = vset.pattern.permute.xlu0 3
        %975 = vperm.xlu0 %974, %v788
        %v976 = vpop.permute.xlu0 %975
        %v978 = vmul.f32 %v972, %v968
        %v979 = vmul.f32 %v976, %v969
        %v980 = vsel %vm513, %v978, 0.0
        %v981 = vsel %vm513, %v979, 0.0
        %v982 = vadd.f32 %v980, %v981
        %v983 = vrot.slane %v982, 4
        %v984 = vadd.f32 %v982, %v983
        %v985 = vrot.slane %v984, 2
        %v986 = vadd.f32 %v984, %v985
        %v987 = vrot.slane %v986, 1
        %v988 = vadd.f32 %v986, %v987
        %v989 = vlaneseq
        %v990 = vshrl.u32 %v989, 7
        %v991 = vsub.s32 4, %v990
        %v992 = vrot.slane %v688, %v991
        %v993 = vmul.f32 %v992, %v791
        %v994 = vmul.f32 %v992, %v792
        %v995 = vmul.f32 %v993, 1.442695
        %v996 = vpow.pop %v995
        %v997 = vmul.f32 %v994, 1.442695
        %v998 = vpow.pop %v997
        %999 = vset.pattern.permute.xlu0 4
        %1000 = vperm.xlu0 %999, %v773
        %v1001 = vpop.permute.xlu0 %1000
        %1003 = vset.pattern.permute.xlu0 4
        %1004 = vperm.xlu0 %1003, %v778
        %v1005 = vpop.permute.xlu0 %1004
        %v1007 = vlaneseq
        %v1008 = vshrl.u32 %v1007, 7
        %v1009 = vsub.s32 4, %v1008
        %v1010 = vrot.slane %v793, %v1009
        %v1011 = vmul.f32 %v1001, %v1010
        %v1012 = vmul.f32 %v1005, %v1010
        %v1013 = vmul.f32 %v996, %v968
        %v1014 = vmul.f32 %v998, %v969
        %v1015 = vadd.f32 %v1013, %v1011
        %v1016 = vadd.f32 %v1014, %v1012
        %1017 = vset.pattern.permute.xlu0 4
        %1018 = vperm.xlu0 %1017, %v783
        %v1019 = vpop.permute.xlu0 %1018
        %1021 = vset.pattern.permute.xlu0 4
        %1022 = vperm.xlu0 %1021, %v788
        %v1023 = vpop.permute.xlu0 %1022
        %v1025 = vmul.f32 %v1019, %v1015
        %v1026 = vmul.f32 %v1023, %v1016
        %v1027 = vsel %vm513, %v1025, 0.0
        %v1028 = vsel %vm513, %v1026, 0.0
        %v1029 = vadd.f32 %v1027, %v1028
        %v1030 = vrot.slane %v1029, 4
        %v1031 = vadd.f32 %v1029, %v1030
        %v1032 = vrot.slane %v1031, 2
        %v1033 = vadd.f32 %v1031, %v1032
        %v1034 = vrot.slane %v1033, 1
        %v1035 = vadd.f32 %v1033, %v1034
        %v1036 = vlaneseq
        %v1037 = vshrl.u32 %v1036, 7
        %v1038 = vsub.s32 5, %v1037
        %v1039 = vrot.slane %v688, %v1038
        %v1040 = vmul.f32 %v1039, %v791
        %v1041 = vmul.f32 %v1039, %v792
        %v1042 = vmul.f32 %v1040, 1.442695
        %v1043 = vpow.pop %v1042
        %v1044 = vmul.f32 %v1041, 1.442695
        %v1045 = vpow.pop %v1044
        %1046 = vset.pattern.permute.xlu0 5
        %1047 = vperm.xlu0 %1046, %v773
        %v1048 = vpop.permute.xlu0 %1047
        %1050 = vset.pattern.permute.xlu0 5
        %1051 = vperm.xlu0 %1050, %v778
        %v1052 = vpop.permute.xlu0 %1051
        %v1054 = vlaneseq
        %v1055 = vshrl.u32 %v1054, 7
        %v1056 = vsub.s32 5, %v1055
        %v1057 = vrot.slane %v793, %v1056
        %v1058 = vmul.f32 %v1048, %v1057
        %v1059 = vmul.f32 %v1052, %v1057
        %v1060 = vmul.f32 %v1043, %v1015
        %v1061 = vmul.f32 %v1045, %v1016
        %v1062 = vadd.f32 %v1060, %v1058
        %v1063 = vadd.f32 %v1061, %v1059
        %1064 = vset.pattern.permute.xlu0 5
        %1065 = vperm.xlu0 %1064, %v783
        %v1066 = vpop.permute.xlu0 %1065
        %1068 = vset.pattern.permute.xlu0 5
        %1069 = vperm.xlu0 %1068, %v788
        %v1070 = vpop.permute.xlu0 %1069
        %v1072 = vmul.f32 %v1066, %v1062
        %v1073 = vmul.f32 %v1070, %v1063
        %v1074 = vsel %vm513, %v1072, 0.0
        %v1075 = vsel %vm513, %v1073, 0.0
        %v1076 = vadd.f32 %v1074, %v1075
        %v1077 = vrot.slane %v1076, 4
        %v1078 = vadd.f32 %v1076, %v1077
        %v1079 = vrot.slane %v1078, 2
        %v1080 = vadd.f32 %v1078, %v1079
        %v1081 = vrot.slane %v1080, 1
        %v1082 = vadd.f32 %v1080, %v1081
        %v1083 = vlaneseq
        %v1084 = vshrl.u32 %v1083, 7
        %v1085 = vsub.s32 6, %v1084
        %v1086 = vrot.slane %v688, %v1085
        %v1087 = vmul.f32 %v1086, %v791
        %v1088 = vmul.f32 %v1086, %v792
        %v1089 = vmul.f32 %v1087, 1.442695
        %v1090 = vpow.pop %v1089
        %v1091 = vmul.f32 %v1088, 1.442695
        %v1092 = vpow.pop %v1091
        %1093 = vset.pattern.permute.xlu0 6
        %1094 = vperm.xlu0 %1093, %v773
        %v1095 = vpop.permute.xlu0 %1094
        %1097 = vset.pattern.permute.xlu0 6
        %1098 = vperm.xlu0 %1097, %v778
        %v1099 = vpop.permute.xlu0 %1098
        %v1101 = vlaneseq
        %v1102 = vshrl.u32 %v1101, 7
        %v1103 = vsub.s32 6, %v1102
        %v1104 = vrot.slane %v793, %v1103
        %v1105 = vmul.f32 %v1095, %v1104
        %v1106 = vmul.f32 %v1099, %v1104
        %v1107 = vmul.f32 %v1090, %v1062
        %v1108 = vmul.f32 %v1092, %v1063
        %v1109 = vadd.f32 %v1107, %v1105
        %v1110 = vadd.f32 %v1108, %v1106
        %1111 = vset.pattern.permute.xlu0 6
        %1112 = vperm.xlu0 %1111, %v783
        %v1113 = vpop.permute.xlu0 %1112
        %1115 = vset.pattern.permute.xlu0 6
        %1116 = vperm.xlu0 %1115, %v788
        %v1117 = vpop.permute.xlu0 %1116
        %v1119 = vmul.f32 %v1113, %v1109
        %v1120 = vmul.f32 %v1117, %v1110
        %v1121 = vsel %vm513, %v1119, 0.0
        %v1122 = vsel %vm513, %v1120, 0.0
        %v1123 = vadd.f32 %v1121, %v1122
        %v1124 = vrot.slane %v1123, 4
        %v1125 = vadd.f32 %v1123, %v1124
        %v1126 = vrot.slane %v1125, 2
        %v1127 = vadd.f32 %v1125, %v1126
        %v1128 = vrot.slane %v1127, 1
        %v1129 = vadd.f32 %v1127, %v1128
        %v1130 = vlaneseq
        %v1131 = vshrl.u32 %v1130, 7
        %v1132 = vsub.s32 7, %v1131
        %v1133 = vrot.slane %v688, %v1132
        %v1134 = vmul.f32 %v1133, %v791
        %v1135 = vmul.f32 %v1133, %v792
        %v1136 = vmul.f32 %v1134, 1.442695
        %v1137 = vpow.pop %v1136
        %v1138 = vmul.f32 %v1135, 1.442695
        %v1139 = vpow.pop %v1138
        %1140 = vset.pattern.permute.xlu0 7
        %1141 = vperm.xlu0 %1140, %v773
        %v1142 = vpop.permute.xlu0 %1141
        %1144 = vset.pattern.permute.xlu0 7
        %1145 = vperm.xlu0 %1144, %v778
        %v1146 = vpop.permute.xlu0 %1145
        %v1148 = vlaneseq
        %v1149 = vshrl.u32 %v1148, 7
        %v1150 = vsub.s32 7, %v1149
        %v1151 = vrot.slane %v793, %v1150
        %v1152 = vmul.f32 %v1142, %v1151
        %v1153 = vmul.f32 %v1146, %v1151
        %v1154 = vmul.f32 %v1137, %v1109
        %v1155 = vmul.f32 %v1139, %v1110
        %v1156 = vadd.f32 %v1154, %v1152
        %v1157 = vadd.f32 %v1155, %v1153
        %1158 = vset.pattern.permute.xlu0 7
        %1159 = vperm.xlu0 %1158, %v783
        %v1160 = vpop.permute.xlu0 %1159
        %1162 = vset.pattern.permute.xlu0 7
        %1163 = vperm.xlu0 %1162, %v788
        %v1164 = vpop.permute.xlu0 %1163
        %v1166 = vmul.f32 %v1160, %v1156
        %v1167 = vmul.f32 %v1164, %v1157
        %v1168 = vsel %vm513, %v1166, 0.0
        %v1169 = vsel %vm513, %v1167, 0.0
        %v1170 = vadd.f32 %v1168, %v1169
        %v1171 = vrot.slane %v1170, 4
        %v1172 = vadd.f32 %v1170, %v1171
        %v1173 = vrot.slane %v1172, 2
        %v1174 = vadd.f32 %v1172, %v1173
        %v1175 = vrot.slane %v1174, 1
        %v1176 = vadd.f32 %v1174, %v1175
        %v1177 = vlaneseq
        %v1178 = vshrl.u32 %v1177, 7
        %v1179 = vsub.s32 0, %v1178
        %v1180 = vrot.slane %v689, %v1179
        %v1181 = vmul.f32 %v1180, %v791
        %v1182 = vmul.f32 %v1180, %v792
        %v1183 = vmul.f32 %v1181, 1.442695
        %v1184 = vpow.pop %v1183
        %v1185 = vmul.f32 %v1182, 1.442695
        %v1186 = vpow.pop %v1185
        %1187 = vset.pattern.permute.xlu0 8
        %1188 = vperm.xlu0 %1187, %v773
        %v1189 = vpop.permute.xlu0 %1188
        %1191 = vset.pattern.permute.xlu0 8
        %1192 = vperm.xlu0 %1191, %v778
        %v1193 = vpop.permute.xlu0 %1192
        %v1195 = vlaneseq
        %v1196 = vshrl.u32 %v1195, 7
        %v1197 = vsub.s32 0, %v1196
        %v1198 = vrot.slane %v794, %v1197
        %v1199 = vmul.f32 %v1189, %v1198
        %v1200 = vmul.f32 %v1193, %v1198
        %v1201 = vmul.f32 %v1184, %v1156
        %v1202 = vmul.f32 %v1186, %v1157
        %v1203 = vadd.f32 %v1201, %v1199
        %v1204 = vadd.f32 %v1202, %v1200
        %1205 = vset.pattern.permute.xlu0 8
        %1206 = vperm.xlu0 %1205, %v783
        %v1207 = vpop.permute.xlu0 %1206
        %1209 = vset.pattern.permute.xlu0 8
        %1210 = vperm.xlu0 %1209, %v788
        %v1211 = vpop.permute.xlu0 %1210
        %v1213 = vmul.f32 %v1207, %v1203
        %v1214 = vmul.f32 %v1211, %v1204
        %v1215 = vsel %vm513, %v1213, 0.0
        %v1216 = vsel %vm513, %v1214, 0.0
        %v1217 = vadd.f32 %v1215, %v1216
        %v1218 = vrot.slane %v1217, 4
        %v1219 = vadd.f32 %v1217, %v1218
        %v1220 = vrot.slane %v1219, 2
        %v1221 = vadd.f32 %v1219, %v1220
        %v1222 = vrot.slane %v1221, 1
        %v1223 = vadd.f32 %v1221, %v1222
        %v1224 = vlaneseq
        %v1225 = vshrl.u32 %v1224, 7
        %v1226 = vsub.s32 1, %v1225
        %v1227 = vrot.slane %v689, %v1226
        %v1228 = vmul.f32 %v1227, %v791
        %v1229 = vmul.f32 %v1227, %v792
        %v1230 = vmul.f32 %v1228, 1.442695
        %v1231 = vpow.pop %v1230
        %v1232 = vmul.f32 %v1229, 1.442695
        %v1233 = vpow.pop %v1232
        %1234 = vset.pattern.permute.xlu0 9
        %1235 = vperm.xlu0 %1234, %v773
        %v1236 = vpop.permute.xlu0 %1235
        %1238 = vset.pattern.permute.xlu0 9
        %1239 = vperm.xlu0 %1238, %v778
        %v1240 = vpop.permute.xlu0 %1239
        %v1242 = vlaneseq
        %v1243 = vshrl.u32 %v1242, 7
        %v1244 = vsub.s32 1, %v1243
        %v1245 = vrot.slane %v794, %v1244
        %v1246 = vmul.f32 %v1236, %v1245
        %v1247 = vmul.f32 %v1240, %v1245
        %v1248 = vmul.f32 %v1231, %v1203
        %v1249 = vmul.f32 %v1233, %v1204
        %v1250 = vadd.f32 %v1248, %v1246
        %v1251 = vadd.f32 %v1249, %v1247
        %1252 = vset.pattern.permute.xlu0 9
        %1253 = vperm.xlu0 %1252, %v783
        %v1254 = vpop.permute.xlu0 %1253
        %1256 = vset.pattern.permute.xlu0 9
        %1257 = vperm.xlu0 %1256, %v788
        %v1258 = vpop.permute.xlu0 %1257
        %v1260 = vmul.f32 %v1254, %v1250
        %v1261 = vmul.f32 %v1258, %v1251
        %v1262 = vsel %vm513, %v1260, 0.0
        %v1263 = vsel %vm513, %v1261, 0.0
        %v1264 = vadd.f32 %v1262, %v1263
        %v1265 = vrot.slane %v1264, 4
        %v1266 = vadd.f32 %v1264, %v1265
        %v1267 = vrot.slane %v1266, 2
        %v1268 = vadd.f32 %v1266, %v1267
        %v1269 = vrot.slane %v1268, 1
        %v1270 = vadd.f32 %v1268, %v1269
        %v1271 = vlaneseq
        %v1272 = vshrl.u32 %v1271, 7
        %v1273 = vsub.s32 2, %v1272
        %v1274 = vrot.slane %v689, %v1273
        %v1275 = vmul.f32 %v1274, %v791
        %v1276 = vmul.f32 %v1274, %v792
        %v1277 = vmul.f32 %v1275, 1.442695
        %v1278 = vpow.pop %v1277
        %v1279 = vmul.f32 %v1276, 1.442695
        %v1280 = vpow.pop %v1279
        %1281 = vset.pattern.permute.xlu0 10
        %1282 = vperm.xlu0 %1281, %v773
        %v1283 = vpop.permute.xlu0 %1282
        %1285 = vset.pattern.permute.xlu0 10
        %1286 = vperm.xlu0 %1285, %v778
        %v1287 = vpop.permute.xlu0 %1286
        %v1289 = vlaneseq
        %v1290 = vshrl.u32 %v1289, 7
        %v1291 = vsub.s32 2, %v1290
        %v1292 = vrot.slane %v794, %v1291
        %v1293 = vmul.f32 %v1283, %v1292
        %v1294 = vmul.f32 %v1287, %v1292
        %v1295 = vmul.f32 %v1278, %v1250
        %v1296 = vmul.f32 %v1280, %v1251
        %v1297 = vadd.f32 %v1295, %v1293
        %v1298 = vadd.f32 %v1296, %v1294
        %1299 = vset.pattern.permute.xlu0 10
        %1300 = vperm.xlu0 %1299, %v783
        %v1301 = vpop.permute.xlu0 %1300
        %1303 = vset.pattern.permute.xlu0 10
        %1304 = vperm.xlu0 %1303, %v788
        %v1305 = vpop.permute.xlu0 %1304
        %v1307 = vmul.f32 %v1301, %v1297
        %v1308 = vmul.f32 %v1305, %v1298
        %v1309 = vsel %vm513, %v1307, 0.0
        %v1310 = vsel %vm513, %v1308, 0.0
        %v1311 = vadd.f32 %v1309, %v1310
        %v1312 = vrot.slane %v1311, 4
        %v1313 = vadd.f32 %v1311, %v1312
        %v1314 = vrot.slane %v1313, 2
        %v1315 = vadd.f32 %v1313, %v1314
        %v1316 = vrot.slane %v1315, 1
        %v1317 = vadd.f32 %v1315, %v1316
        %v1318 = vlaneseq
        %v1319 = vshrl.u32 %v1318, 7
        %v1320 = vsub.s32 3, %v1319
        %v1321 = vrot.slane %v689, %v1320
        %v1322 = vmul.f32 %v1321, %v791
        %v1323 = vmul.f32 %v1321, %v792
        %v1324 = vmul.f32 %v1322, 1.442695
        %v1325 = vpow.pop %v1324
        %v1326 = vmul.f32 %v1323, 1.442695
        %v1327 = vpow.pop %v1326
        %1328 = vset.pattern.permute.xlu0 11
        %1329 = vperm.xlu0 %1328, %v773
        %v1330 = vpop.permute.xlu0 %1329
        %1332 = vset.pattern.permute.xlu0 11
        %1333 = vperm.xlu0 %1332, %v778
        %v1334 = vpop.permute.xlu0 %1333
        %v1336 = vlaneseq
        %v1337 = vshrl.u32 %v1336, 7
        %v1338 = vsub.s32 3, %v1337
        %v1339 = vrot.slane %v794, %v1338
        %v1340 = vmul.f32 %v1330, %v1339
        %v1341 = vmul.f32 %v1334, %v1339
        %v1342 = vmul.f32 %v1325, %v1297
        %v1343 = vmul.f32 %v1327, %v1298
        %v1344 = vadd.f32 %v1342, %v1340
        %v1345 = vadd.f32 %v1343, %v1341
        %1346 = vset.pattern.permute.xlu0 11
        %1347 = vperm.xlu0 %1346, %v783
        %v1348 = vpop.permute.xlu0 %1347
        %1350 = vset.pattern.permute.xlu0 11
        %1351 = vperm.xlu0 %1350, %v788
        %v1352 = vpop.permute.xlu0 %1351
        %v1354 = vmul.f32 %v1348, %v1344
        %v1355 = vmul.f32 %v1352, %v1345
        %v1356 = vsel %vm513, %v1354, 0.0
        %v1357 = vsel %vm513, %v1355, 0.0
        %v1358 = vadd.f32 %v1356, %v1357
        %v1359 = vrot.slane %v1358, 4
        %v1360 = vadd.f32 %v1358, %v1359
        %v1361 = vrot.slane %v1360, 2
        %v1362 = vadd.f32 %v1360, %v1361
        %v1363 = vrot.slane %v1362, 1
        %v1364 = vadd.f32 %v1362, %v1363
        %v1365 = vlaneseq
        %v1366 = vshrl.u32 %v1365, 7
        %v1367 = vsub.s32 4, %v1366
        %v1368 = vrot.slane %v689, %v1367
        %v1369 = vmul.f32 %v1368, %v791
        %v1370 = vmul.f32 %v1368, %v792
        %v1371 = vmul.f32 %v1369, 1.442695
        %v1372 = vpow.pop %v1371
        %v1373 = vmul.f32 %v1370, 1.442695
        %v1374 = vpow.pop %v1373
        %1375 = vset.pattern.permute.xlu0 12
        %1376 = vperm.xlu0 %1375, %v773
        %v1377 = vpop.permute.xlu0 %1376
        %1379 = vset.pattern.permute.xlu0 12
        %1380 = vperm.xlu0 %1379, %v778
        %v1381 = vpop.permute.xlu0 %1380
        %v1383 = vlaneseq
        %v1384 = vshrl.u32 %v1383, 7
        %v1385 = vsub.s32 4, %v1384
        %v1386 = vrot.slane %v794, %v1385
        %v1387 = vmul.f32 %v1377, %v1386
        %v1388 = vmul.f32 %v1381, %v1386
        %v1389 = vmul.f32 %v1372, %v1344
        %v1390 = vmul.f32 %v1374, %v1345
        %v1391 = vadd.f32 %v1389, %v1387
        %v1392 = vadd.f32 %v1390, %v1388
        %1393 = vset.pattern.permute.xlu0 12
        %1394 = vperm.xlu0 %1393, %v783
        %v1395 = vpop.permute.xlu0 %1394
        %1397 = vset.pattern.permute.xlu0 12
        %1398 = vperm.xlu0 %1397, %v788
        %v1399 = vpop.permute.xlu0 %1398
        %v1401 = vmul.f32 %v1395, %v1391
        %v1402 = vmul.f32 %v1399, %v1392
        %v1403 = vsel %vm513, %v1401, 0.0
        %v1404 = vsel %vm513, %v1402, 0.0
        %v1405 = vadd.f32 %v1403, %v1404
        %v1406 = vrot.slane %v1405, 4
        %v1407 = vadd.f32 %v1405, %v1406
        %v1408 = vrot.slane %v1407, 2
        %v1409 = vadd.f32 %v1407, %v1408
        %v1410 = vrot.slane %v1409, 1
        %v1411 = vadd.f32 %v1409, %v1410
        %v1412 = vlaneseq
        %v1413 = vshrl.u32 %v1412, 7
        %v1414 = vsub.s32 5, %v1413
        %v1415 = vrot.slane %v689, %v1414
        %v1416 = vmul.f32 %v1415, %v791
        %v1417 = vmul.f32 %v1415, %v792
        %v1418 = vmul.f32 %v1416, 1.442695
        %v1419 = vpow.pop %v1418
        %v1420 = vmul.f32 %v1417, 1.442695
        %v1421 = vpow.pop %v1420
        %1422 = vset.pattern.permute.xlu0 13
        %1423 = vperm.xlu0 %1422, %v773
        %v1424 = vpop.permute.xlu0 %1423
        %1426 = vset.pattern.permute.xlu0 13
        %1427 = vperm.xlu0 %1426, %v778
        %v1428 = vpop.permute.xlu0 %1427
        %v1430 = vlaneseq
        %v1431 = vshrl.u32 %v1430, 7
        %v1432 = vsub.s32 5, %v1431
        %v1433 = vrot.slane %v794, %v1432
        %v1434 = vmul.f32 %v1424, %v1433
        %v1435 = vmul.f32 %v1428, %v1433
        %v1436 = vmul.f32 %v1419, %v1391
        %v1437 = vmul.f32 %v1421, %v1392
        %v1438 = vadd.f32 %v1436, %v1434
        %v1439 = vadd.f32 %v1437, %v1435
        %1440 = vset.pattern.permute.xlu0 13
        %1441 = vperm.xlu0 %1440, %v783
        %v1442 = vpop.permute.xlu0 %1441
        %1444 = vset.pattern.permute.xlu0 13
        %1445 = vperm.xlu0 %1444, %v788
        %v1446 = vpop.permute.xlu0 %1445
        %v1448 = vmul.f32 %v1442, %v1438
        %v1449 = vmul.f32 %v1446, %v1439
        %v1450 = vsel %vm513, %v1448, 0.0
        %v1451 = vsel %vm513, %v1449, 0.0
        %v1452 = vadd.f32 %v1450, %v1451
        %v1453 = vrot.slane %v1452, 4
        %v1454 = vadd.f32 %v1452, %v1453
        %v1455 = vrot.slane %v1454, 2
        %v1456 = vadd.f32 %v1454, %v1455
        %v1457 = vrot.slane %v1456, 1
        %v1458 = vadd.f32 %v1456, %v1457
        %v1459 = vlaneseq
        %v1460 = vshrl.u32 %v1459, 7
        %v1461 = vsub.s32 6, %v1460
        %v1462 = vrot.slane %v689, %v1461
        %v1463 = vmul.f32 %v1462, %v791
        %v1464 = vmul.f32 %v1462, %v792
        %v1465 = vmul.f32 %v1463, 1.442695
        %v1466 = vpow.pop %v1465
        %v1467 = vmul.f32 %v1464, 1.442695
        %v1468 = vpow.pop %v1467
        %1469 = vset.pattern.permute.xlu0 14
        %1470 = vperm.xlu0 %1469, %v773
        %v1471 = vpop.permute.xlu0 %1470
        %1473 = vset.pattern.permute.xlu0 14
        %1474 = vperm.xlu0 %1473, %v778
        %v1475 = vpop.permute.xlu0 %1474
        %v1477 = vlaneseq
        %v1478 = vshrl.u32 %v1477, 7
        %v1479 = vsub.s32 6, %v1478
        %v1480 = vrot.slane %v794, %v1479
        %v1481 = vmul.f32 %v1471, %v1480
        %v1482 = vmul.f32 %v1475, %v1480
        %v1483 = vmul.f32 %v1466, %v1438
        %v1484 = vmul.f32 %v1468, %v1439
        %v1485 = vadd.f32 %v1483, %v1481
        %v1486 = vadd.f32 %v1484, %v1482
        %1487 = vset.pattern.permute.xlu0 14
        %1488 = vperm.xlu0 %1487, %v783
        %v1489 = vpop.permute.xlu0 %1488
        %1491 = vset.pattern.permute.xlu0 14
        %1492 = vperm.xlu0 %1491, %v788
        %v1493 = vpop.permute.xlu0 %1492
        %v1495 = vmul.f32 %v1489, %v1485
        %v1496 = vmul.f32 %v1493, %v1486
        %v1497 = vsel %vm513, %v1495, 0.0
        %v1498 = vsel %vm513, %v1496, 0.0
        %v1499 = vadd.f32 %v1497, %v1498
        %v1500 = vrot.slane %v1499, 4
        %v1501 = vadd.f32 %v1499, %v1500
        %v1502 = vrot.slane %v1501, 2
        %v1503 = vadd.f32 %v1501, %v1502
        %v1504 = vrot.slane %v1503, 1
        %v1505 = vadd.f32 %v1503, %v1504
        %v1506 = vlaneseq
        %v1507 = vshrl.u32 %v1506, 7
        %v1508 = vsub.s32 7, %v1507
        %v1509 = vrot.slane %v689, %v1508
        %v1510 = vmul.f32 %v1509, %v791
        %v1511 = vmul.f32 %v1509, %v792
        %v1512 = vmul.f32 %v1510, 1.442695
        %v1513 = vpow.pop %v1512
        %v1514 = vmul.f32 %v1511, 1.442695
        %v1515 = vpow.pop %v1514
        %1516 = vset.pattern.permute.xlu0 15
        %1517 = vperm.xlu0 %1516, %v773
        %v1518 = vpop.permute.xlu0 %1517
        %1520 = vset.pattern.permute.xlu0 15
        %1521 = vperm.xlu0 %1520, %v778
        %v1522 = vpop.permute.xlu0 %1521
        %v1524 = vlaneseq
        %v1525 = vshrl.u32 %v1524, 7
        %v1526 = vsub.s32 7, %v1525
        %v1527 = vrot.slane %v794, %v1526
        %v1528 = vmul.f32 %v1518, %v1527
        %v1529 = vmul.f32 %v1522, %v1527
        %v1530 = vmul.f32 %v1513, %v1485
        %v1531 = vmul.f32 %v1515, %v1486
        %v1532 = vadd.f32 %v1530, %v1528
        %v1533 = vadd.f32 %v1531, %v1529
        %1534 = vset.pattern.permute.xlu0 15
        %1535 = vperm.xlu0 %1534, %v783
        %v1536 = vpop.permute.xlu0 %1535
        %1538 = vset.pattern.permute.xlu0 15
        %1539 = vperm.xlu0 %1538, %v788
        %v1540 = vpop.permute.xlu0 %1539
        %v1542 = vmul.f32 %v1536, %v1532
        %v1543 = vmul.f32 %v1540, %v1533
        %v1544 = vsel %vm513, %v1542, 0.0
        %v1545 = vsel %vm513, %v1543, 0.0
        %v1546 = vadd.f32 %v1544, %v1545
        %v1547 = vrot.slane %v1546, 4
        %v1548 = vadd.f32 %v1546, %v1547
        %v1549 = vrot.slane %v1548, 2
        %v1550 = vadd.f32 %v1548, %v1549
        %v1551 = vrot.slane %v1550, 1
        %v1552 = vadd.f32 %v1550, %v1551
        %1553 = vst.msk [vmem:[#allocation3] sm:$0xff] %vm513, %v1532
        %1554 = vst.msk [vmem:[#allocation3 + $0x8] sm:$0xff] %vm513, %v1533
        %vm1555 = vcmask 1040384
        %v1556 = vsel %vm1555, %v847, %v894
        %vm1557 = vcmask 1041408
        %v1558 = vsel %vm1557, %v1556, %v941
        %vm1559 = vcmask 1042432
        %v1560 = vsel %vm1559, %v1558, %v988
        %vm1561 = vcmask 1043456
        %v1562 = vsel %vm1561, %v1560, %v1035
        %vm1563 = vcmask 1044480
        %v1564 = vsel %vm1563, %v1562, %v1082
        %vm1565 = vcmask 1045504
        %v1566 = vsel %vm1565, %v1564, %v1129
        %vm1567 = vcmask 1046528
        %v1568 = vsel %vm1567, %v1566, %v1176
        %v1569 = vsel %vm1555, %v1223, %v1270
        %v1570 = vsel %vm1557, %v1569, %v1317
        %v1571 = vsel %vm1559, %v1570, %v1364
        %v1572 = vsel %vm1561, %v1571, %v1411
        %v1573 = vsel %vm1563, %v1572, %v1458
        %v1574 = vsel %vm1565, %v1573, %v1505
        %v1575 = vsel %vm1567, %v1574, %v1552
        %v1576 = vld [vmem:[%s7] sm:$0x1]
        %v1578 = vlaneseq
        %v1579 = vshrl.u32 %v1578, 7
        %v1580 = vsub.s32 0, %v1579
        %v1581 = vrot.slane %v1576, %v1580
        %v1583 = vmul.f32 %v577, %v1581
        %v1584 = vmul.f32 %v578, %v1581
        %v1585 = vadd.f32 %v1568, %v1583
        %v1586 = vadd.f32 %v1575, %v1584
        %1589 = vrot.lane.b32.xlu0 %v511, 64
        %v1590 = vpop.permute.xlu0 %1589
        %1591 = vrot.lane.b32.xlu0 %v512, 64
        %v1592 = vpop.permute.xlu0 %1591
        %v1595 = vmul.f32 %v1585, %v1590
        %v1596 = vmul.f32 %v1586, %v1592
        %v1597 = vld [vmem:[%s8] sm:$0xff]
        %v1598 = vld [vmem:[%s8 + $0x8] sm:$0xff]
        %v1599 = vld [vmem:[%s8 + $0x10] sm:$0xff]
        %v1600 = vld [vmem:[%s8 + $0x18] sm:$0xff]
        %v1601 = vld [vmem:[%s8 + $0x20] sm:$0xff]
        %v1602 = vld [vmem:[%s8 + $0x28] sm:$0xff]
        %v1603 = vld [vmem:[%s8 + $0x30] sm:$0xff]
        %v1604 = vld [vmem:[%s8 + $0x38] sm:$0xff]
        %v1606 = vsel %vm513, %v1595, 0
        %v1609 = vsel %vm513, %v1596, 0
        %1611 = vmatprep.subr.mxu0 0.0
        %1612 = vmatpush1.msra.mxu0 %v1597
        %1613 = vmatprep.subr.mxu0 0.0
        %1614 = vmatpush1.msra.mxu0 %v1598
        %1615 = vmatprep.subr.mxu0 0.0
        %1616 = vmatpush1.msra.mxu0 %v1599
        %1617 = vmatprep.subr.mxu0 0.0
        %1618 = vmatpush1.msra.mxu0 %v1600
        %1619 = vmatprep.subr.mxu0 0.0
        %1620 = vmatpush1.msra.mxu0 %v1601
        %1621 = vmatprep.subr.mxu0 0.0
        %1622 = vmatpush1.msra.mxu0 %v1602
        %1623 = vmatprep.subr.mxu0 0.0
        %1624 = vmatpush1.msra.mxu0 %v1603
        %1625 = vmatprep.subr.mxu0 0.0
        %1626 = vmatpush1.msra.mxu0 %v1604
        %1627 = vmatprep.subr.mxu0 0.0
        %1628 = vmatpush1.msra.mxu0 0.0
        %1629 = vmatprep.subr.mxu0 0.0
        %1630 = vmatpush1.msra.mxu0 0.0
        %1631 = vmatprep.subr.mxu0 0.0
        %1632 = vmatpush1.msra.mxu0 0.0
        %1633 = vmatprep.subr.mxu0 0.0
        %1634 = vmatpush1.msra.mxu0 0.0
        %1635 = vmatprep.subr.mxu0 0.0
        %1636 = vmatpush1.msra.mxu0 0.0
        %1637 = vmatprep.subr.mxu0 0.0
        %1638 = vmatpush1.msra.mxu0 0.0
        %1639 = vmatprep.subr.mxu0 0.0
        %1640 = vmatpush1.msra.mxu0 0.0
        %1641 = vmatprep.subr.mxu0 0.0
        %1642 = vmatpush1.msra.mxu0 0.0
        %1643 = vmatprep.subr.mxu0 0.0
        %1644 = vmatpush1.msra.mxu0 0.0
        %1645 = vmatprep.subr.mxu0 0.0
        %1646 = vmatpush1.msra.mxu0 0.0
        %1647 = vmatprep.subr.mxu0 0.0
        %1648 = vmatpush1.msra.mxu0 0.0
        %1649 = vmatprep.subr.mxu0 0.0
        %1650 = vmatpush1.msra.mxu0 0.0
        %1651 = vmatprep.subr.mxu0 0.0
        %1652 = vmatpush1.msra.mxu0 0.0
        %1653 = vmatprep.subr.mxu0 0.0
        %1654 = vmatpush1.msra.mxu0 0.0
        %1655 = vmatprep.subr.mxu0 0.0
        %1656 = vmatpush1.msra.mxu0 0.0
        %1657 = vmatprep.subr.mxu0 0.0
        %1658 = vmatpush1.msra.mxu0 0.0
        %1659 = vmatprep.subr.mxu0 0.0
        %1660 = vmatpush1.msra.mxu0 0.0
        %1661 = vmatprep.subr.mxu0 0.0
        %1662 = vmatpush1.msra.mxu0 0.0
        %1663 = vmatprep.subr.mxu0 0.0
        %1664 = vmatpush1.msra.mxu0 0.0
        %1665 = vmatprep.subr.mxu0 0.0
        %1666 = vmatpush1.msra.mxu0 0.0
        %1667 = vmatprep.subr.mxu0 0.0
        %1668 = vmatpush1.msra.mxu0 0.0
        %1669 = vmatprep.subr.mxu0 0.0
        %1670 = vmatpush1.msra.mxu0 0.0
        %1671 = vmatprep.subr.mxu0 0.0
        %1672 = vmatpush1.msra.mxu0 0.0
        %1673 = vmatprep.subr.mxu0 0.0
        %1674 = vmatpush1.msra.mxu0 0.0
        %1675 = vmatprep.mubr.f32.mxu0 0.0
        %1676 = vmatmul.mubr.f32.gmra.mrb[0].mxu0 %v1606
        %v1677 = vpop.f32.mrb[0].mxu0
        %v1678 = vadd.f32 0.0, %v1677
        %v1679 = vpop.f32.mrb[0].mxu0
        %1680 = vmatprep.mubr.f32.mxu0 0.0
        %1681 = vmatmul.mubr.f32.gmra.mrb[0].mxu0 %v1609
        %v1682 = vpop.f32.mrb[0].mxu0
        %v1683 = vadd.f32 0.0, %v1682
        %v1684 = vpop.f32.mrb[0].mxu0
        %1685 = vdwg.mxu0
        %1686 = vst.msk [vmem:[%s392] sm:$0xff] %vm419, %v1678
        %1687 = vst.msk [vmem:[%s392 + $0x8] sm:$0xff] %vm419, %v1683
        %s1688 = sand.u32 %s243, 1
        %s1689 = scalar_lea.sflag [#allocation6], %s1688
        %s1690 = sand.u32 %s243, 1
        %s1691 = smul.addr %s1690, 16
        %s1692 = scalar_lea.vmem [#allocation10], %s1691
        // Predicated region
        $region73: #{tpu_custom_call.1} parent=55 // pred_check
          %p1693 = pneg %p253
        $region74: #{tpu_custom_call.1} parent=55 // pred_check_branch
          %1695 = sbr.rel (%p1693) target = $region76
        $region75: #{tpu_custom_call.1} parent=55 // pred_region
          %s1696 = smul.u32 2, %s30
          %s1698 = ssub.s32 256, 256
          %1699 = vsyncadd %s1689, %s1698
          %s1700 = smul.addr %s29, 4
          %s1701 = sadd.s32 %s1696, %s1700
          %s1702 = smul.addr %s1701, 128
          %s1703 = scalar_lea.hbm %s9, %s1702
          %s1704 = sshll.u32 %s1692, 4
          %s1705 = int_to_ptr.vmem [resolvable:$true] %s1704
          %1710 = dma.vmem_to_hbm [thread:$0]  %s1705, 256, %s1703, %s1689, 128, 128, 8
        $region76: #{tpu_custom_call.1} parent=55 // pred_fallthru
          _
      $region56: #{tpu_custom_call.1} parent=5 // pred_fallthru
        _
      %p1711 = scmp.le.s32.totalorder 2, %s20
      // Predicated region
      $region77: #{tpu_custom_call.1} parent=5 // pred_check
        %p1712 = pneg %p1711
      $region78: #{tpu_custom_call.1} parent=5 // pred_check_branch
        %1714 = sbr.rel (%p1712) target = $region80
      $region79: #{tpu_custom_call.1} parent=5 // pred_region
        %s1715 = ssub.s32 %s20, 2
        // Predicated region
        $region81: #{tpu_custom_call.1} parent=79 // pred_check
          %p1716 = pneg %p259
        $region82: #{tpu_custom_call.1} parent=79 // pred_check_branch
          %1718 = sbr.rel (%p1716) target = $region84
        $region83: #{tpu_custom_call.1} parent=79 // pred_region
          %s1719 = sand.u32 %s244, 1
          %s1720 = scalar_lea.sflag [#allocation6], %s1719
          %s1721 = sand.u32 %s244, 1
          %s1722 = smul.addr %s1721, 16
          %s1723 = scalar_lea.vmem [#allocation10], %s1722
          %1724 = dma.done %s1720, 256
        $region84: #{tpu_custom_call.1} parent=79 // pred_fallthru
          _
      $region80: #{tpu_custom_call.1} parent=5 // pred_fallthru
        _
    $region6: #{tpu_custom_call.1} parent=1 // loop_footer
      %s24 = sadd.s32 1, %s20
    $region7: #{tpu_custom_call.1} parent=1 // loop_footer_branch
      %19 = sbr.rel target = $region3
    $region8: #{tpu_custom_call.1} parent=1 // loop_exit
      _
    %1725 = vsyncpa [#allocation5], 1
    %s1726 = scalar_lea.sflag [#allocation5], 1
    %1727 = vsyncpa %s1726, 1
    %1728 = vsyncpa [#allocation8], 1
    %1729 = vsyncpa [#allocation6], 1
    %s1730 = scalar_lea.sflag [#allocation6], 1
    %1731 = vsyncpa %s1730, 1

// kernel: tpu_custom_call.1
$region0: #{tpu_custom_call.1}
  #allocation0 [shape = 'u32[]', space=smem, size = 0x4, offset = 0x4, fixed_abs, tag = 'smem constant byte address 0x4 - core index']
  #allocation1 [shape = 'u32[144,128]{1,0:T(1,128)}', space=vmem, size = 0x12000, scoped, tag = 'internal scratch']
  #allocation2 [shape = 'f32[19,64]{1,0:T(8,128)}', space=vmem, size = 0x3000, scoped, tag = 'scratch operand']
  #allocation3 [shape = 'f32[16,64]{1,0:T(8,128)}', space=vmem, size = 0x2000, scoped, tag = 'scratch operand']
  %s0 = inlined_call_operand.vmem [shape: f32[2,32,32], index: 0, kind: input, shape index: {}]
  %s1 = inlined_call_operand.vmem [shape: f32[32,128], index: 1, kind: input, shape index: {}]
  %s2 = inlined_call_operand.hbm [shape: f32[4,64], index: 2, kind: input, shape index: {}]
  %s3 = inlined_call_operand.vmem [shape: f32[1,64], index: 3, kind: input, shape index: {}]
  %s4 = inlined_call_operand.hbm [shape: f32[64,64], index: 4, kind: input, shape index: {}]
  %s5 = inlined_call_operand.hbm [shape: f32[32,64], index: 5, kind: input, shape index: {}]
  %s6 = inlined_call_operand.vmem [shape: f32[16,64], index: 6, kind: input, shape index: {}]
  %s7 = inlined_call_operand.vmem [shape: f32[1,64], index: 7, kind: input, shape index: {}]
  %s8 = inlined_call_operand.vmem [shape: f32[64,32], index: 8, kind: input, shape index: {}]
  %s9 = inlined_call_operand.hbm [shape: f32[2,32,32], index: 9, kind: output, shape index: {}]
  %s10 = sld [smem:[#allocation0]]
  $region85: #{tpu_custom_call.1} parent=0
    _
  %s12 = ssub.s32 1, %s10
  %s13 = scalar_select 0, %s12, %s10
  $region1: #{tpu_custom_call.1} parent=0
    #allocation4 [shape = 'u8[2048]{0}', space=vmem, size = 0x800, scoped, tag = 'input window, operand 2, single buffered']
    #allocation5 [shape = 's32[2]{0}', space=sflag, size = 0x8, scoped, tag = 'scoped memory for tpu_custom_call.1']
    #allocation6 [shape = 's32[2]{0}', space=sflag, size = 0x8, scoped, tag = 'scoped memory for tpu_custom_call.1']
    #allocation7 [shape = 'u8[32768]{0}', space=vmem, size = 0x8000, scoped, tag = 'input window, operand 4, single buffered']
    #allocation8 [shape = 's32[1]{0}', space=sflag, size = 0x4, scoped, tag = 'scoped memory for tpu_custom_call.1']
    #allocation9 [shape = 'u8[16384]{0}', space=vmem, size = 0x4000, scoped, tag = 'input window, operand 5, single buffered']
    #allocation10 [shape = 'u8[16384]{0}', space=vmem, size = 0x4000, scoped, tag = 'output window, operand 0']
    %14 = vsyncpa [#allocation5], 0
    %15 = vsyncpa [#allocation8], 0
    %16 = vsyncpa [#allocation6], 0
    %s17 = scalar_lea.sflag [#allocation6], 1
    %18 = vsyncpa %s17, 0
    loop: start=0, step=1, limit=6
    $region2: #{tpu_custom_call.1} parent=1 // loop_pre_header
      _
    $region3: #{tpu_custom_call.1} parent=1 // loop_header
      %s20 = sphi 0, %s24
      %p21 = scmp.ge.s32.totalorder %s20, 6
      %s27 = sphi 0, %s39
      %s28 = sphi 0, %s35
      %s29 = sphi 0, %s27
      %s30 = sphi 0, %s28
      %s31 = sphi 0, %s29
      %s32 = sphi 0, %s30
      %s44 = sphi 0, %s46
      %s47 = sphi 0, %s44
      %s48 = sphi 0, %s47
      %s64 = sphi 0, %s48
      %s68 = sphi 0, %s68
      %s70 = sphi 0, %s68
      %s71 = sphi 0, %s70
      %s85 = sphi 0, %s71
      %s89 = sphi 0, %s89
      %s91 = sphi 0, %s89
      %s92 = sphi 0, %s91
      %s106 = sphi 0, %s92
      %s110 = sphi 0, %s110
      %s112 = sphi 0, %s110
      %s113 = sphi 0, %s112
      %s127 = sphi 0, %s113
      %s131 = sphi 0, %s131
      %s133 = sphi 0, %s131
      %s134 = sphi 0, %s133
      %s148 = sphi 0, %s134
      %s152 = sphi 0, %s152
      %s154 = sphi 0, %s152
      %s155 = sphi 0, %s154
      %s169 = sphi 0, %s155
      %s173 = sphi 0, %s173
      %s175 = sphi 0, %s173
      %s176 = sphi 0, %s175
      %s190 = sphi 0, %s176
      %s194 = sphi 0, %s194
      %s196 = sphi 0, %s194
      %s197 = sphi 0, %s196
      %s211 = sphi 0, %s197
      %s215 = sphi 0, %s215
      %s217 = sphi 0, %s215
      %s218 = sphi 0, %s217
      %s232 = sphi 0, %s218
      %s240 = sphi 0, %s242
      %s243 = sphi 0, %s240
      %s244 = sphi 0, %s243
      %s260 = sphi 0, %s244
    $region4: #{tpu_custom_call.1} parent=1 // loop_header_branch
      %23 = sbr.rel (%p21) target = $region8
    $region5: #{tpu_custom_call.1} parent=1 // loop_body
      %s25 = ssub.s32 %s20, 1
      %s26 = ssub.s32 %s20, 2
      %s33 = sadd.s32 1, %s28
      %p34 = scmp.ge.s32.totalorder %s33, 2
      %s35 = scalar_select %p34, 0, %s33
      %s36 = sadd.s32 1, %s27
      %s37 = scalar_select %p34, %s36, %s27
      %p38 = scmp.ge.s32.totalorder %s37, 2
      %s39 = scalar_select %p38, 0, %s37
      %s40 = ssub.s32 %s27, %s39
      %s41 = ssub.s32 %s28, %s35
      %s42 = sor.u32 %s40, %s41
      %p43 = scmp.eq.s32.totalorder %s42, 0
      %s45 = sadd.s32 %s44, 1
      %s46 = scalar_select %p43, %s44, %s45
      %p49 = pneg %p43
      %p50 = scmp.eq.s32.totalorder %s20, 3
      %p51 = por %p49, %p50
      %p52 = scmp.ne.s32.totalorder %s44, %s47
      %p53 = scmp.eq.s32.totalorder %s20, 0
      %p54 = por %p52, %p53
      %p55 = scmp.ne.s32.totalorder %s44, %s47
      %p56 = scmp.eq.s32.totalorder %s25, 3
      %p57 = por %p55, %p56
      %p58 = scmp.ne.s32.totalorder %s47, %s48
      %p59 = scmp.eq.s32.totalorder %s25, 0
      %p60 = por %p58, %p59
      %p61 = scmp.ne.s32.totalorder %s47, %s48
      %p62 = scmp.eq.s32.totalorder %s26, 3
      %p63 = por %p61, %p62
      %p65 = scmp.ne.s32.totalorder %s48, %s64
      %p66 = scmp.eq.s32.totalorder %s26, 0
      %p67 = por %p65, %p66
      %s69 = sadd.s32 %s68, 1
      %p72 = scmp.eq.s32.totalorder %s20, 3
      %p73 = scmp.ne.s32.totalorder %s68, %s70
      %p74 = scmp.eq.s32.totalorder %s20, 0
      %p75 = por %p73, %p74
      %p76 = scmp.ne.s32.totalorder %s68, %s70
      %p77 = scmp.eq.s32.totalorder %s25, 3
      %p78 = por %p76, %p77
      %p79 = scmp.ne.s32.totalorder %s70, %s71
      %p80 = scmp.eq.s32.totalorder %s25, 0
      %p81 = por %p79, %p80
      %p82 = scmp.ne.s32.totalorder %s70, %s71
      %p83 = scmp.eq.s32.totalorder %s26, 3
      %p84 = por %p82, %p83
      %p86 = scmp.ne.s32.totalorder %s71, %s85
      %p87 = scmp.eq.s32.totalorder %s26, 0
      %p88 = por %p86, %p87
      %s90 = sadd.s32 %s89, 1
      %p93 = scmp.eq.s32.totalorder %s20, 3
      %p94 = scmp.ne.s32.totalorder %s89, %s91
      %p95 = scmp.eq.s32.totalorder %s20, 0
      %p96 = por %p94, %p95
      %p97 = scmp.ne.s32.totalorder %s89, %s91
      %p98 = scmp.eq.s32.totalorder %s25, 3
      %p99 = por %p97, %p98
      %p100 = scmp.ne.s32.totalorder %s91, %s92
      %p101 = scmp.eq.s32.totalorder %s25, 0
      %p102 = por %p100, %p101
      %p103 = scmp.ne.s32.totalorder %s91, %s92
      %p104 = scmp.eq.s32.totalorder %s26, 3
      %p105 = por %p103, %p104
      %p107 = scmp.ne.s32.totalorder %s92, %s106
      %p108 = scmp.eq.s32.totalorder %s26, 0
      %p109 = por %p107, %p108
      %s111 = sadd.s32 %s110, 1
      %p114 = scmp.eq.s32.totalorder %s20, 3
      %p115 = scmp.ne.s32.totalorder %s110, %s112
      %p116 = scmp.eq.s32.totalorder %s20, 0
      %p117 = por %p115, %p116
      %p118 = scmp.ne.s32.totalorder %s110, %s112
      %p119 = scmp.eq.s32.totalorder %s25, 3
      %p120 = por %p118, %p119
      %p121 = scmp.ne.s32.totalorder %s112, %s113
      %p122 = scmp.eq.s32.totalorder %s25, 0
      %p123 = por %p121, %p122
      %p124 = scmp.ne.s32.totalorder %s112, %s113
      %p125 = scmp.eq.s32.totalorder %s26, 3
      %p126 = por %p124, %p125
      %p128 = scmp.ne.s32.totalorder %s113, %s127
      %p129 = scmp.eq.s32.totalorder %s26, 0
      %p130 = por %p128, %p129
      %s132 = sadd.s32 %s131, 1
      %p135 = scmp.eq.s32.totalorder %s20, 3
      %p136 = scmp.ne.s32.totalorder %s131, %s133
      %p137 = scmp.eq.s32.totalorder %s20, 0
      %p138 = por %p136, %p137
      %p139 = scmp.ne.s32.totalorder %s131, %s133
      %p140 = scmp.eq.s32.totalorder %s25, 3
      %p141 = por %p139, %p140
      %p142 = scmp.ne.s32.totalorder %s133, %s134
      %p143 = scmp.eq.s32.totalorder %s25, 0
      %p144 = por %p142, %p143
      %p145 = scmp.ne.s32.totalorder %s133, %s134
      %p146 = scmp.eq.s32.totalorder %s26, 3
      %p147 = por %p145, %p146
      %p149 = scmp.ne.s32.totalorder %s134, %s148
      %p150 = scmp.eq.s32.totalorder %s26, 0
      %p151 = por %p149, %p150
      %s153 = sadd.s32 %s152, 1
      %p156 = scmp.eq.s32.totalorder %s20, 3
      %p157 = scmp.ne.s32.totalorder %s152, %s154
      %p158 = scmp.eq.s32.totalorder %s20, 0
      %p159 = por %p157, %p158
      %p160 = scmp.ne.s32.totalorder %s152, %s154
      %p161 = scmp.eq.s32.totalorder %s25, 3
      %p162 = por %p160, %p161
      %p163 = scmp.ne.s32.totalorder %s154, %s155
      %p164 = scmp.eq.s32.totalorder %s25, 0
      %p165 = por %p163, %p164
      %p166 = scmp.ne.s32.totalorder %s154, %s155
      %p167 = scmp.eq.s32.totalorder %s26, 3
      %p168 = por %p166, %p167
      %p170 = scmp.ne.s32.totalorder %s155, %s169
      %p171 = scmp.eq.s32.totalorder %s26, 0
      %p172 = por %p170, %p171
      %s174 = sadd.s32 %s173, 1
      %p177 = scmp.eq.s32.totalorder %s20, 3
      %p178 = scmp.ne.s32.totalorder %s173, %s175
      %p179 = scmp.eq.s32.totalorder %s20, 0
      %p180 = por %p178, %p179
      %p181 = scmp.ne.s32.totalorder %s173, %s175
      %p182 = scmp.eq.s32.totalorder %s25, 3
      %p183 = por %p181, %p182
      %p184 = scmp.ne.s32.totalorder %s175, %s176
      %p185 = scmp.eq.s32.totalorder %s25, 0
      %p186 = por %p184, %p185
      %p187 = scmp.ne.s32.totalorder %s175, %s176
      %p188 = scmp.eq.s32.totalorder %s26, 3
      %p189 = por %p187, %p188
      %p191 = scmp.ne.s32.totalorder %s176, %s190
      %p192 = scmp.eq.s32.totalorder %s26, 0
      %p193 = por %p191, %p192
      %s195 = sadd.s32 %s194, 1
      %p198 = scmp.eq.s32.totalorder %s20, 3
      %p199 = scmp.ne.s32.totalorder %s194, %s196
      %p200 = scmp.eq.s32.totalorder %s20, 0
      %p201 = por %p199, %p200
      %p202 = scmp.ne.s32.totalorder %s194, %s196
      %p203 = scmp.eq.s32.totalorder %s25, 3
      %p204 = por %p202, %p203
      %p205 = scmp.ne.s32.totalorder %s196, %s197
      %p206 = scmp.eq.s32.totalorder %s25, 0
      %p207 = por %p205, %p206
      %p208 = scmp.ne.s32.totalorder %s196, %s197
      %p209 = scmp.eq.s32.totalorder %s26, 3
      %p210 = por %p208, %p209
      %p212 = scmp.ne.s32.totalorder %s197, %s211
      %p213 = scmp.eq.s32.totalorder %s26, 0
      %p214 = por %p212, %p213
      %s216 = sadd.s32 %s215, 1
      %p219 = scmp.eq.s32.totalorder %s20, 3
      %p220 = scmp.ne.s32.totalorder %s215, %s217
      %p221 = scmp.eq.s32.totalorder %s20, 0
      %p222 = por %p220, %p221
      %p223 = scmp.ne.s32.totalorder %s215, %s217
      %p224 = scmp.eq.s32.totalorder %s25, 3
      %p225 = por %p223, %p224
      %p226 = scmp.ne.s32.totalorder %s217, %s218
      %p227 = scmp.eq.s32.totalorder %s25, 0
      %p228 = por %p226, %p227
      %p229 = scmp.ne.s32.totalorder %s217, %s218
      %p230 = scmp.eq.s32.totalorder %s26, 3
      %p231 = por %p229, %p230
      %p233 = scmp.ne.s32.totalorder %s218, %s232
      %p234 = scmp.eq.s32.totalorder %s26, 0
      %p235 = por %p233, %p234
      %s236 = ssub.s32 %s27, %s39
      %s237 = ssub.s32 %s28, %s35
      %s238 = sor.u32 %s236, %s237
      %p239 = scmp.eq.s32.totalorder %s238, 0
      %s241 = sadd.s32 %s240, 1
      %s242 = scalar_select %p239, %s240, %s241
      %p245 = pneg %p239
      %p246 = scmp.eq.s32.totalorder %s20, 3
      %p247 = por %p245, %p246
      %p248 = scmp.ne.s32.totalorder %s240, %s243
      %p249 = scmp.eq.s32.totalorder %s20, 0
      %p250 = por %p248, %p249
      %p251 = scmp.ne.s32.totalorder %s240, %s243
      %p252 = scmp.eq.s32.totalorder %s25, 3
      %p253 = por %p251, %p252
      %p254 = scmp.ne.s32.totalorder %s243, %s244
      %p255 = scmp.eq.s32.totalorder %s25, 0
      %p256 = por %p254, %p255
      %p257 = scmp.ne.s32.totalorder %s243, %s244
      %p258 = scmp.eq.s32.totalorder %s26, 3
      %p259 = por %p257, %p258
      %p261 = scmp.ne.s32.totalorder %s244, %s260
      %p262 = scmp.eq.s32.totalorder %s26, 0
      %p263 = por %p261, %p262
      %p264 = scmp.le.s32.totalorder 1, %s20
      %p265 = scmp.lt.s32.totalorder %s20, 5
      %p266 = pnand %p264, %p265
      %p267 = pneg %p266
      // Predicated region
      $region9: #{tpu_custom_call.1} parent=5 // pred_check
        _
      $region10: #{tpu_custom_call.1} parent=5 // pred_check_branch
        %269 = sbr.rel (%p266) target = $region12
      $region11: #{tpu_custom_call.1} parent=5 // pred_region
        %s270 = ssub.s32 %s20, 1
        // Predicated region
        $region13: #{tpu_custom_call.1} parent=11 // pred_check
          %p271 = pneg %p81
        $region14: #{tpu_custom_call.1} parent=11 // pred_check_branch
          %273 = sbr.rel (%p271) target = $region16
        $region15: #{tpu_custom_call.1} parent=11 // pred_region
          _
        $region16: #{tpu_custom_call.1} parent=11 // pred_fallthru
          _
        // Predicated region
        $region17: #{tpu_custom_call.1} parent=11 // pred_check
          %p274 = pneg %p102
        $region18: #{tpu_custom_call.1} parent=11 // pred_check_branch
          %276 = sbr.rel (%p274) target = $region20
        $region19: #{tpu_custom_call.1} parent=11 // pred_region
          %s278 = ssub.s32 64, 64
          %279 = vsyncadd [#allocation5], %s278
          %s281 = sshll.u32 [#allocation4], 4
          %s282 = int_to_ptr.vmem [resolvable:$true] %s281
          %284 = dma.hbm_to_vmem [thread:$0]  %s2, 64, %s282, [#allocation5]
        $region20: #{tpu_custom_call.1} parent=11 // pred_fallthru
          _
        // Predicated region
        $region21: #{tpu_custom_call.1} parent=11 // pred_check
          %p285 = pneg %p123
        $region22: #{tpu_custom_call.1} parent=11 // pred_check_branch
          %287 = sbr.rel (%p285) target = $region24
        $region23: #{tpu_custom_call.1} parent=11 // pred_region
          _
        $region24: #{tpu_custom_call.1} parent=11 // pred_fallthru
          _
        // Predicated region
        $region25: #{tpu_custom_call.1} parent=11 // pred_check
          %p288 = pneg %p144
        $region26: #{tpu_custom_call.1} parent=11 // pred_check_branch
          %290 = sbr.rel (%p288) target = $region28
        $region27: #{tpu_custom_call.1} parent=11 // pred_region
          %s292 = ssub.s32 1024, 1024
          %293 = vsyncadd [#allocation8], %s292
          %s294 = sshll.u32 [#allocation7], 4
          %s295 = int_to_ptr.vmem [resolvable:$true] %s294
          %300 = dma.hbm_to_vmem [thread:$0]  %s4, 1024, %s295, [#allocation8], 128, 128, 8
        $region28: #{tpu_custom_call.1} parent=11 // pred_fallthru
          _
        // Predicated region
        $region29: #{tpu_custom_call.1} parent=11 // pred_check
          %p301 = pneg %p165
        $region30: #{tpu_custom_call.1} parent=11 // pred_check_branch
          %303 = sbr.rel (%p301) target = $region32
        $region31: #{tpu_custom_call.1} parent=11 // pred_region
          %s305 = ssub.s32 512, 512
          %306 = vsyncadd [#allocation8], %s305
          %s307 = sshll.u32 [#allocation9], 4
          %s308 = int_to_ptr.vmem [resolvable:$true] %s307
          %313 = dma.hbm_to_vmem [thread:$0]  %s5, 512, %s308, [#allocation8], 128, 128, 8
        $region32: #{tpu_custom_call.1} parent=11 // pred_fallthru
          _
        // Predicated region
        $region33: #{tpu_custom_call.1} parent=11 // pred_check
          %p314 = pneg %p186
        $region34: #{tpu_custom_call.1} parent=11 // pred_check_branch
          %316 = sbr.rel (%p314) target = $region36
        $region35: #{tpu_custom_call.1} parent=11 // pred_region
          _
        $region36: #{tpu_custom_call.1} parent=11 // pred_fallthru
          _
        // Predicated region
        $region37: #{tpu_custom_call.1} parent=11 // pred_check
          %p317 = pneg %p207
        $region38: #{tpu_custom_call.1} parent=11 // pred_check_branch
          %319 = sbr.rel (%p317) target = $region40
        $region39: #{tpu_custom_call.1} parent=11 // pred_region
          _
        $region40: #{tpu_custom_call.1} parent=11 // pred_fallthru
          _
        // Predicated region
        $region41: #{tpu_custom_call.1} parent=11 // pred_check
          %p320 = pneg %p228
        $region42: #{tpu_custom_call.1} parent=11 // pred_check_branch
          %322 = sbr.rel (%p320) target = $region44
        $region43: #{tpu_custom_call.1} parent=11 // pred_region
          _
        $region44: #{tpu_custom_call.1} parent=11 // pred_fallthru
          _
      $region12: #{tpu_custom_call.1} parent=5 // pred_fallthru
        _
      %p323 = scmp.lt.s32.totalorder %s20, 4
      // Predicated region
      $region45: #{tpu_custom_call.1} parent=5 // pred_check
        %p324 = pneg %p323
      $region46: #{tpu_custom_call.1} parent=5 // pred_check_branch
        %326 = sbr.rel (%p324) target = $region48
      $region47: #{tpu_custom_call.1} parent=5 // pred_region
        // Predicated region
        $region49: #{tpu_custom_call.1} parent=47 // pred_check
          %p327 = pneg %p54
        $region50: #{tpu_custom_call.1} parent=47 // pred_check_branch
          %329 = sbr.rel (%p327) target = $region52
        $region51: #{tpu_custom_call.1} parent=47 // pred_region
          %s330 = smul.u32 2, %s28
          %p331 = scmp.lt.s32.totalorder %s27, 1
          %s332 = scalar_select %p331, %s27, 1
          %p333 = scmp.lt.s32.totalorder %s330, 3
          %s334 = scalar_select %p333, %s330, 3
          %s335 = smul.addr %s332, 4
          %s336 = sadd.s32 %s334, %s335
          %s337 = smul.addr %s336, 8
          %s338 = scalar_lea.vmem %s0, %s337
          %s339 = smul.u32 2, %s28
        $region52: #{tpu_custom_call.1} parent=47 // pred_fallthru
          _
      $region48: #{tpu_custom_call.1} parent=5 // pred_fallthru
        _
      %p340 = scmp.le.s32.totalorder 1, %s20
      %p341 = scmp.lt.s32.totalorder %s20, 5
      %p342 = pnand %p340, %p341
      %p343 = pneg %p342
      // Predicated region
      $region53: #{tpu_custom_call.1} parent=5 // pred_check
        _
      $region54: #{tpu_custom_call.1} parent=5 // pred_check_branch
        %345 = sbr.rel (%p342) target = $region56
      $region55: #{tpu_custom_call.1} parent=5 // pred_region
        %s346 = ssub.s32 %s20, 1
        // Predicated region
        $region57: #{tpu_custom_call.1} parent=55 // pred_check
          %p347 = pneg %p102
        $region58: #{tpu_custom_call.1} parent=55 // pred_check_branch
          %349 = sbr.rel (%p347) target = $region60
        $region59: #{tpu_custom_call.1} parent=55 // pred_region
          %350 = dma.done [#allocation5], 64
        $region60: #{tpu_custom_call.1} parent=55 // pred_fallthru
          _
        // Predicated region
        $region61: #{tpu_custom_call.1} parent=55 // pred_check
          %p351 = pneg %p144
        $region62: #{tpu_custom_call.1} parent=55 // pred_check_branch
          %353 = sbr.rel (%p351) target = $region64
        $region63: #{tpu_custom_call.1} parent=55 // pred_region
          %354 = dma.done [#allocation8], 1024
        $region64: #{tpu_custom_call.1} parent=55 // pred_fallthru
          _
        // Predicated region
        $region65: #{tpu_custom_call.1} parent=55 // pred_check
          %p355 = pneg %p165
        $region66: #{tpu_custom_call.1} parent=55 // pred_check_branch
          %357 = sbr.rel (%p355) target = $region68
        $region67: #{tpu_custom_call.1} parent=55 // pred_region
          %358 = dma.done [#allocation8], 512
        $region68: #{tpu_custom_call.1} parent=55 // pred_fallthru
          _
        %s359 = smul.u32 2, %s30
        %p360 = scmp.lt.s32.totalorder %s29, 1
        %s361 = scalar_select %p360, %s29, 1
        %p362 = scmp.lt.s32.totalorder %s359, 3
        %s363 = scalar_select %p362, %s359, 3
        %s364 = smul.addr %s361, 4
        %s365 = sadd.s32 %s363, %s364
        %s366 = smul.addr %s365, 8
        %s367 = scalar_lea.vmem %s0, %s366
        %p368 = pneg %p60
        %p369 = pneg %p57
        %p370 = pneg %p81
        %p371 = pneg %p78
        %p372 = pneg %p102
        %p373 = pneg %p99
        %p374 = pneg %p123
        %p375 = pneg %p120
        %p376 = pneg %p144
        %p377 = pneg %p141
        %p378 = pneg %p165
        %p379 = pneg %p162
        %p380 = pneg %p186
        %p381 = pneg %p183
        %p382 = pneg %p207
        %p383 = pneg %p204
        %p384 = pneg %p228
        %p385 = pneg %p225
        %p386 = pneg %p256
        %p387 = pneg %p253
        %s388 = sand.u32 %s243, 1
        %s389 = scalar_lea.sflag [#allocation6], %s388
        %s390 = sand.u32 %s243, 1
        %s391 = smul.addr %s390, 16
        %s392 = scalar_lea.vmem [#allocation10], %s391
        %s393 = smul.u32 2, %s30
        %p394 = scmp.lt.s32.totalorder %s29, 1
        %s395 = scalar_select %p394, %s29, 1
        %p396 = scmp.lt.s32.totalorder %s393, 3
        %s397 = scalar_select %p396, %s393, 3
        %s398 = smul.addr %s395, 4
        %s399 = sadd.s32 %s397, %s398
        %s400 = smul.addr %s399, 8
        %s401 = scalar_lea.vmem %s0, %s400
        %s402 = smul.u32 2, %s30
        %s403 = smul.u32 2, %s30
        %p404 = scmp.eq.s32.totalorder %s30, 0
        // Predicated region
        $region69: #{tpu_custom_call.1} parent=55 // pred_check
          %p405 = pneg %p404
        $region70: #{tpu_custom_call.1} parent=55 // pred_check_branch
          %407 = sbr.rel (%p405) target = $region72
        $region71: #{tpu_custom_call.1} parent=55 // pred_region
          %vm408 = vcmask 523264
          %409 = vst.msk [vmem:[#allocation3] sm:$0xff] %vm408, 0.0
          %410 = vst.msk [vmem:[#allocation3 + $0x8] sm:$0xff] %vm408, 0.0
          %vm411 = vcmask 518144
          %412 = vst.msk [vmem:[#allocation2] sm:$0x7] %vm411, 0.0
        $region72: #{tpu_custom_call.1} parent=55 // pred_fallthru
          _
        %v413 = vld [vmem:[%s401] sm:$0xff]
        %v414 = vld [vmem:[%s401 + $0x8] sm:$0xff]
        %v415 = vld [vmem:[%s1] sm:$0xff]
        %v416 = vld [vmem:[%s1 + $0x8] sm:$0xff]
        %v417 = vld [vmem:[%s1 + $0x10] sm:$0xff]
        %v418 = vld [vmem:[%s1 + $0x18] sm:$0xff]
        %vm419 = vcmask 261120
        %v421 = vsel %vm419, %v413, 0
        %v424 = vsel %vm419, %v414, 0
        %426 = vmatprep.subr.mxu0 0.0
        %427 = vmatpush1.msra.mxu0 %v415
        %428 = vmatprep.subr.mxu0 0.0
        %429 = vmatpush1.msra.mxu0 %v416
        %430 = vmatprep.subr.mxu0 0.0
        %431 = vmatpush1.msra.mxu0 %v417
        %432 = vmatprep.subr.mxu0 0.0
        %433 = vmatpush1.msra.mxu0 %v418
        %434 = vmatprep.subr.mxu0 0.0
        %435 = vmatpush1.msra.mxu0 0.0
        %436 = vmatprep.subr.mxu0 0.0
        %437 = vmatpush1.msra.mxu0 0.0
        %438 = vmatprep.subr.mxu0 0.0
        %439 = vmatpush1.msra.mxu0 0.0
        %440 = vmatprep.subr.mxu0 0.0
        %441 = vmatpush1.msra.mxu0 0.0
        %442 = vmatprep.subr.mxu0 0.0
        %443 = vmatpush1.msra.mxu0 0.0
        %444 = vmatprep.subr.mxu0 0.0
        %445 = vmatpush1.msra.mxu0 0.0
        %446 = vmatprep.subr.mxu0 0.0
        %447 = vmatpush1.msra.mxu0 0.0
        %448 = vmatprep.subr.mxu0 0.0
        %449 = vmatpush1.msra.mxu0 0.0
        %450 = vmatprep.subr.mxu0 0.0
        %451 = vmatpush1.msra.mxu0 0.0
        %452 = vmatprep.subr.mxu0 0.0
        %453 = vmatpush1.msra.mxu0 0.0
        %454 = vmatprep.subr.mxu0 0.0
        %455 = vmatpush1.msra.mxu0 0.0
        %456 = vmatprep.subr.mxu0 0.0
        %457 = vmatpush1.msra.mxu0 0.0
        %458 = vmatprep.subr.mxu0 0.0
        %459 = vmatpush1.msra.mxu0 0.0
        %460 = vmatprep.subr.mxu0 0.0
        %461 = vmatpush1.msra.mxu0 0.0
        %462 = vmatprep.subr.mxu0 0.0
        %463 = vmatpush1.msra.mxu0 0.0
        %464 = vmatprep.subr.mxu0 0.0
        %465 = vmatpush1.msra.mxu0 0.0
        %466 = vmatprep.subr.mxu0 0.0
        %467 = vmatpush1.msra.mxu0 0.0
        %468 = vmatprep.subr.mxu0 0.0
        %469 = vmatpush1.msra.mxu0 0.0
        %470 = vmatprep.subr.mxu0 0.0
        %471 = vmatpush1.msra.mxu0 0.0
        %472 = vmatprep.subr.mxu0 0.0
        %473 = vmatpush1.msra.mxu0 0.0
        %474 = vmatprep.subr.mxu0 0.0
        %475 = vmatpush1.msra.mxu0 0.0
        %476 = vmatprep.subr.mxu0 0.0
        %477 = vmatpush1.msra.mxu0 0.0
        %478 = vmatprep.subr.mxu0 0.0
        %479 = vmatpush1.msra.mxu0 0.0
        %480 = vmatprep.subr.mxu0 0.0
        %481 = vmatpush1.msra.mxu0 0.0
        %482 = vmatprep.subr.mxu0 0.0
        %483 = vmatpush1.msra.mxu0 0.0
        %484 = vmatprep.subr.mxu0 0.0
        %485 = vmatpush1.msra.mxu0 0.0
        %486 = vmatprep.subr.mxu0 0.0
        %487 = vmatpush1.msra.mxu0 0.0
        %488 = vmatprep.subr.mxu0 0.0
        %489 = vmatpush1.msra.mxu0 0.0
        %490 = vmatprep.mubr.f32.mxu0 0.0
        %491 = vmatmul.mubr.f32.gmra.mrb[0].mxu0 %v421
        %v492 = vpop.f32.mrb[0].mxu0
        %v493 = vadd.f32 0.0, %v492
        %v494 = vpop.f32.mrb[0].mxu0
        %495 = vmatprep.mubr.f32.mxu0 0.0
        %496 = vmatmul.mubr.f32.gmra.mrb[0].mxu0 %v424
        %v497 = vpop.f32.mrb[0].mxu0
        %v498 = vadd.f32 0.0, %v497
        %v499 = vpop.f32.mrb[0].mxu0
        %500 = vdwg.mxu0
        %v501 = vsub.f32 0.0, %v493
        %v502 = vsub.f32 0.0, %v498
        %v503 = vmul.f32 %v501, 1.442695
        %v504 = vpow.pop %v503
        %v505 = vmul.f32 %v502, 1.442695
        %v506 = vpow.pop %v505
        %v507 = vadd.f32 %v504, 1.0
        %v508 = vadd.f32 %v506, 1.0
        %v509 = vrcp.pop %v507
        %v510 = vrcp.pop %v508
        %v511 = vmul.f32 %v493, %v509
        %v512 = vmul.f32 %v498, %v510
        %vm513 = vcmask 523264
        %514 = vst.msk [vmem:[#allocation2 + $0x3] sm:$0xff] %vm513, %v493
        %515 = vst.msk [vmem:[#allocation2 + $0xb] sm:$0xff] %vm513, %v498
        %v516 = vld [vmem:[#allocation4] sm:$0xf]
        %v517 = vld [vmem:[%s3] sm:$0x1]
        %v519 = vlaneseq
        %v520 = vshrl.u32 %v519, 7
        %v521 = vsub.s32 0, %v520
        %v522 = vrot.slane %v517, %v521
        %v524 = vadd.f32 %v522, 0.0
        %v525 = vld [vmem:[#allocation2] sm:$0xff]
        %v526 = vld [vmem:[#allocation2 + $0x8] sm:$0xff]
        %v527 = vlaneseq
        %v528 = vshrl.u32 %v527, 7
        %v529 = vsub.s32 0, %v528
        %v530 = vrot.slane %v516, %v529
        %v531 = vmul.f32 %v525, %v530
        %v532 = vmul.f32 %v526, %v530
        %v533 = vadd.f32 %v524, %v531
        %v534 = vadd.f32 %v524, %v532
        %v535 = vld [vmem:[#allocation2 + $0x1] sm:$0xff]
        %v536 = vld [vmem:[#allocation2 + $0x9] sm:$0xff]
        %v537 = vlaneseq
        %v538 = vshrl.u32 %v537, 7
        %v539 = vsub.s32 1, %v538
        %v540 = vrot.slane %v516, %v539
        %v541 = vmul.f32 %v535, %v540
        %v542 = vmul.f32 %v536, %v540
        %v543 = vadd.f32 %v533, %v541
        %v544 = vadd.f32 %v534, %v542
        %v545 = vld [vmem:[#allocation2 + $0x2] sm:$0xff]
        %v546 = vld [vmem:[#allocation2 + $0xa] sm:$0xff]
        %v547 = vlaneseq
        %v548 = vshrl.u32 %v547, 7
        %v549 = vsub.s32 2, %v548
        %v550 = vrot.slane %v516, %v549
        %v551 = vmul.f32 %v545, %v550
        %v552 = vmul.f32 %v546, %v550
        %v553 = vadd.f32 %v543, %v551
        %v554 = vadd.f32 %v544, %v552
        %v555 = vld [vmem:[#allocation2 + $0x3] sm:$0xff]
        %v556 = vld [vmem:[#allocation2 + $0xb] sm:$0xff]
        %v557 = vlaneseq
        %v558 = vshrl.u32 %v557, 7
        %v559 = vsub.s32 3, %v558
        %v560 = vrot.slane %v516, %v559
        %v561 = vmul.f32 %v555, %v560
        %v562 = vmul.f32 %v556, %v560
        %v563 = vadd.f32 %v553, %v561
        %v564 = vadd.f32 %v554, %v562
        %vm565 = vcmask 523269
        %566 = vst.msk [vmem:[#allocation2 - $0x5] sm:$0xe0] %vm565, %v498
        %v567 = vsub.f32 0.0, %v563
        %v568 = vsub.f32 0.0, %v564
        %v569 = vmul.f32 %v567, 1.442695
        %v570 = vpow.pop %v569
        %v571 = vmul.f32 %v568, 1.442695
        %v572 = vpow.pop %v571
        %v573 = vadd.f32 %v570, 1.0
        %v574 = vadd.f32 %v572, 1.0
        %v575 = vrcp.pop %v573
        %v576 = vrcp.pop %v574
        %v577 = vmul.f32 %v563, %v575
        %v578 = vmul.f32 %v564, %v576
        %v579 = vld [vmem:[#allocation7] sm:$0xff]
        %v580 = vld [vmem:[#allocation7 + $0x8] sm:$0xff]
        %v581 = vld [vmem:[#allocation7 + $0x10] sm:$0xff]
        %v582 = vld [vmem:[#allocation7 + $0x18] sm:$0xff]
        %v583 = vld [vmem:[#allocation7 + $0x20] sm:$0xff]
        %v584 = vld [vmem:[#allocation7 + $0x28] sm:$0xff]
        %v585 = vld [vmem:[#allocation7 + $0x30] sm:$0xff]
        %v586 = vld [vmem:[#allocation7 + $0x38] sm:$0xff]
        %v588 = vsel %vm513, %v577, 0
        %v591 = vsel %vm513, %v578, 0
        %593 = vmatprep.subr.mxu0 0.0
        %594 = vmatpush1.msra.mxu0 %v579
        %595 = vmatprep.subr.mxu0 0.0
        %596 = vmatpush1.msra.mxu0 %v580
        %597 = vmatprep.subr.mxu0 0.0
        %598 = vmatpush1.msra.mxu0 %v581
        %599 = vmatprep.subr.mxu0 0.0
        %600 = vmatpush1.msra.mxu0 %v582
        %601 = vmatprep.subr.mxu0 0.0
        %602 = vmatpush1.msra.mxu0 %v583
        %603 = vmatprep.subr.mxu0 0.0
        %604 = vmatpush1.msra.mxu0 %v584
        %605 = vmatprep.subr.mxu0 0.0
        %606 = vmatpush1.msra.mxu0 %v585
        %607 = vmatprep.subr.mxu0 0.0
        %608 = vmatpush1.msra.mxu0 %v586
        %609 = vmatprep.subr.mxu0 0.0
        %610 = vmatpush1.msra.mxu0 0.0
        %611 = vmatprep.subr.mxu0 0.0
        %612 = vmatpush1.msra.mxu0 0.0
        %613 = vmatprep.subr.mxu0 0.0
        %614 = vmatpush1.msra.mxu0 0.0
        %615 = vmatprep.subr.mxu0 0.0
        %616 = vmatpush1.msra.mxu0 0.0
        %617 = vmatprep.subr.mxu0 0.0
        %618 = vmatpush1.msra.mxu0 0.0
        %619 = vmatprep.subr.mxu0 0.0
        %620 = vmatpush1.msra.mxu0 0.0
        %621 = vmatprep.subr.mxu0 0.0
        %622 = vmatpush1.msra.mxu0 0.0
        %623 = vmatprep.subr.mxu0 0.0
        %624 = vmatpush1.msra.mxu0 0.0
        %625 = vmatprep.subr.mxu0 0.0
        %626 = vmatpush1.msra.mxu0 0.0
        %627 = vmatprep.subr.mxu0 0.0
        %628 = vmatpush1.msra.mxu0 0.0
        %629 = vmatprep.subr.mxu0 0.0
        %630 = vmatpush1.msra.mxu0 0.0
        %631 = vmatprep.subr.mxu0 0.0
        %632 = vmatpush1.msra.mxu0 0.0
        %633 = vmatprep.subr.mxu0 0.0
        %634 = vmatpush1.msra.mxu0 0.0
        %635 = vmatprep.subr.mxu0 0.0
        %636 = vmatpush1.msra.mxu0 0.0
        %637 = vmatprep.subr.mxu0 0.0
        %638 = vmatpush1.msra.mxu0 0.0
        %639 = vmatprep.subr.mxu0 0.0
        %640 = vmatpush1.msra.mxu0 0.0
        %641 = vmatprep.subr.mxu0 0.0
        %642 = vmatpush1.msra.mxu0 0.0
        %643 = vmatprep.subr.mxu0 0.0
        %644 = vmatpush1.msra.mxu0 0.0
        %645 = vmatprep.subr.mxu0 0.0
        %646 = vmatpush1.msra.mxu0 0.0
        %647 = vmatprep.subr.mxu0 0.0
        %648 = vmatpush1.msra.mxu0 0.0
        %649 = vmatprep.subr.mxu0 0.0
        %650 = vmatpush1.msra.mxu0 0.0
        %651 = vmatprep.subr.mxu0 0.0
        %652 = vmatpush1.msra.mxu0 0.0
        %653 = vmatprep.subr.mxu0 0.0
        %654 = vmatpush1.msra.mxu0 0.0
        %655 = vmatprep.subr.mxu0 0.0
        %656 = vmatpush1.msra.mxu0 0.0
        %657 = vmatprep.mubr.f32.mxu0 0.0
        %658 = vmatmul.mubr.f32.gmra.mrb[0].mxu0 %v588
        %v659 = vpop.f32.mrb[0].mxu0
        %v660 = vadd.f32 0.0, %v659
        %v661 = vpop.f32.mrb[0].mxu0
        %662 = vmatprep.mubr.f32.mxu0 0.0
        %663 = vmatmul.mubr.f32.gmra.mrb[0].mxu0 %v591
        %v664 = vpop.f32.mrb[0].mxu0
        %v665 = vadd.f32 0.0, %v664
        %v666 = vpop.f32.mrb[0].mxu0
        %667 = vdwg.mxu0
        %vm668 = vcmp.gt.f32.partialorder %v660, 20.0
        %vm669 = vcmp.gt.f32.partialorder %v665, 20.0
        %v670 = vmax.f32 %v660, 0.0
        %v671 = vmax.f32 %v665, 0.0
        %v672 = vand.u32 2147483647, %v660
        %v673 = vand.u32 2147483647, %v665
        %v674 = vsub.f32 0.0, %v672
        %v675 = vsub.f32 0.0, %v673
        %v676 = vmul.f32 %v674, 1.442695
        %v677 = vpow.pop %v676
        %v678 = vmul.f32 %v675, 1.442695
        %v679 = vpow.pop %v678
        %v680 = vadd.f32 %v677, 1.0
        %v681 = vadd.f32 %v679, 1.0
        %v682 = vlog2.pop %v680
        %v683 = vmul.f32 %v682, 0.6931472
        %v684 = vlog2.pop %v681
        %v685 = vmul.f32 %v684, 0.6931472
        %v686 = vadd.f32 %v670, %v683
        %v687 = vadd.f32 %v671, %v685
        %v688 = vsel %vm668, %v660, %v686
        %v689 = vsel %vm669, %v665, %v687
        %v690 = vld [vmem:[#allocation9] sm:$0xff]
        %v691 = vld [vmem:[#allocation9 + $0x8] sm:$0xff]
        %v692 = vld [vmem:[#allocation9 + $0x10] sm:$0xff]
        %v693 = vld [vmem:[#allocation9 + $0x18] sm:$0xff]
        %v695 = vsel %vm513, %v690, 0
        %v698 = vsel %vm513, %v691, 0
        %v701 = vsel %vm513, %v692, 0
        %v704 = vsel %vm513, %v693, 0
        %706 = vmatprep.subr.mxu0 0.0
        %707 = vmatpush1.xpose.msra.mxu0 %v588
        %708 = vmatprep.subr.mxu0 0.0
        %709 = vmatpush1.xpose.msra.mxu0 %v591
        %710 = vmatprep.subr.mxu0 0.0
        %711 = vmatpush1.xpose.msra.mxu0 0.0
        %712 = vmatprep.subr.mxu0 0.0
        %713 = vmatpush1.xpose.msra.mxu0 0.0
        %714 = vmatprep.subr.mxu0 0.0
        %715 = vmatpush1.xpose.msra.mxu0 0.0
        %716 = vmatprep.subr.mxu0 0.0
        %717 = vmatpush1.xpose.msra.mxu0 0.0
        %718 = vmatprep.subr.mxu0 0.0
        %719 = vmatpush1.xpose.msra.mxu0 0.0
        %720 = vmatprep.subr.mxu0 0.0
        %721 = vmatpush1.xpose.msra.mxu0 0.0
        %722 = vmatprep.subr.mxu0 0.0
        %723 = vmatpush1.xpose.msra.mxu0 0.0
        %724 = vmatprep.subr.mxu0 0.0
        %725 = vmatpush1.xpose.msra.mxu0 0.0
        %726 = vmatprep.subr.mxu0 0.0
        %727 = vmatpush1.xpose.msra.mxu0 0.0
        %728 = vmatprep.subr.mxu0 0.0
        %729 = vmatpush1.xpose.msra.mxu0 0.0
        %730 = vmatprep.subr.mxu0 0.0
        %731 = vmatpush1.xpose.msra.mxu0 0.0
        %732 = vmatprep.subr.mxu0 0.0
        %733 = vmatpush1.xpose.msra.mxu0 0.0
        %734 = vmatprep.subr.mxu0 0.0
        %735 = vmatpush1.xpose.msra.mxu0 0.0
        %736 = vmatprep.subr.mxu0 0.0
        %737 = vmatpush1.xpose.msra.mxu0 0.0
        %738 = vmatprep.subr.mxu0 0.0
        %739 = vmatpush1.xpose.msra.mxu0 0.0
        %740 = vmatprep.subr.mxu0 0.0
        %741 = vmatpush1.xpose.msra.mxu0 0.0
        %742 = vmatprep.subr.mxu0 0.0
        %743 = vmatpush1.xpose.msra.mxu0 0.0
        %744 = vmatprep.subr.mxu0 0.0
        %745 = vmatpush1.xpose.msra.mxu0 0.0
        %746 = vmatprep.subr.mxu0 0.0
        %747 = vmatpush1.xpose.msra.mxu0 0.0
        %748 = vmatprep.subr.mxu0 0.0
        %749 = vmatpush1.xpose.msra.mxu0 0.0
        %750 = vmatprep.subr.mxu0 0.0
        %751 = vmatpush1.xpose.msra.mxu0 0.0
        %752 = vmatprep.subr.mxu0 0.0
        %753 = vmatpush1.xpose.msra.mxu0 0.0
        %754 = vmatprep.subr.mxu0 0.0
        %755 = vmatpush1.xpose.msra.mxu0 0.0
        %756 = vmatprep.subr.mxu0 0.0
        %757 = vmatpush1.xpose.msra.mxu0 0.0
        %758 = vmatprep.subr.mxu0 0.0
        %759 = vmatpush1.xpose.msra.mxu0 0.0
        %760 = vmatprep.subr.mxu0 0.0
        %761 = vmatpush1.xpose.msra.mxu0 0.0
        %762 = vmatprep.subr.mxu0 0.0
        %763 = vmatpush1.xpose.msra.mxu0 0.0
        %764 = vmatprep.subr.mxu0 0.0
        %765 = vmatpush1.xpose.msra.mxu0 0.0
        %766 = vmatprep.subr.mxu0 0.0
        %767 = vmatpush1.xpose.msra.mxu0 0.0
        %768 = vmatprep.subr.mxu0 0.0
        %769 = vmatpush1.xpose.msra.mxu0 0.0
        %770 = vmatprep.mubr.f32.mxu0 0.0
        %771 = vmatmul.mubr.f32.gmra.mrb[0].mxu0 %v695
        %v772 = vpop.f32.mrb[0].mxu0
        %v773 = vadd.f32 0.0, %v772
        %v774 = vpop.f32.mrb[0].mxu0
        %775 = vmatprep.mubr.f32.mxu0 0.0
        %776 = vmatmul.mubr.f32.gmra.mrb[0].mxu0 %v698
        %v777 = vpop.f32.mrb[0].mxu0
        %v778 = vadd.f32 0.0, %v777
        %v779 = vpop.f32.mrb[0].mxu0
        %780 = vmatprep.mubr.f32.mxu0 0.0
        %781 = vmatmul.mubr.f32.gmra.mrb[0].mxu0 %v701
        %v782 = vpop.f32.mrb[0].mxu0
        %v783 = vadd.f32 0.0, %v782
        %v784 = vpop.f32.mrb[0].mxu0
        %785 = vmatprep.mubr.f32.mxu0 0.0
        %786 = vmatmul.mubr.f32.gmra.mrb[0].mxu0 %v704
        %v787 = vpop.f32.mrb[0].mxu0
        %v788 = vadd.f32 0.0, %v787
        %v789 = vpop.f32.mrb[0].mxu0
        %790 = vdwg.mxu0
        %v791 = vld [vmem:[%s6] sm:$0xff]
        %v792 = vld [vmem:[%s6 + $0x8] sm:$0xff]
        %v793 = vmul.f32 %v688, %v577
        %v794 = vmul.f32 %v689, %v578
        %v795 = vld [vmem:[#allocation3] sm:$0xff]
        %v796 = vld [vmem:[#allocation3 + $0x8] sm:$0xff]
        %v797 = vlaneseq
        %v798 = vshrl.u32 %v797, 7
        %v799 = vsub.s32 0, %v798
        %v800 = vrot.slane %v688, %v799
        %v801 = vmul.f32 %v800, %v791
        %v802 = vmul.f32 %v800, %v792
        %v803 = vmul.f32 %v801, 1.442695
        %v804 = vpow.pop %v803
        %v805 = vmul.f32 %v802, 1.442695
        %v806 = vpow.pop %v805
        %808 = vset.pattern.permute.xlu0 0
        %809 = vperm.xlu0 %808, %v773
        %v810 = vpop.permute.xlu0 %809
        %813 = vset.pattern.permute.xlu0 0
        %814 = vperm.xlu0 %813, %v778
        %v815 = vpop.permute.xlu0 %814
        %v817 = vlaneseq
        %v818 = vshrl.u32 %v817, 7
        %v819 = vsub.s32 0, %v818
        %v820 = vrot.slane %v793, %v819
        %v821 = vmul.f32 %v810, %v820
        %v822 = vmul.f32 %v815, %v820
        %v823 = vmul.f32 %v804, %v795
        %v824 = vmul.f32 %v806, %v796
        %v825 = vadd.f32 %v823, %v821
        %v826 = vadd.f32 %v824, %v822
        %828 = vset.pattern.permute.xlu0 0
        %829 = vperm.xlu0 %828, %v783
        %v830 = vpop.permute.xlu0 %829
        %833 = vset.pattern.permute.xlu0 0
        %834 = vperm.xlu0 %833, %v788
        %v835 = vpop.permute.xlu0 %834
        %v837 = vmul.f32 %v830, %v825
        %v838 = vmul.f32 %v835, %v826
        %v839 = vsel %vm513, %v837, 0.0
        %v840 = vsel %vm513, %v838, 0.0
        %v841 = vadd.f32 %v839, %v840
        %v842 = vrot.slane %v841, 4
        %v843 = vadd.f32 %v841, %v842
        %v844 = vrot.slane %v843, 2
        %v845 = vadd.f32 %v843, %v844
        %v846 = vrot.slane %v845, 1
        %v847 = vadd.f32 %v845, %v846
        %v848 = vlaneseq
        %v849 = vshrl.u32 %v848, 7
        %v850 = vsub.s32 1, %v849
        %v851 = vrot.slane %v688, %v850
        %v852 = vmul.f32 %v851, %v791
        %v853 = vmul.f32 %v851, %v792
        %v854 = vmul.f32 %v852, 1.442695
        %v855 = vpow.pop %v854
        %v856 = vmul.f32 %v853, 1.442695
        %v857 = vpow.pop %v856
        %858 = vset.pattern.permute.xlu0 1
        %859 = vperm.xlu0 %858, %v773
        %v860 = vpop.permute.xlu0 %859
        %862 = vset.pattern.permute.xlu0 1
        %863 = vperm.xlu0 %862, %v778
        %v864 = vpop.permute.xlu0 %863
        %v866 = vlaneseq
        %v867 = vshrl.u32 %v866, 7
        %v868 = vsub.s32 1, %v867
        %v869 = vrot.slane %v793, %v868
        %v870 = vmul.f32 %v860, %v869
        %v871 = vmul.f32 %v864, %v869
        %v872 = vmul.f32 %v855, %v825
        %v873 = vmul.f32 %v857, %v826
        %v874 = vadd.f32 %v872, %v870
        %v875 = vadd.f32 %v873, %v871
        %876 = vset.pattern.permute.xlu0 1
        %877 = vperm.xlu0 %876, %v783
        %v878 = vpop.permute.xlu0 %877
        %880 = vset.pattern.permute.xlu0 1
        %881 = vperm.xlu0 %880, %v788
        %v882 = vpop.permute.xlu0 %881
        %v884 = vmul.f32 %v878, %v874
        %v885 = vmul.f32 %v882, %v875
        %v886 = vsel %vm513, %v884, 0.0
        %v887 = vsel %vm513, %v885, 0.0
        %v888 = vadd.f32 %v886, %v887
        %v889 = vrot.slane %v888, 4
        %v890 = vadd.f32 %v888, %v889
        %v891 = vrot.slane %v890, 2
        %v892 = vadd.f32 %v890, %v891
        %v893 = vrot.slane %v892, 1
        %v894 = vadd.f32 %v892, %v893
        %v895 = vlaneseq
        %v896 = vshrl.u32 %v895, 7
        %v897 = vsub.s32 2, %v896
        %v898 = vrot.slane %v688, %v897
        %v899 = vmul.f32 %v898, %v791
        %v900 = vmul.f32 %v898, %v792
        %v901 = vmul.f32 %v899, 1.442695
        %v902 = vpow.pop %v901
        %v903 = vmul.f32 %v900, 1.442695
        %v904 = vpow.pop %v903
        %905 = vset.pattern.permute.xlu0 2
        %906 = vperm.xlu0 %905, %v773
        %v907 = vpop.permute.xlu0 %906
        %909 = vset.pattern.permute.xlu0 2
        %910 = vperm.xlu0 %909, %v778
        %v911 = vpop.permute.xlu0 %910
        %v913 = vlaneseq
        %v914 = vshrl.u32 %v913, 7
        %v915 = vsub.s32 2, %v914
        %v916 = vrot.slane %v793, %v915
        %v917 = vmul.f32 %v907, %v916
        %v918 = vmul.f32 %v911, %v916
        %v919 = vmul.f32 %v902, %v874
        %v920 = vmul.f32 %v904, %v875
        %v921 = vadd.f32 %v919, %v917
        %v922 = vadd.f32 %v920, %v918
        %923 = vset.pattern.permute.xlu0 2
        %924 = vperm.xlu0 %923, %v783
        %v925 = vpop.permute.xlu0 %924
        %927 = vset.pattern.permute.xlu0 2
        %928 = vperm.xlu0 %927, %v788
        %v929 = vpop.permute.xlu0 %928
        %v931 = vmul.f32 %v925, %v921
        %v932 = vmul.f32 %v929, %v922
        %v933 = vsel %vm513, %v931, 0.0
        %v934 = vsel %vm513, %v932, 0.0
        %v935 = vadd.f32 %v933, %v934
        %v936 = vrot.slane %v935, 4
        %v937 = vadd.f32 %v935, %v936
        %v938 = vrot.slane %v937, 2
        %v939 = vadd.f32 %v937, %v938
        %v940 = vrot.slane %v939, 1
        %v941 = vadd.f32 %v939, %v940
        %v942 = vlaneseq
        %v943 = vshrl.u32 %v942, 7
        %v944 = vsub.s32 3, %v943
        %v945 = vrot.slane %v688, %v944
        %v946 = vmul.f32 %v945, %v791
        %v947 = vmul.f32 %v945, %v792
        %v948 = vmul.f32 %v946, 1.442695
        %v949 = vpow.pop %v948
        %v950 = vmul.f32 %v947, 1.442695
        %v951 = vpow.pop %v950
        %952 = vset.pattern.permute.xlu0 3
        %953 = vperm.xlu0 %952, %v773
        %v954 = vpop.permute.xlu0 %953
        %956 = vset.pattern.permute.xlu0 3
        %957 = vperm.xlu0 %956, %v778
        %v958 = vpop.permute.xlu0 %957
        %v960 = vlaneseq
        %v961 = vshrl.u32 %v960, 7
        %v962 = vsub.s32 3, %v961
        %v963 = vrot.slane %v793, %v962
        %v964 = vmul.f32 %v954, %v963
        %v965 = vmul.f32 %v958, %v963
        %v966 = vmul.f32 %v949, %v921
        %v967 = vmul.f32 %v951, %v922
        %v968 = vadd.f32 %v966, %v964
        %v969 = vadd.f32 %v967, %v965
        %970 = vset.pattern.permute.xlu0 3
        %971 = vperm.xlu0 %970, %v783
        %v972 = vpop.permute.xlu0 %971
        %974 = vset.pattern.permute.xlu0 3
        %975 = vperm.xlu0 %974, %v788
        %v976 = vpop.permute.xlu0 %975
        %v978 = vmul.f32 %v972, %v968
        %v979 = vmul.f32 %v976, %v969
        %v980 = vsel %vm513, %v978, 0.0
        %v981 = vsel %vm513, %v979, 0.0
        %v982 = vadd.f32 %v980, %v981
        %v983 = vrot.slane %v982, 4
        %v984 = vadd.f32 %v982, %v983
        %v985 = vrot.slane %v984, 2
        %v986 = vadd.f32 %v984, %v985
        %v987 = vrot.slane %v986, 1
        %v988 = vadd.f32 %v986, %v987
        %v989 = vlaneseq
        %v990 = vshrl.u32 %v989, 7
        %v991 = vsub.s32 4, %v990
        %v992 = vrot.slane %v688, %v991
        %v993 = vmul.f32 %v992, %v791
        %v994 = vmul.f32 %v992, %v792
        %v995 = vmul.f32 %v993, 1.442695
        %v996 = vpow.pop %v995
        %v997 = vmul.f32 %v994, 1.442695
        %v998 = vpow.pop %v997
        %999 = vset.pattern.permute.xlu0 4
        %1000 = vperm.xlu0 %999, %v773
        %v1001 = vpop.permute.xlu0 %1000
        %1003 = vset.pattern.permute.xlu0 4
        %1004 = vperm.xlu0 %1003, %v778
        %v1005 = vpop.permute.xlu0 %1004
        %v1007 = vlaneseq
        %v1008 = vshrl.u32 %v1007, 7
        %v1009 = vsub.s32 4, %v1008
        %v1010 = vrot.slane %v793, %v1009
        %v1011 = vmul.f32 %v1001, %v1010
        %v1012 = vmul.f32 %v1005, %v1010
        %v1013 = vmul.f32 %v996, %v968
        %v1014 = vmul.f32 %v998, %v969
        %v1015 = vadd.f32 %v1013, %v1011
        %v1016 = vadd.f32 %v1014, %v1012
        %1017 = vset.pattern.permute.xlu0 4
        %1018 = vperm.xlu0 %1017, %v783
        %v1019 = vpop.permute.xlu0 %1018
        %1021 = vset.pattern.permute.xlu0 4
        %1022 = vperm.xlu0 %1021, %v788
        %v1023 = vpop.permute.xlu0 %1022
        %v1025 = vmul.f32 %v1019, %v1015
        %v1026 = vmul.f32 %v1023, %v1016
        %v1027 = vsel %vm513, %v1025, 0.0
        %v1028 = vsel %vm513, %v1026, 0.0
        %v1029 = vadd.f32 %v1027, %v1028
        %v1030 = vrot.slane %v1029, 4
        %v1031 = vadd.f32 %v1029, %v1030
        %v1032 = vrot.slane %v1031, 2
        %v1033 = vadd.f32 %v1031, %v1032
        %v1034 = vrot.slane %v1033, 1
        %v1035 = vadd.f32 %v1033, %v1034
        %v1036 = vlaneseq
        %v1037 = vshrl.u32 %v1036, 7
        %v1038 = vsub.s32 5, %v1037
        %v1039 = vrot.slane %v688, %v1038
        %v1040 = vmul.f32 %v1039, %v791
        %v1041 = vmul.f32 %v1039, %v792
        %v1042 = vmul.f32 %v1040, 1.442695
        %v1043 = vpow.pop %v1042
        %v1044 = vmul.f32 %v1041, 1.442695
        %v1045 = vpow.pop %v1044
        %1046 = vset.pattern.permute.xlu0 5
        %1047 = vperm.xlu0 %1046, %v773
        %v1048 = vpop.permute.xlu0 %1047
        %1050 = vset.pattern.permute.xlu0 5
        %1051 = vperm.xlu0 %1050, %v778
        %v1052 = vpop.permute.xlu0 %1051
        %v1054 = vlaneseq
        %v1055 = vshrl.u32 %v1054, 7
        %v1056 = vsub.s32 5, %v1055
        %v1057 = vrot.slane %v793, %v1056
        %v1058 = vmul.f32 %v1048, %v1057
        %v1059 = vmul.f32 %v1052, %v1057
        %v1060 = vmul.f32 %v1043, %v1015
        %v1061 = vmul.f32 %v1045, %v1016
        %v1062 = vadd.f32 %v1060, %v1058
        %v1063 = vadd.f32 %v1061, %v1059
        %1064 = vset.pattern.permute.xlu0 5
        %1065 = vperm.xlu0 %1064, %v783
        %v1066 = vpop.permute.xlu0 %1065
        %1068 = vset.pattern.permute.xlu0 5
        %1069 = vperm.xlu0 %1068, %v788
        %v1070 = vpop.permute.xlu0 %1069
        %v1072 = vmul.f32 %v1066, %v1062
        %v1073 = vmul.f32 %v1070, %v1063
        %v1074 = vsel %vm513, %v1072, 0.0
        %v1075 = vsel %vm513, %v1073, 0.0
        %v1076 = vadd.f32 %v1074, %v1075
        %v1077 = vrot.slane %v1076, 4
        %v1078 = vadd.f32 %v1076, %v1077
        %v1079 = vrot.slane %v1078, 2
        %v1080 = vadd.f32 %v1078, %v1079
        %v1081 = vrot.slane %v1080, 1
        %v1082 = vadd.f32 %v1080, %v1081
        %v1083 = vlaneseq
        %v1084 = vshrl.u32 %v1083, 7
        %v1085 = vsub.s32 6, %v1084
        %v1086 = vrot.slane %v688, %v1085
        %v1087 = vmul.f32 %v1086, %v791
        %v1088 = vmul.f32 %v1086, %v792
        %v1089 = vmul.f32 %v1087, 1.442695
        %v1090 = vpow.pop %v1089
        %v1091 = vmul.f32 %v1088, 1.442695
        %v1092 = vpow.pop %v1091
        %1093 = vset.pattern.permute.xlu0 6
        %1094 = vperm.xlu0 %1093, %v773
        %v1095 = vpop.permute.xlu0 %1094
        %1097 = vset.pattern.permute.xlu0 6
        %1098 = vperm.xlu0 %1097, %v778
        %v1099 = vpop.permute.xlu0 %1098
        %v1101 = vlaneseq
        %v1102 = vshrl.u32 %v1101, 7
        %v1103 = vsub.s32 6, %v1102
        %v1104 = vrot.slane %v793, %v1103
        %v1105 = vmul.f32 %v1095, %v1104
        %v1106 = vmul.f32 %v1099, %v1104
        %v1107 = vmul.f32 %v1090, %v1062
        %v1108 = vmul.f32 %v1092, %v1063
        %v1109 = vadd.f32 %v1107, %v1105
        %v1110 = vadd.f32 %v1108, %v1106
        %1111 = vset.pattern.permute.xlu0 6
        %1112 = vperm.xlu0 %1111, %v783
        %v1113 = vpop.permute.xlu0 %1112
        %1115 = vset.pattern.permute.xlu0 6
        %1116 = vperm.xlu0 %1115, %v788
        %v1117 = vpop.permute.xlu0 %1116
        %v1119 = vmul.f32 %v1113, %v1109
        %v1120 = vmul.f32 %v1117, %v1110
        %v1121 = vsel %vm513, %v1119, 0.0
        %v1122 = vsel %vm513, %v1120, 0.0
        %v1123 = vadd.f32 %v1121, %v1122
        %v1124 = vrot.slane %v1123, 4
        %v1125 = vadd.f32 %v1123, %v1124
        %v1126 = vrot.slane %v1125, 2
        %v1127 = vadd.f32 %v1125, %v1126
        %v1128 = vrot.slane %v1127, 1
        %v1129 = vadd.f32 %v1127, %v1128
        %v1130 = vlaneseq
        %v1131 = vshrl.u32 %v1130, 7
        %v1132 = vsub.s32 7, %v1131
        %v1133 = vrot.slane %v688, %v1132
        %v1134 = vmul.f32 %v1133, %v791
        %v1135 = vmul.f32 %v1133, %v792
        %v1136 = vmul.f32 %v1134, 1.442695
        %v1137 = vpow.pop %v1136
        %v1138 = vmul.f32 %v1135, 1.442695
        %v1139 = vpow.pop %v1138
        %1140 = vset.pattern.permute.xlu0 7
        %1141 = vperm.xlu0 %1140, %v773
        %v1142 = vpop.permute.xlu0 %1141
        %1144 = vset.pattern.permute.xlu0 7
        %1145 = vperm.xlu0 %1144, %v778
        %v1146 = vpop.permute.xlu0 %1145
        %v1148 = vlaneseq
        %v1149 = vshrl.u32 %v1148, 7
        %v1150 = vsub.s32 7, %v1149
        %v1151 = vrot.slane %v793, %v1150
        %v1152 = vmul.f32 %v1142, %v1151
        %v1153 = vmul.f32 %v1146, %v1151
        %v1154 = vmul.f32 %v1137, %v1109
        %v1155 = vmul.f32 %v1139, %v1110
        %v1156 = vadd.f32 %v1154, %v1152
        %v1157 = vadd.f32 %v1155, %v1153
        %1158 = vset.pattern.permute.xlu0 7
        %1159 = vperm.xlu0 %1158, %v783
        %v1160 = vpop.permute.xlu0 %1159
        %1162 = vset.pattern.permute.xlu0 7
        %1163 = vperm.xlu0 %1162, %v788
        %v1164 = vpop.permute.xlu0 %1163
        %v1166 = vmul.f32 %v1160, %v1156
        %v1167 = vmul.f32 %v1164, %v1157
        %v1168 = vsel %vm513, %v1166, 0.0
        %v1169 = vsel %vm513, %v1167, 0.0
        %v1170 = vadd.f32 %v1168, %v1169
        %v1171 = vrot.slane %v1170, 4
        %v1172 = vadd.f32 %v1170, %v1171
        %v1173 = vrot.slane %v1172, 2
        %v1174 = vadd.f32 %v1172, %v1173
        %v1175 = vrot.slane %v1174, 1
        %v1176 = vadd.f32 %v1174, %v1175
        %v1177 = vlaneseq
        %v1178 = vshrl.u32 %v1177, 7
        %v1179 = vsub.s32 0, %v1178
        %v1180 = vrot.slane %v689, %v1179
        %v1181 = vmul.f32 %v1180, %v791
        %v1182 = vmul.f32 %v1180, %v792
        %v1183 = vmul.f32 %v1181, 1.442695
        %v1184 = vpow.pop %v1183
        %v1185 = vmul.f32 %v1182, 1.442695
        %v1186 = vpow.pop %v1185
        %1187 = vset.pattern.permute.xlu0 8
        %1188 = vperm.xlu0 %1187, %v773
        %v1189 = vpop.permute.xlu0 %1188
        %1191 = vset.pattern.permute.xlu0 8
        %1192 = vperm.xlu0 %1191, %v778
        %v1193 = vpop.permute.xlu0 %1192
        %v1195 = vlaneseq
        %v1196 = vshrl.u32 %v1195, 7
        %v1197 = vsub.s32 0, %v1196
        %v1198 = vrot.slane %v794, %v1197
        %v1199 = vmul.f32 %v1189, %v1198
        %v1200 = vmul.f32 %v1193, %v1198
        %v1201 = vmul.f32 %v1184, %v1156
        %v1202 = vmul.f32 %v1186, %v1157
        %v1203 = vadd.f32 %v1201, %v1199
        %v1204 = vadd.f32 %v1202, %v1200
        %1205 = vset.pattern.permute.xlu0 8
        %1206 = vperm.xlu0 %1205, %v783
        %v1207 = vpop.permute.xlu0 %1206
        %1209 = vset.pattern.permute.xlu0 8
        %1210 = vperm.xlu0 %1209, %v788
        %v1211 = vpop.permute.xlu0 %1210
        %v1213 = vmul.f32 %v1207, %v1203
        %v1214 = vmul.f32 %v1211, %v1204
        %v1215 = vsel %vm513, %v1213, 0.0
        %v1216 = vsel %vm513, %v1214, 0.0
        %v1217 = vadd.f32 %v1215, %v1216
        %v1218 = vrot.slane %v1217, 4
        %v1219 = vadd.f32 %v1217, %v1218
        %v1220 = vrot.slane %v1219, 2
        %v1221 = vadd.f32 %v1219, %v1220
        %v1222 = vrot.slane %v1221, 1
        %v1223 = vadd.f32 %v1221, %v1222
        %v1224 = vlaneseq
        %v1225 = vshrl.u32 %v1224, 7
        %v1226 = vsub.s32 1, %v1225
        %v1227 = vrot.slane %v689, %v1226
        %v1228 = vmul.f32 %v1227, %v791
        %v1229 = vmul.f32 %v1227, %v792
        %v1230 = vmul.f32 %v1228, 1.442695
        %v1231 = vpow.pop %v1230
        %v1232 = vmul.f32 %v1229, 1.442695
        %v1233 = vpow.pop %v1232
        %1234 = vset.pattern.permute.xlu0 9
        %1235 = vperm.xlu0 %1234, %v773
        %v1236 = vpop.permute.xlu0 %1235
        %1238 = vset.pattern.permute.xlu0 9
        %1239 = vperm.xlu0 %1238, %v778
        %v1240 = vpop.permute.xlu0 %1239
        %v1242 = vlaneseq
        %v1243 = vshrl.u32 %v1242, 7
        %v1244 = vsub.s32 1, %v1243
        %v1245 = vrot.slane %v794, %v1244
        %v1246 = vmul.f32 %v1236, %v1245
        %v1247 = vmul.f32 %v1240, %v1245
        %v1248 = vmul.f32 %v1231, %v1203
        %v1249 = vmul.f32 %v1233, %v1204
        %v1250 = vadd.f32 %v1248, %v1246
        %v1251 = vadd.f32 %v1249, %v1247
        %1252 = vset.pattern.permute.xlu0 9
        %1253 = vperm.xlu0 %1252, %v783
        %v1254 = vpop.permute.xlu0 %1253
        %1256 = vset.pattern.permute.xlu0 9
        %1257 = vperm.xlu0 %1256, %v788
        %v1258 = vpop.permute.xlu0 %1257
        %v1260 = vmul.f32 %v1254, %v1250
        %v1261 = vmul.f32 %v1258, %v1251
        %v1262 = vsel %vm513, %v1260, 0.0
        %v1263 = vsel %vm513, %v1261, 0.0
        %v1264 = vadd.f32 %v1262, %v1263
        %v1265 = vrot.slane %v1264, 4
        %v1266 = vadd.f32 %v1264, %v1265
        %v1267 = vrot.slane %v1266, 2
        %v1268 = vadd.f32 %v1266, %v1267
        %v1269 = vrot.slane %v1268, 1
        %v1270 = vadd.f32 %v1268, %v1269
        %v1271 = vlaneseq
        %v1272 = vshrl.u32 %v1271, 7
        %v1273 = vsub.s32 2, %v1272
        %v1274 = vrot.slane %v689, %v1273
        %v1275 = vmul.f32 %v1274, %v791
        %v1276 = vmul.f32 %v1274, %v792
        %v1277 = vmul.f32 %v1275, 1.442695
        %v1278 = vpow.pop %v1277
        %v1279 = vmul.f32 %v1276, 1.442695
        %v1280 = vpow.pop %v1279
        %1281 = vset.pattern.permute.xlu0 10
        %1282 = vperm.xlu0 %1281, %v773
        %v1283 = vpop.permute.xlu0 %1282
        %1285 = vset.pattern.permute.xlu0 10
        %1286 = vperm.xlu0 %1285, %v778
        %v1287 = vpop.permute.xlu0 %1286
        %v1289 = vlaneseq
        %v1290 = vshrl.u32 %v1289, 7
        %v1291 = vsub.s32 2, %v1290
        %v1292 = vrot.slane %v794, %v1291
        %v1293 = vmul.f32 %v1283, %v1292
        %v1294 = vmul.f32 %v1287, %v1292
        %v1295 = vmul.f32 %v1278, %v1250
        %v1296 = vmul.f32 %v1280, %v1251
        %v1297 = vadd.f32 %v1295, %v1293
        %v1298 = vadd.f32 %v1296, %v1294
        %1299 = vset.pattern.permute.xlu0 10
        %1300 = vperm.xlu0 %1299, %v783
        %v1301 = vpop.permute.xlu0 %1300
        %1303 = vset.pattern.permute.xlu0 10
        %1304 = vperm.xlu0 %1303, %v788
        %v1305 = vpop.permute.xlu0 %1304
        %v1307 = vmul.f32 %v1301, %v1297
        %v1308 = vmul.f32 %v1305, %v1298
        %v1309 = vsel %vm513, %v1307, 0.0
        %v1310 = vsel %vm513, %v1308, 0.0
        %v1311 = vadd.f32 %v1309, %v1310
        %v1312 = vrot.slane %v1311, 4
        %v1313 = vadd.f32 %v1311, %v1312
        %v1314 = vrot.slane %v1313, 2
        %v1315 = vadd.f32 %v1313, %v1314
        %v1316 = vrot.slane %v1315, 1
        %v1317 = vadd.f32 %v1315, %v1316
        %v1318 = vlaneseq
        %v1319 = vshrl.u32 %v1318, 7
        %v1320 = vsub.s32 3, %v1319
        %v1321 = vrot.slane %v689, %v1320
        %v1322 = vmul.f32 %v1321, %v791
        %v1323 = vmul.f32 %v1321, %v792
        %v1324 = vmul.f32 %v1322, 1.442695
        %v1325 = vpow.pop %v1324
        %v1326 = vmul.f32 %v1323, 1.442695
        %v1327 = vpow.pop %v1326
        %1328 = vset.pattern.permute.xlu0 11
        %1329 = vperm.xlu0 %1328, %v773
        %v1330 = vpop.permute.xlu0 %1329
        %1332 = vset.pattern.permute.xlu0 11
        %1333 = vperm.xlu0 %1332, %v778
        %v1334 = vpop.permute.xlu0 %1333
        %v1336 = vlaneseq
        %v1337 = vshrl.u32 %v1336, 7
        %v1338 = vsub.s32 3, %v1337
        %v1339 = vrot.slane %v794, %v1338
        %v1340 = vmul.f32 %v1330, %v1339
        %v1341 = vmul.f32 %v1334, %v1339
        %v1342 = vmul.f32 %v1325, %v1297
        %v1343 = vmul.f32 %v1327, %v1298
        %v1344 = vadd.f32 %v1342, %v1340
        %v1345 = vadd.f32 %v1343, %v1341
        %1346 = vset.pattern.permute.xlu0 11
        %1347 = vperm.xlu0 %1346, %v783
        %v1348 = vpop.permute.xlu0 %1347
        %1350 = vset.pattern.permute.xlu0 11
        %1351 = vperm.xlu0 %1350, %v788
        %v1352 = vpop.permute.xlu0 %1351
        %v1354 = vmul.f32 %v1348, %v1344
        %v1355 = vmul.f32 %v1352, %v1345
        %v1356 = vsel %vm513, %v1354, 0.0
        %v1357 = vsel %vm513, %v1355, 0.0
        %v1358 = vadd.f32 %v1356, %v1357
        %v1359 = vrot.slane %v1358, 4
        %v1360 = vadd.f32 %v1358, %v1359
        %v1361 = vrot.slane %v1360, 2
        %v1362 = vadd.f32 %v1360, %v1361
        %v1363 = vrot.slane %v1362, 1
        %v1364 = vadd.f32 %v1362, %v1363
        %v1365 = vlaneseq
        %v1366 = vshrl.u32 %v1365, 7
        %v1367 = vsub.s32 4, %v1366
        %v1368 = vrot.slane %v689, %v1367
        %v1369 = vmul.f32 %v1368, %v791
        %v1370 = vmul.f32 %v1368, %v792
        %v1371 = vmul.f32 %v1369, 1.442695
        %v1372 = vpow.pop %v1371
        %v1373 = vmul.f32 %v1370, 1.442695
        %v1374 = vpow.pop %v1373
        %1375 = vset.pattern.permute.xlu0 12
        %1376 = vperm.xlu0 %1375, %v773
        %v1377 = vpop.permute.xlu0 %1376
        %1379 = vset.pattern.permute.xlu0 12
        %1380 = vperm.xlu0 %1379, %v778
        %v1381 = vpop.permute.xlu0 %1380
        %v1383 = vlaneseq
        %v1384 = vshrl.u32 %v1383, 7
        %v1385 = vsub.s32 4, %v1384
        %v1386 = vrot.slane %v794, %v1385
        %v1387 = vmul.f32 %v1377, %v1386
        %v1388 = vmul.f32 %v1381, %v1386
        %v1389 = vmul.f32 %v1372, %v1344
        %v1390 = vmul.f32 %v1374, %v1345
        %v1391 = vadd.f32 %v1389, %v1387
        %v1392 = vadd.f32 %v1390, %v1388
        %1393 = vset.pattern.permute.xlu0 12
        %1394 = vperm.xlu0 %1393, %v783
        %v1395 = vpop.permute.xlu0 %1394
        %1397 = vset.pattern.permute.xlu0 12
        %1398 = vperm.xlu0 %1397, %v788
        %v1399 = vpop.permute.xlu0 %1398
        %v1401 = vmul.f32 %v1395, %v1391
        %v1402 = vmul.f32 %v1399, %v1392
        %v1403 = vsel %vm513, %v1401, 0.0
        %v1404 = vsel %vm513, %v1402, 0.0
        %v1405 = vadd.f32 %v1403, %v1404
        %v1406 = vrot.slane %v1405, 4
        %v1407 = vadd.f32 %v1405, %v1406
        %v1408 = vrot.slane %v1407, 2
        %v1409 = vadd.f32 %v1407, %v1408
        %v1410 = vrot.slane %v1409, 1
        %v1411 = vadd.f32 %v1409, %v1410
        %v1412 = vlaneseq
        %v1413 = vshrl.u32 %v1412, 7
        %v1414 = vsub.s32 5, %v1413
        %v1415 = vrot.slane %v689, %v1414
        %v1416 = vmul.f32 %v1415, %v791
        %v1417 = vmul.f32 %v1415, %v792
        %v1418 = vmul.f32 %v1416, 1.442695
        %v1419 = vpow.pop %v1418
        %v1420 = vmul.f32 %v1417, 1.442695
        %v1421 = vpow.pop %v1420
        %1422 = vset.pattern.permute.xlu0 13
        %1423 = vperm.xlu0 %1422, %v773
        %v1424 = vpop.permute.xlu0 %1423
        %1426 = vset.pattern.permute.xlu0 13
        %1427 = vperm.xlu0 %1426, %v778
        %v1428 = vpop.permute.xlu0 %1427
        %v1430 = vlaneseq
        %v1431 = vshrl.u32 %v1430, 7
        %v1432 = vsub.s32 5, %v1431
        %v1433 = vrot.slane %v794, %v1432
        %v1434 = vmul.f32 %v1424, %v1433
        %v1435 = vmul.f32 %v1428, %v1433
        %v1436 = vmul.f32 %v1419, %v1391
        %v1437 = vmul.f32 %v1421, %v1392
        %v1438 = vadd.f32 %v1436, %v1434
        %v1439 = vadd.f32 %v1437, %v1435
        %1440 = vset.pattern.permute.xlu0 13
        %1441 = vperm.xlu0 %1440, %v783
        %v1442 = vpop.permute.xlu0 %1441
        %1444 = vset.pattern.permute.xlu0 13
        %1445 = vperm.xlu0 %1444, %v788
        %v1446 = vpop.permute.xlu0 %1445
        %v1448 = vmul.f32 %v1442, %v1438
        %v1449 = vmul.f32 %v1446, %v1439
        %v1450 = vsel %vm513, %v1448, 0.0
        %v1451 = vsel %vm513, %v1449, 0.0
        %v1452 = vadd.f32 %v1450, %v1451
        %v1453 = vrot.slane %v1452, 4
        %v1454 = vadd.f32 %v1452, %v1453
        %v1455 = vrot.slane %v1454, 2
        %v1456 = vadd.f32 %v1454, %v1455
        %v1457 = vrot.slane %v1456, 1
        %v1458 = vadd.f32 %v1456, %v1457
        %v1459 = vlaneseq
        %v1460 = vshrl.u32 %v1459, 7
        %v1461 = vsub.s32 6, %v1460
        %v1462 = vrot.slane %v689, %v1461
        %v1463 = vmul.f32 %v1462, %v791
        %v1464 = vmul.f32 %v1462, %v792
        %v1465 = vmul.f32 %v1463, 1.442695
        %v1466 = vpow.pop %v1465
        %v1467 = vmul.f32 %v1464, 1.442695
        %v1468 = vpow.pop %v1467
        %1469 = vset.pattern.permute.xlu0 14
        %1470 = vperm.xlu0 %1469, %v773
        %v1471 = vpop.permute.xlu0 %1470
        %1473 = vset.pattern.permute.xlu0 14
        %1474 = vperm.xlu0 %1473, %v778
        %v1475 = vpop.permute.xlu0 %1474
        %v1477 = vlaneseq
        %v1478 = vshrl.u32 %v1477, 7
        %v1479 = vsub.s32 6, %v1478
        %v1480 = vrot.slane %v794, %v1479
        %v1481 = vmul.f32 %v1471, %v1480
        %v1482 = vmul.f32 %v1475, %v1480
        %v1483 = vmul.f32 %v1466, %v1438
        %v1484 = vmul.f32 %v1468, %v1439
        %v1485 = vadd.f32 %v1483, %v1481
        %v1486 = vadd.f32 %v1484, %v1482
        %1487 = vset.pattern.permute.xlu0 14
        %1488 = vperm.xlu0 %1487, %v783
        %v1489 = vpop.permute.xlu0 %1488
        %1491 = vset.pattern.permute.xlu0 14
        %1492 = vperm.xlu0 %1491, %v788
        %v1493 = vpop.permute.xlu0 %1492
        %v1495 = vmul.f32 %v1489, %v1485
        %v1496 = vmul.f32 %v1493, %v1486
        %v1497 = vsel %vm513, %v1495, 0.0
        %v1498 = vsel %vm513, %v1496, 0.0
        %v1499 = vadd.f32 %v1497, %v1498
        %v1500 = vrot.slane %v1499, 4
        %v1501 = vadd.f32 %v1499, %v1500
        %v1502 = vrot.slane %v1501, 2
        %v1503 = vadd.f32 %v1501, %v1502
        %v1504 = vrot.slane %v1503, 1
        %v1505 = vadd.f32 %v1503, %v1504
        %v1506 = vlaneseq
        %v1507 = vshrl.u32 %v1506, 7
        %v1508 = vsub.s32 7, %v1507
        %v1509 = vrot.slane %v689, %v1508
        %v1510 = vmul.f32 %v1509, %v791
        %v1511 = vmul.f32 %v1509, %v792
        %v1512 = vmul.f32 %v1510, 1.442695
        %v1513 = vpow.pop %v1512
        %v1514 = vmul.f32 %v1511, 1.442695
        %v1515 = vpow.pop %v1514
        %1516 = vset.pattern.permute.xlu0 15
        %1517 = vperm.xlu0 %1516, %v773
        %v1518 = vpop.permute.xlu0 %1517
        %1520 = vset.pattern.permute.xlu0 15
        %1521 = vperm.xlu0 %1520, %v778
        %v1522 = vpop.permute.xlu0 %1521
        %v1524 = vlaneseq
        %v1525 = vshrl.u32 %v1524, 7
        %v1526 = vsub.s32 7, %v1525
        %v1527 = vrot.slane %v794, %v1526
        %v1528 = vmul.f32 %v1518, %v1527
        %v1529 = vmul.f32 %v1522, %v1527
        %v1530 = vmul.f32 %v1513, %v1485
        %v1531 = vmul.f32 %v1515, %v1486
        %v1532 = vadd.f32 %v1530, %v1528
        %v1533 = vadd.f32 %v1531, %v1529
        %1534 = vset.pattern.permute.xlu0 15
        %1535 = vperm.xlu0 %1534, %v783
        %v1536 = vpop.permute.xlu0 %1535
        %1538 = vset.pattern.permute.xlu0 15
        %1539 = vperm.xlu0 %1538, %v788
        %v1540 = vpop.permute.xlu0 %1539
        %v1542 = vmul.f32 %v1536, %v1532
        %v1543 = vmul.f32 %v1540, %v1533
        %v1544 = vsel %vm513, %v1542, 0.0
        %v1545 = vsel %vm513, %v1543, 0.0
        %v1546 = vadd.f32 %v1544, %v1545
        %v1547 = vrot.slane %v1546, 4
        %v1548 = vadd.f32 %v1546, %v1547
        %v1549 = vrot.slane %v1548, 2
        %v1550 = vadd.f32 %v1548, %v1549
        %v1551 = vrot.slane %v1550, 1
        %v1552 = vadd.f32 %v1550, %v1551
        %1553 = vst.msk [vmem:[#allocation3] sm:$0xff] %vm513, %v1532
        %1554 = vst.msk [vmem:[#allocation3 + $0x8] sm:$0xff] %vm513, %v1533
        %vm1555 = vcmask 1040384
        %v1556 = vsel %vm1555, %v847, %v894
        %vm1557 = vcmask 1041408
        %v1558 = vsel %vm1557, %v1556, %v941
        %vm1559 = vcmask 1042432
        %v1560 = vsel %vm1559, %v1558, %v988
        %vm1561 = vcmask 1043456
        %v1562 = vsel %vm1561, %v1560, %v1035
        %vm1563 = vcmask 1044480
        %v1564 = vsel %vm1563, %v1562, %v1082
        %vm1565 = vcmask 1045504
        %v1566 = vsel %vm1565, %v1564, %v1129
        %vm1567 = vcmask 1046528
        %v1568 = vsel %vm1567, %v1566, %v1176
        %v1569 = vsel %vm1555, %v1223, %v1270
        %v1570 = vsel %vm1557, %v1569, %v1317
        %v1571 = vsel %vm1559, %v1570, %v1364
        %v1572 = vsel %vm1561, %v1571, %v1411
        %v1573 = vsel %vm1563, %v1572, %v1458
        %v1574 = vsel %vm1565, %v1573, %v1505
        %v1575 = vsel %vm1567, %v1574, %v1552
        %v1576 = vld [vmem:[%s7] sm:$0x1]
        %v1578 = vlaneseq
        %v1579 = vshrl.u32 %v1578, 7
        %v1580 = vsub.s32 0, %v1579
        %v1581 = vrot.slane %v1576, %v1580
        %v1583 = vmul.f32 %v577, %v1581
        %v1584 = vmul.f32 %v578, %v1581
        %v1585 = vadd.f32 %v1568, %v1583
        %v1586 = vadd.f32 %v1575, %v1584
        %1589 = vrot.lane.b32.xlu0 %v511, 64
        %v1590 = vpop.permute.xlu0 %1589
        %1591 = vrot.lane.b32.xlu0 %v512, 64
        %v1592 = vpop.permute.xlu0 %1591
        %v1595 = vmul.f32 %v1585, %v1590
        %v1596 = vmul.f32 %v1586, %v1592
        %v1597 = vld [vmem:[%s8] sm:$0xff]
        %v1598 = vld [vmem:[%s8 + $0x8] sm:$0xff]
        %v1599 = vld [vmem:[%s8 + $0x10] sm:$0xff]
        %v1600 = vld [vmem:[%s8 + $0x18] sm:$0xff]
        %v1601 = vld [vmem:[%s8 + $0x20] sm:$0xff]
        %v1602 = vld [vmem:[%s8 + $0x28] sm:$0xff]
        %v1603 = vld [vmem:[%s8 + $0x30] sm:$0xff]
        %v1604 = vld [vmem:[%s8 + $0x38] sm:$0xff]
        %v1606 = vsel %vm513, %v1595, 0
        %v1609 = vsel %vm513, %v1596, 0
        %1611 = vmatprep.subr.mxu0 0.0
        %1612 = vmatpush1.msra.mxu0 %v1597
        %1613 = vmatprep.subr.mxu0 0.0
        %1614 = vmatpush1.msra.mxu0 %v1598
        %1615 = vmatprep.subr.mxu0 0.0
        %1616 = vmatpush1.msra.mxu0 %v1599
        %1617 = vmatprep.subr.mxu0 0.0
        %1618 = vmatpush1.msra.mxu0 %v1600
        %1619 = vmatprep.subr.mxu0 0.0
        %1620 = vmatpush1.msra.mxu0 %v1601
        %1621 = vmatprep.subr.mxu0 0.0
        %1622 = vmatpush1.msra.mxu0 %v1602
        %1623 = vmatprep.subr.mxu0 0.0
        %1624 = vmatpush1.msra.mxu0 %v1603
        %1625 = vmatprep.subr.mxu0 0.0
        %1626 = vmatpush1.msra.mxu0 %v1604
        %1627 = vmatprep.subr.mxu0 0.0
        %1628 = vmatpush1.msra.mxu0 0.0
        %1629 = vmatprep.subr.mxu0 0.0
        %1630 = vmatpush1.msra.mxu0 0.0
        %1631 = vmatprep.subr.mxu0 0.0
        %1632 = vmatpush1.msra.mxu0 0.0
        %1633 = vmatprep.subr.mxu0 0.0
        %1634 = vmatpush1.msra.mxu0 0.0
        %1635 = vmatprep.subr.mxu0 0.0
        %1636 = vmatpush1.msra.mxu0 0.0
        %1637 = vmatprep.subr.mxu0 0.0
        %1638 = vmatpush1.msra.mxu0 0.0
        %1639 = vmatprep.subr.mxu0 0.0
        %1640 = vmatpush1.msra.mxu0 0.0
        %1641 = vmatprep.subr.mxu0 0.0
        %1642 = vmatpush1.msra.mxu0 0.0
        %1643 = vmatprep.subr.mxu0 0.0
        %1644 = vmatpush1.msra.mxu0 0.0
        %1645 = vmatprep.subr.mxu0 0.0
        %1646 = vmatpush1.msra.mxu0 0.0
        %1647 = vmatprep.subr.mxu0 0.0
        %1648 = vmatpush1.msra.mxu0 0.0
        %1649 = vmatprep.subr.mxu0 0.0
        %1650 = vmatpush1.msra.mxu0 0.0
        %1651 = vmatprep.subr.mxu0 0.0
        %1652 = vmatpush1.msra.mxu0 0.0
        %1653 = vmatprep.subr.mxu0 0.0
        %1654 = vmatpush1.msra.mxu0 0.0
        %1655 = vmatprep.subr.mxu0 0.0
        %1656 = vmatpush1.msra.mxu0 0.0
        %1657 = vmatprep.subr.mxu0 0.0
        %1658 = vmatpush1.msra.mxu0 0.0
        %1659 = vmatprep.subr.mxu0 0.0
        %1660 = vmatpush1.msra.mxu0 0.0
        %1661 = vmatprep.subr.mxu0 0.0
        %1662 = vmatpush1.msra.mxu0 0.0
        %1663 = vmatprep.subr.mxu0 0.0
        %1664 = vmatpush1.msra.mxu0 0.0
        %1665 = vmatprep.subr.mxu0 0.0
        %1666 = vmatpush1.msra.mxu0 0.0
        %1667 = vmatprep.subr.mxu0 0.0
        %1668 = vmatpush1.msra.mxu0 0.0
        %1669 = vmatprep.subr.mxu0 0.0
        %1670 = vmatpush1.msra.mxu0 0.0
        %1671 = vmatprep.subr.mxu0 0.0
        %1672 = vmatpush1.msra.mxu0 0.0
        %1673 = vmatprep.subr.mxu0 0.0
        %1674 = vmatpush1.msra.mxu0 0.0
        %1675 = vmatprep.mubr.f32.mxu0 0.0
        %1676 = vmatmul.mubr.f32.gmra.mrb[0].mxu0 %v1606
        %v1677 = vpop.f32.mrb[0].mxu0
        %v1678 = vadd.f32 0.0, %v1677
        %v1679 = vpop.f32.mrb[0].mxu0
        %1680 = vmatprep.mubr.f32.mxu0 0.0
        %1681 = vmatmul.mubr.f32.gmra.mrb[0].mxu0 %v1609
        %v1682 = vpop.f32.mrb[0].mxu0
        %v1683 = vadd.f32 0.0, %v1682
        %v1684 = vpop.f32.mrb[0].mxu0
        %1685 = vdwg.mxu0
        %1686 = vst.msk [vmem:[%s392] sm:$0xff] %vm419, %v1678
        %1687 = vst.msk [vmem:[%s392 + $0x8] sm:$0xff] %vm419, %v1683
        %s1688 = sand.u32 %s243, 1
        %s1689 = scalar_lea.sflag [#allocation6], %s1688
        %s1690 = sand.u32 %s243, 1
        %s1691 = smul.addr %s1690, 16
        %s1692 = scalar_lea.vmem [#allocation10], %s1691
        // Predicated region
        $region73: #{tpu_custom_call.1} parent=55 // pred_check
          %p1693 = pneg %p253
        $region74: #{tpu_custom_call.1} parent=55 // pred_check_branch
          %1695 = sbr.rel (%p1693) target = $region76
        $region75: #{tpu_custom_call.1} parent=55 // pred_region
          %s1696 = smul.u32 2, %s30
          %s1698 = ssub.s32 256, 256
          %1699 = vsyncadd %s1689, %s1698
          %s1700 = smul.addr %s29, 4
          %s1701 = sadd.s32 %s1696, %s1700
          %s1702 = smul.addr %s1701, 128
          %s1703 = scalar_lea.hbm %s9, %s1702
          %s1704 = sshll.u32 %s1692, 4
          %s1705 = int_to_ptr.vmem [resolvable:$true] %s1704
          %1710 = dma.vmem_to_hbm [thread:$0]  %s1705, 256, %s1703, %s1689, 128, 128, 8
        $region76: #{tpu_custom_call.1} parent=55 // pred_fallthru
          _
      $region56: #{tpu_custom_call.1} parent=5 // pred_fallthru
        _
      %p1711 = scmp.le.s32.totalorder 2, %s20
      // Predicated region
      $region77: #{tpu_custom_call.1} parent=5 // pred_check
        %p1712 = pneg %p1711
      $region78: #{tpu_custom_call.1} parent=5 // pred_check_branch
        %1714 = sbr.rel (%p1712) target = $region80
      $region79: #{tpu_custom_call.1} parent=5 // pred_region
        %s1715 = ssub.s32 %s20, 2
        // Predicated region
        $region81: #{tpu_custom_call.1} parent=79 // pred_check
          %p1716 = pneg %p259
        $region82: #{tpu_custom_call.1} parent=79 // pred_check_branch
          %1718 = sbr.rel (%p1716) target = $region84
        $region83: #{tpu_custom_call.1} parent=79 // pred_region
          %s1719 = sand.u32 %s244, 1
          %s1720 = scalar_lea.sflag [#allocation6], %s1719
          %s1721 = sand.u32 %s244, 1
          %s1722 = smul.addr %s1721, 16
          %s1723 = scalar_lea.vmem [#allocation10], %s1722
          %1724 = dma.done %s1720, 256
        $region84: #{tpu_custom_call.1} parent=79 // pred_fallthru
          _
      $region80: #{tpu_custom_call.1} parent=5 // pred_fallthru
        _
    $region6: #{tpu_custom_call.1} parent=1 // loop_footer
      %s24 = sadd.s32 1, %s20
    $region7: #{tpu_custom_call.1} parent=1 // loop_footer_branch
      %19 = sbr.rel target = $region3
    $region8: #{tpu_custom_call.1} parent=1 // loop_exit
      _
    %1725 = vsyncpa [#allocation5], 1
    %s1726 = scalar_lea.sflag [#allocation5], 1
    %1727 = vsyncpa %s1726, 1
    %1728 = vsyncpa [#allocation8], 1
    %1729 = vsyncpa [#allocation6], 1
    %s1730 = scalar_lea.sflag [#allocation6], 1
    %1731 = vsyncpa %s1730, 1

</llo_original>
